<compile_context>
chip_gen: v5e
topology: v5e:2x2
jax: 0.10.0
libtpu: 0.0.40
codegen_flags: <defaults>
</compile_context>

<pallas_src>
from functools import partial

import jax
import jax.numpy as jnp
from jax.experimental import pallas as pl
from jax.experimental.pallas import tpu as pltpu


# ----------------------------------------------------------------------------
# In-kernel helpers
# ----------------------------------------------------------------------------
def _mha_and_project(q, k, v, wp, bp, *, num_heads, scale):
    """Multi-head softmax attention + output projection (all f32).

    q: (N, C), k/v: (Nkv, C), wp: (C, C), bp: (1, C) -> (N, C).
    Heads are packed in the channel dim; each head's output is folded straight
    into the projection so the result is written lane-dense as (N, C).
    """
    N, C = q.shape
    hd = C // num_heads
    acc = jnp.zeros((N, C), jnp.float32)
    for h in range(num_heads):  # tiny head count -> fully unrolled
        sl = slice(h * hd, (h + 1) * hd)
        qh, kh, vh = q[:, sl], k[:, sl], v[:, sl]
        # scores = q_h @ k_h^T * scale  (contract over head_dim)
        s = jax.lax.dot_general(qh, kh, (((1,), (1,)), ((), ())),
                                preferred_element_type=jnp.float32) * scale
        m = jnp.max(s, axis=-1, keepdims=True)
        p = jnp.exp(s - m)
        denom = jnp.sum(p, axis=-1, keepdims=True)
        oh = jnp.dot(p, vh, preferred_element_type=jnp.float32)
        # Fold 1/denom into the (N, hd) result instead of dividing the
        # (N, Nkv) prob matrix; approx reciprocal runs on the EUP.
        oh = oh * pl.reciprocal(denom, approx=True)
        acc = acc + jnp.dot(oh, wp[sl, :], preferred_element_type=jnp.float32)
    return acc + bp


# ----------------------------------------------------------------------------
# Fused kernels (one batch element per grid step)
# ----------------------------------------------------------------------------
def _attn_sr_kernel(x_ref, p_ref, wq_ref, bq_ref, wsr_ref, bsr_ref,
                    g_ref, beta_ref, wkv_ref, bkv_ref, wp_ref, bp_ref,
                    o_ref, *, num_heads, scale, eps):
    x = x_ref[0].astype(jnp.float32)          # (N, C)
    patches = p_ref[0].astype(jnp.float32)    # (Nkv, C*sr*sr)
    C = x.shape[-1]

    # q projection
    q = jnp.dot(x, wq_ref[...], preferred_element_type=jnp.float32) + bq_ref[...]

    # strided Conv2d (kernel=stride=sr) lowered to a patch matmul, then LayerNorm
    xk = jnp.dot(patches, wsr_ref[...],
                 preferred_element_type=jnp.float32) + bsr_ref[...]
    mean = jnp.mean(xk, axis=-1, keepdims=True)
    xc = xk - mean
    var = jnp.mean(xc * xc, axis=-1, keepdims=True)     # biased variance (torch)
    xk = xc * jax.lax.rsqrt(var + eps) * g_ref[...] + beta_ref[...]

    # kv projection; first C columns are K (all heads), last C are V
    kv = jnp.dot(xk, wkv_ref[...], preferred_element_type=jnp.float32) + bkv_ref[...]
    k, v = kv[:, :C], kv[:, C:]

    out = _mha_and_project(q, k, v, wp_ref[...], bp_ref[...],
                           num_heads=num_heads, scale=scale)
    o_ref[0] = out.astype(o_ref.dtype)


def _attn_kernel(x_ref, wq_ref, bq_ref, wkv_ref, bkv_ref, wp_ref, bp_ref,
                 o_ref, *, num_heads, scale):
    x = x_ref[0].astype(jnp.float32)          # (N, C)
    C = x.shape[-1]

    q = jnp.dot(x, wq_ref[...], preferred_element_type=jnp.float32) + bq_ref[...]
    kv = jnp.dot(x, wkv_ref[...], preferred_element_type=jnp.float32) + bkv_ref[...]
    k, v = kv[:, :C], kv[:, C:]

    out = _mha_and_project(q, k, v, wp_ref[...], bp_ref[...],
                           num_heads=num_heads, scale=scale)
    o_ref[0] = out.astype(o_ref.dtype)


# ----------------------------------------------------------------------------
# Forward wrapper (only cheap layout plumbing stays in XLA)
# ----------------------------------------------------------------------------
def attention_forward(x, H, W, params, *, num_heads, sr_ratio, eps=1e-5):
    B, N, C = x.shape
    hd = C // num_heads
    scale = hd ** (-0.5)

    def _wspec(arr):
        nd = arr.ndim
        return pl.BlockSpec(arr.shape, lambda b, _nd=nd: (0,) * _nd)

    if sr_ratio > 1:
        Hs, Ws = H // sr_ratio, W // sr_ratio
        Nkv = Hs * Ws
        Cp = C * sr_ratio * sr_ratio
        # x.permute(0,2,1).reshape(B,C,H,W) -> non-overlapping patches,
        # flattened per patch as (cin, ky, kx) to match OIHW conv weights.
        x_img = x.transpose(0, 2, 1).reshape(B, C, H, W)
        patches = x_img.reshape(B, C, Hs, sr_ratio, Ws, sr_ratio)
        patches = patches.transpose(0, 2, 4, 1, 3, 5).reshape(B, Nkv, Cp)
        w_sr = params["w_sr"].reshape(C, Cp).T            # (Cp, C)

        args = (x, patches,
                params["wq"], params["bq"].reshape(1, C),
                w_sr, params["b_sr"].reshape(1, C),
                params["gamma"].reshape(1, C), params["beta"].reshape(1, C),
                params["wkv"], params["bkv"].reshape(1, 2 * C),
                params["w_proj"], params["b_proj"].reshape(1, C))
        in_specs = [
            pl.BlockSpec((1, N, C), lambda b: (b, 0, 0)),
            pl.BlockSpec((1, Nkv, Cp), lambda b: (b, 0, 0)),
        ] + [_wspec(a) for a in args[2:]]
        kernel = partial(_attn_sr_kernel, num_heads=num_heads,
                         scale=scale, eps=eps)
    else:
        args = (x,
                params["wq"], params["bq"].reshape(1, C),
                params["wkv"], params["bkv"].reshape(1, 2 * C),
                params["w_proj"], params["b_proj"].reshape(1, C))
        in_specs = [pl.BlockSpec((1, N, C), lambda b: (b, 0, 0))] + \
                   [_wspec(a) for a in args[1:]]
        kernel = partial(_attn_kernel, num_heads=num_heads, scale=scale)

    return pl.pallas_call(
        kernel,
        out_shape=jax.ShapeDtypeStruct((B, N, C), x.dtype),
        grid=(B,),
        in_specs=in_specs,
        out_specs=pl.BlockSpec((1, N, C), lambda b: (b, 0, 0)),
        compiler_params=pltpu.CompilerParams(
            dimension_semantics=("parallel",)),
    )(*args)


# ----------------------------------------------------------------------------
# Pure-JAX reference (for correctness check only)
# ----------------------------------------------------------------------------
def attention_reference(x, H, W, p, *, num_heads, sr_ratio):
    B, N, C = x.shape
    hd = C // num_heads
    scale = hd ** (-0.5)
    q = (x @ p["wq"]).reshape(B, N, num_heads, hd).transpose(0, 2, 1, 3)
    if sr_ratio > 1:
        x_img = x.transpose(0, 2, 1).reshape(B, C, H, W)
        x_ = jax.lax.conv_general_dilated(
            x_img, p["w_sr"], (sr_ratio, sr_ratio), "VALID",
            dimension_numbers=("NCHW", "OIHW", "NCHW"))
        x_ = x_ + p["b_sr"][None, :, None, None]
        x_ = x_.reshape(B, C, -1).transpose(0, 2, 1)
        mean = x_.mean(-1, keepdims=True)
        var = ((x_ - mean) ** 2).mean(-1, keepdims=True)
        x_ = (x_ - mean) / jnp.sqrt(var + 1e-5) * p["gamma"] + p["beta"]
    else:
        x_ = x
    kv = (x_ @ p["wkv"]).reshape(B, -1, 2, num_heads, hd).transpose(2, 0, 3, 1, 4)
    k, v = kv[0], kv[1]
    attn = jax.nn.softmax((q @ jnp.swapaxes(k, -2, -1)) * scale, axis=-1)
    o = (attn @ v).transpose(0, 2, 1, 3).reshape(B, N, C)
    return o @ p["w_proj"] + p["b_proj"]


# ----------------------------------------------------------------------------
if __name__ == "__main__":
    B, C, H, W = 2, 32, 16, 16
    N = H * W
    num_heads = 4
    dtype = jnp.float32

    key = jax.random.PRNGKey(0)
    ks = jax.random.split(key, 8)

    sr_ratio = 2
    params = {
        "wq": (0.02 * jax.random.normal(ks[0], (C, C))).astype(dtype),
        "bq": jnp.zeros((C,), dtype),
        "wkv": (0.02 * jax.random.normal(ks[1], (C, 2 * C))).astype(dtype),
        "bkv": jnp.zeros((2 * C,), dtype),
        "w_proj": (0.02 * jax.random.normal(ks[2], (C, C))).astype(dtype),
        "b_proj": (0.02 * jax.random.normal(ks[3], (C,))).astype(dtype),
        "w_sr": (0.02 * jax.random.normal(
            ks[4], (C, C, sr_ratio, sr_ratio))).astype(dtype),
        "b_sr": (0.02 * jax.random.normal(ks[5], (C,))).astype(dtype),
        "gamma": jnp.ones((C,), dtype),
        "beta": jnp.zeros((C,), dtype),
    }

    x = jax.random.normal(ks[6], (B, N, C), dtype)

    # Exercise both branches: sr_ratio=2 (conv + LayerNorm path) and sr_ratio=1.
    for sr in (2, 1):
        out = attention_forward(x, H, W, params, num_heads=num_heads,
                                sr_ratio=sr)
        out = jax.block_until_ready(out)
        ref = attention_reference(x, H, W, params, num_heads=num_heads,
                                  sr_ratio=sr)
        assert out.shape == (B, N, C)
        err = float(jnp.max(jnp.abs(out - ref)))
        assert jnp.allclose(out, ref, rtol=2e-3, atol=2e-3), (sr, err)

    print("KERNEL_OK")
</pallas_src>

<mosaic_0001>
module attributes {stable_mosaic.version = 11 : i64} {
  func.func @_attn_sr_kernel(%arg0: i32, %arg1: memref<1x256x32xf32, #tpu.memory_space<vmem>>, %arg2: memref<1x64x128xf32, #tpu.memory_space<vmem>>, %arg3: memref<32x32xf32, #tpu.memory_space<vmem>>, %arg4: memref<1x32xf32, #tpu.memory_space<vmem>>, %arg5: memref<128x32xf32, #tpu.memory_space<vmem>>, %arg6: memref<1x32xf32, #tpu.memory_space<vmem>>, %arg7: memref<1x32xf32, #tpu.memory_space<vmem>>, %arg8: memref<1x32xf32, #tpu.memory_space<vmem>>, %arg9: memref<32x64xf32, #tpu.memory_space<vmem>>, %arg10: memref<1x64xf32, #tpu.memory_space<vmem>>, %arg11: memref<32x32xf32, #tpu.memory_space<vmem>>, %arg12: memref<1x32xf32, #tpu.memory_space<vmem>>, %arg13: memref<1x256x32xf32, #tpu.memory_space<vmem>>) attributes {dimension_semantics = [#tpu.dimension_semantics<parallel>], iteration_bounds = array<i64: 2>, scalar_prefetch = 0 : i64, scratch_operands = 0 : i64, tpu.core_type = #tpu.core_type<tc>, window_params = [{transform_indices = @transform_0, window_bounds = array<i64: 1, 256, 32>}, {transform_indices = @transform_1, window_bounds = array<i64: 1, 64, 128>}, {pipeline_mode = #tpu.pipeline_mode<synchronous>, transform_indices = @transform_2, window_bounds = array<i64: 32, 32>}, {pipeline_mode = #tpu.pipeline_mode<synchronous>, transform_indices = @transform_3, window_bounds = array<i64: 1, 32>}, {pipeline_mode = #tpu.pipeline_mode<synchronous>, transform_indices = @transform_4, window_bounds = array<i64: 128, 32>}, {pipeline_mode = #tpu.pipeline_mode<synchronous>, transform_indices = @transform_5, window_bounds = array<i64: 1, 32>}, {pipeline_mode = #tpu.pipeline_mode<synchronous>, transform_indices = @transform_6, window_bounds = array<i64: 1, 32>}, {pipeline_mode = #tpu.pipeline_mode<synchronous>, transform_indices = @transform_7, window_bounds = array<i64: 1, 32>}, {pipeline_mode = #tpu.pipeline_mode<synchronous>, transform_indices = @transform_8, window_bounds = array<i64: 32, 64>}, {pipeline_mode = #tpu.pipeline_mode<synchronous>, transform_indices = @transform_9, window_bounds = array<i64: 1, 64>}, {pipeline_mode = #tpu.pipeline_mode<synchronous>, transform_indices = @transform_10, window_bounds = array<i64: 32, 32>}, {pipeline_mode = #tpu.pipeline_mode<synchronous>, transform_indices = @transform_11, window_bounds = array<i64: 1, 32>}, {transform_indices = @transform_12, window_bounds = array<i64: 1, 256, 32>}]} {
    %c0 = arith.constant 0 : index
    %c0_0 = arith.constant 0 : index
    %c0_1 = arith.constant 0 : index
    %0 = vector.load %arg1[%c0, %c0_0, %c0_1] : memref<1x256x32xf32, #tpu.memory_space<vmem>>, vector<1x256x32xf32>
    %1 = vector.shape_cast %0 : vector<1x256x32xf32> to vector<256x32xf32>
    %c0_2 = arith.constant 0 : index
    %c0_3 = arith.constant 0 : index
    %c0_4 = arith.constant 0 : index
    %2 = vector.load %arg2[%c0_2, %c0_3, %c0_4] : memref<1x64x128xf32, #tpu.memory_space<vmem>>, vector<1x64x128xf32>
    %3 = vector.shape_cast %2 : vector<1x64x128xf32> to vector<64x128xf32>
    %c0_5 = arith.constant 0 : index
    %c0_6 = arith.constant 0 : index
    %4 = vector.load %arg3[%c0_5, %c0_6] : memref<32x32xf32, #tpu.memory_space<vmem>>, vector<32x32xf32>
    %cst = arith.constant dense<0.000000e+00> : vector<256x32xf32>
    %5 = tpu.matmul %1, %4, %cst {dimension_numbers = #tpu.dot_dimension_numbers<[1], [0], [0], [1], [0, 0, 1, 1], [], []>} : vector<256x32xf32>, vector<32x32xf32>, vector<256x32xf32> -> vector<256x32xf32>
    %c0_7 = arith.constant 0 : index
    %c0_8 = arith.constant 0 : index
    %6 = vector.load %arg4[%c0_7, %c0_8] : memref<1x32xf32, #tpu.memory_space<vmem>>, vector<1x32xf32>
    %7 = vector.broadcast %6 : vector<1x32xf32> to vector<256x32xf32>
    %8 = arith.addf %5, %7 : vector<256x32xf32>
    %c0_9 = arith.constant 0 : index
    %c0_10 = arith.constant 0 : index
    %9 = vector.load %arg5[%c0_9, %c0_10] : memref<128x32xf32, #tpu.memory_space<vmem>>, vector<128x32xf32>
    %cst_11 = arith.constant dense<0.000000e+00> : vector<64x32xf32>
    %10 = tpu.matmul %3, %9, %cst_11 {dimension_numbers = #tpu.dot_dimension_numbers<[1], [0], [0], [1], [0, 0, 1, 1], [], []>} : vector<64x128xf32>, vector<128x32xf32>, vector<64x32xf32> -> vector<64x32xf32>
    %c0_12 = arith.constant 0 : index
    %c0_13 = arith.constant 0 : index
    %11 = vector.load %arg6[%c0_12, %c0_13] : memref<1x32xf32, #tpu.memory_space<vmem>>, vector<1x32xf32>
    %12 = vector.broadcast %11 : vector<1x32xf32> to vector<64x32xf32>
    %13 = arith.addf %10, %12 : vector<64x32xf32>
    %cst_14 = arith.constant dense<0.000000e+00> : vector<64xf32>
    %14 = vector.multi_reduction <add>, %13, %cst_14 [1] : vector<64x32xf32> to vector<64xf32>
    %15 = vector.shape_cast %14 : vector<64xf32> to vector<64x1xf32>
    %cst_15 = arith.constant 3.200000e+01 : f32
    %16 = vector.broadcast %cst_15 : f32 to vector<64x1xf32>
    %17 = arith.divf %15, %16 : vector<64x1xf32>
    %18 = vector.broadcast %17 : vector<64x1xf32> to vector<64x32xf32>
    %19 = arith.subf %13, %18 : vector<64x32xf32>
    %20 = arith.mulf %19, %19 : vector<64x32xf32>
    %cst_16 = arith.constant dense<0.000000e+00> : vector<64xf32>
    %21 = vector.multi_reduction <add>, %20, %cst_16 [1] : vector<64x32xf32> to vector<64xf32>
    %22 = vector.shape_cast %21 : vector<64xf32> to vector<64x1xf32>
    %cst_17 = arith.constant 3.200000e+01 : f32
    %23 = vector.broadcast %cst_17 : f32 to vector<64x1xf32>
    %24 = arith.divf %22, %23 : vector<64x1xf32>
    %cst_18 = arith.constant 9.99999974E-6 : f32
    %25 = vector.broadcast %cst_18 : f32 to vector<64x1xf32>
    %26 = arith.addf %24, %25 : vector<64x1xf32>
    %27 = math.rsqrt %26 : vector<64x1xf32>
    %28 = vector.broadcast %27 : vector<64x1xf32> to vector<64x32xf32>
    %29 = arith.mulf %19, %28 : vector<64x32xf32>
    %c0_19 = arith.constant 0 : index
    %c0_20 = arith.constant 0 : index
    %30 = vector.load %arg7[%c0_19, %c0_20] : memref<1x32xf32, #tpu.memory_space<vmem>>, vector<1x32xf32>
    %31 = vector.broadcast %30 : vector<1x32xf32> to vector<64x32xf32>
    %32 = arith.mulf %29, %31 : vector<64x32xf32>
    %c0_21 = arith.constant 0 : index
    %c0_22 = arith.constant 0 : index
    %33 = vector.load %arg8[%c0_21, %c0_22] : memref<1x32xf32, #tpu.memory_space<vmem>>, vector<1x32xf32>
    %34 = vector.broadcast %33 : vector<1x32xf32> to vector<64x32xf32>
    %35 = arith.addf %32, %34 : vector<64x32xf32>
    %c0_23 = arith.constant 0 : index
    %c0_24 = arith.constant 0 : index
    %36 = vector.load %arg9[%c0_23, %c0_24] : memref<32x64xf32, #tpu.memory_space<vmem>>, vector<32x64xf32>
    %cst_25 = arith.constant dense<0.000000e+00> : vector<64x64xf32>
    %37 = tpu.matmul %35, %36, %cst_25 {dimension_numbers = #tpu.dot_dimension_numbers<[1], [0], [0], [1], [0, 0, 1, 1], [], []>} : vector<64x32xf32>, vector<32x64xf32>, vector<64x64xf32> -> vector<64x64xf32>
    %c0_26 = arith.constant 0 : index
    %c0_27 = arith.constant 0 : index
    %38 = vector.load %arg10[%c0_26, %c0_27] : memref<1x64xf32, #tpu.memory_space<vmem>>, vector<1x64xf32>
    %39 = vector.broadcast %38 : vector<1x64xf32> to vector<64x64xf32>
    %40 = arith.addf %37, %39 : vector<64x64xf32>
    %41 = vector.extract_strided_slice %40 {offsets = [0, 0], sizes = [64, 32], strides = [1, 1]} : vector<64x64xf32> to vector<64x32xf32>
    %42 = vector.extract_strided_slice %40 {offsets = [0, 32], sizes = [64, 32], strides = [1, 1]} : vector<64x64xf32> to vector<64x32xf32>
    %c0_28 = arith.constant 0 : index
    %c0_29 = arith.constant 0 : index
    %43 = vector.load %arg11[%c0_28, %c0_29] : memref<32x32xf32, #tpu.memory_space<vmem>>, vector<32x32xf32>
    %c0_30 = arith.constant 0 : index
    %c0_31 = arith.constant 0 : index
    %44 = vector.load %arg12[%c0_30, %c0_31] : memref<1x32xf32, #tpu.memory_space<vmem>>, vector<1x32xf32>
    %cst_32 = arith.constant 0.000000e+00 : f32
    %45 = vector.broadcast %cst_32 : f32 to vector<256x32xf32>
    %46 = vector.extract_strided_slice %8 {offsets = [0, 0], sizes = [256, 8], strides = [1, 1]} : vector<256x32xf32> to vector<256x8xf32>
    %47 = vector.extract_strided_slice %41 {offsets = [0, 0], sizes = [64, 8], strides = [1, 1]} : vector<64x32xf32> to vector<64x8xf32>
    %48 = vector.extract_strided_slice %42 {offsets = [0, 0], sizes = [64, 8], strides = [1, 1]} : vector<64x32xf32> to vector<64x8xf32>
    %cst_33 = arith.constant dense<0.000000e+00> : vector<256x64xf32>
    %49 = tpu.matmul %46, %47, %cst_33 {dimension_numbers = #tpu.dot_dimension_numbers<[1], [1], [0], [0], [0, 0, 1, 0], [], []>} : vector<256x8xf32>, vector<64x8xf32>, vector<256x64xf32> -> vector<256x64xf32>
    %cst_34 = arith.constant 0.353553385 : f32
    %50 = vector.broadcast %cst_34 : f32 to vector<256x64xf32>
    %51 = arith.mulf %49, %50 : vector<256x64xf32>
    %cst_35 = arith.constant dense<0xFF800000> : vector<256xf32>
    %52 = vector.multi_reduction <maximumf>, %51, %cst_35 [1] : vector<256x64xf32> to vector<256xf32>
    %53 = vector.shape_cast %52 : vector<256xf32> to vector<256x1xf32>
    %54 = vector.broadcast %53 : vector<256x1xf32> to vector<256x64xf32>
    %55 = arith.subf %51, %54 : vector<256x64xf32>
    %56 = math.exp %55 : vector<256x64xf32>
    %cst_36 = arith.constant dense<0.000000e+00> : vector<256xf32>
    %57 = vector.multi_reduction <add>, %56, %cst_36 [1] : vector<256x64xf32> to vector<256xf32>
    %58 = vector.shape_cast %57 : vector<256xf32> to vector<256x1xf32>
    %cst_37 = arith.constant dense<0.000000e+00> : vector<256x8xf32>
    %59 = tpu.matmul %56, %48, %cst_37 {dimension_numbers = #tpu.dot_dimension_numbers<[1], [0], [0], [1], [0, 0, 1, 1], [], []>} : vector<256x64xf32>, vector<64x8xf32>, vector<256x8xf32> -> vector<256x8xf32>
    %60 = tpu.reciprocal %58 {approx = true} : vector<256x1xf32> -> vector<256x1xf32>
    %61 = vector.broadcast %60 : vector<256x1xf32> to vector<256x8xf32>
    %62 = arith.mulf %59, %61 : vector<256x8xf32>
    %63 = vector.extract_strided_slice %43 {offsets = [0, 0], sizes = [8, 32], strides = [1, 1]} : vector<32x32xf32> to vector<8x32xf32>
    %cst_38 = arith.constant dense<0.000000e+00> : vector<256x32xf32>
    %64 = tpu.matmul %62, %63, %cst_38 {dimension_numbers = #tpu.dot_dimension_numbers<[1], [0], [0], [1], [0, 0, 1, 1], [], []>} : vector<256x8xf32>, vector<8x32xf32>, vector<256x32xf32> -> vector<256x32xf32>
    %65 = arith.addf %45, %64 : vector<256x32xf32>
    %66 = vector.extract_strided_slice %8 {offsets = [0, 8], sizes = [256, 8], strides = [1, 1]} : vector<256x32xf32> to vector<256x8xf32>
    %67 = vector.extract_strided_slice %41 {offsets = [0, 8], sizes = [64, 8], strides = [1, 1]} : vector<64x32xf32> to vector<64x8xf32>
    %68 = vector.extract_strided_slice %42 {offsets = [0, 8], sizes = [64, 8], strides = [1, 1]} : vector<64x32xf32> to vector<64x8xf32>
    %cst_39 = arith.constant dense<0.000000e+00> : vector<256x64xf32>
    %69 = tpu.matmul %66, %67, %cst_39 {dimension_numbers = #tpu.dot_dimension_numbers<[1], [1], [0], [0], [0, 0, 1, 0], [], []>} : vector<256x8xf32>, vector<64x8xf32>, vector<256x64xf32> -> vector<256x64xf32>
    %cst_40 = arith.constant 0.353553385 : f32
    %70 = vector.broadcast %cst_40 : f32 to vector<256x64xf32>
    %71 = arith.mulf %69, %70 : vector<256x64xf32>
    %cst_41 = arith.constant dense<0xFF800000> : vector<256xf32>
    %72 = vector.multi_reduction <maximumf>, %71, %cst_41 [1] : vector<256x64xf32> to vector<256xf32>
    %73 = vector.shape_cast %72 : vector<256xf32> to vector<256x1xf32>
    %74 = vector.broadcast %73 : vector<256x1xf32> to vector<256x64xf32>
    %75 = arith.subf %71, %74 : vector<256x64xf32>
    %76 = math.exp %75 : vector<256x64xf32>
    %cst_42 = arith.constant dense<0.000000e+00> : vector<256xf32>
    %77 = vector.multi_reduction <add>, %76, %cst_42 [1] : vector<256x64xf32> to vector<256xf32>
    %78 = vector.shape_cast %77 : vector<256xf32> to vector<256x1xf32>
    %cst_43 = arith.constant dense<0.000000e+00> : vector<256x8xf32>
    %79 = tpu.matmul %76, %68, %cst_43 {dimension_numbers = #tpu.dot_dimension_numbers<[1], [0], [0], [1], [0, 0, 1, 1], [], []>} : vector<256x64xf32>, vector<64x8xf32>, vector<256x8xf32> -> vector<256x8xf32>
    %80 = tpu.reciprocal %78 {approx = true} : vector<256x1xf32> -> vector<256x1xf32>
    %81 = vector.broadcast %80 : vector<256x1xf32> to vector<256x8xf32>
    %82 = arith.mulf %79, %81 : vector<256x8xf32>
    %83 = vector.extract_strided_slice %43 {offsets = [8, 0], sizes = [8, 32], strides = [1, 1]} : vector<32x32xf32> to vector<8x32xf32>
    %cst_44 = arith.constant dense<0.000000e+00> : vector<256x32xf32>
    %84 = tpu.matmul %82, %83, %cst_44 {dimension_numbers = #tpu.dot_dimension_numbers<[1], [0], [0], [1], [0, 0, 1, 1], [], []>} : vector<256x8xf32>, vector<8x32xf32>, vector<256x32xf32> -> vector<256x32xf32>
    %85 = arith.addf %65, %84 : vector<256x32xf32>
    %86 = vector.extract_strided_slice %8 {offsets = [0, 16], sizes = [256, 8], strides = [1, 1]} : vector<256x32xf32> to vector<256x8xf32>
    %87 = vector.extract_strided_slice %41 {offsets = [0, 16], sizes = [64, 8], strides = [1, 1]} : vector<64x32xf32> to vector<64x8xf32>
    %88 = vector.extract_strided_slice %42 {offsets = [0, 16], sizes = [64, 8], strides = [1, 1]} : vector<64x32xf32> to vector<64x8xf32>
    %cst_45 = arith.constant dense<0.000000e+00> : vector<256x64xf32>
    %89 = tpu.matmul %86, %87, %cst_45 {dimension_numbers = #tpu.dot_dimension_numbers<[1], [1], [0], [0], [0, 0, 1, 0], [], []>} : vector<256x8xf32>, vector<64x8xf32>, vector<256x64xf32> -> vector<256x64xf32>
    %cst_46 = arith.constant 0.353553385 : f32
    %90 = vector.broadcast %cst_46 : f32 to vector<256x64xf32>
    %91 = arith.mulf %89, %90 : vector<256x64xf32>
    %cst_47 = arith.constant dense<0xFF800000> : vector<256xf32>
    %92 = vector.multi_reduction <maximumf>, %91, %cst_47 [1] : vector<256x64xf32> to vector<256xf32>
    %93 = vector.shape_cast %92 : vector<256xf32> to vector<256x1xf32>
    %94 = vector.broadcast %93 : vector<256x1xf32> to vector<256x64xf32>
    %95 = arith.subf %91, %94 : vector<256x64xf32>
    %96 = math.exp %95 : vector<256x64xf32>
    %cst_48 = arith.constant dense<0.000000e+00> : vector<256xf32>
    %97 = vector.multi_reduction <add>, %96, %cst_48 [1] : vector<256x64xf32> to vector<256xf32>
    %98 = vector.shape_cast %97 : vector<256xf32> to vector<256x1xf32>
    %cst_49 = arith.constant dense<0.000000e+00> : vector<256x8xf32>
    %99 = tpu.matmul %96, %88, %cst_49 {dimension_numbers = #tpu.dot_dimension_numbers<[1], [0], [0], [1], [0, 0, 1, 1], [], []>} : vector<256x64xf32>, vector<64x8xf32>, vector<256x8xf32> -> vector<256x8xf32>
    %100 = tpu.reciprocal %98 {approx = true} : vector<256x1xf32> -> vector<256x1xf32>
    %101 = vector.broadcast %100 : vector<256x1xf32> to vector<256x8xf32>
    %102 = arith.mulf %99, %101 : vector<256x8xf32>
    %103 = vector.extract_strided_slice %43 {offsets = [16, 0], sizes = [8, 32], strides = [1, 1]} : vector<32x32xf32> to vector<8x32xf32>
    %cst_50 = arith.constant dense<0.000000e+00> : vector<256x32xf32>
    %104 = tpu.matmul %102, %103, %cst_50 {dimension_numbers = #tpu.dot_dimension_numbers<[1], [0], [0], [1], [0, 0, 1, 1], [], []>} : vector<256x8xf32>, vector<8x32xf32>, vector<256x32xf32> -> vector<256x32xf32>
    %105 = arith.addf %85, %104 : vector<256x32xf32>
    %106 = vector.extract_strided_slice %8 {offsets = [0, 24], sizes = [256, 8], strides = [1, 1]} : vector<256x32xf32> to vector<256x8xf32>
    %107 = vector.extract_strided_slice %41 {offsets = [0, 24], sizes = [64, 8], strides = [1, 1]} : vector<64x32xf32> to vector<64x8xf32>
    %108 = vector.extract_strided_slice %42 {offsets = [0, 24], sizes = [64, 8], strides = [1, 1]} : vector<64x32xf32> to vector<64x8xf32>
    %cst_51 = arith.constant dense<0.000000e+00> : vector<256x64xf32>
    %109 = tpu.matmul %106, %107, %cst_51 {dimension_numbers = #tpu.dot_dimension_numbers<[1], [1], [0], [0], [0, 0, 1, 0], [], []>} : vector<256x8xf32>, vector<64x8xf32>, vector<256x64xf32> -> vector<256x64xf32>
    %cst_52 = arith.constant 0.353553385 : f32
    %110 = vector.broadcast %cst_52 : f32 to vector<256x64xf32>
    %111 = arith.mulf %109, %110 : vector<256x64xf32>
    %cst_53 = arith.constant dense<0xFF800000> : vector<256xf32>
    %112 = vector.multi_reduction <maximumf>, %111, %cst_53 [1] : vector<256x64xf32> to vector<256xf32>
    %113 = vector.shape_cast %112 : vector<256xf32> to vector<256x1xf32>
    %114 = vector.broadcast %113 : vector<256x1xf32> to vector<256x64xf32>
    %115 = arith.subf %111, %114 : vector<256x64xf32>
    %116 = math.exp %115 : vector<256x64xf32>
    %cst_54 = arith.constant dense<0.000000e+00> : vector<256xf32>
    %117 = vector.multi_reduction <add>, %116, %cst_54 [1] : vector<256x64xf32> to vector<256xf32>
    %118 = vector.shape_cast %117 : vector<256xf32> to vector<256x1xf32>
    %cst_55 = arith.constant dense<0.000000e+00> : vector<256x8xf32>
    %119 = tpu.matmul %116, %108, %cst_55 {dimension_numbers = #tpu.dot_dimension_numbers<[1], [0], [0], [1], [0, 0, 1, 1], [], []>} : vector<256x64xf32>, vector<64x8xf32>, vector<256x8xf32> -> vector<256x8xf32>
    %120 = tpu.reciprocal %118 {approx = true} : vector<256x1xf32> -> vector<256x1xf32>
    %121 = vector.broadcast %120 : vector<256x1xf32> to vector<256x8xf32>
    %122 = arith.mulf %119, %121 : vector<256x8xf32>
    %123 = vector.extract_strided_slice %43 {offsets = [24, 0], sizes = [8, 32], strides = [1, 1]} : vector<32x32xf32> to vector<8x32xf32>
    %cst_56 = arith.constant dense<0.000000e+00> : vector<256x32xf32>
    %124 = tpu.matmul %122, %123, %cst_56 {dimension_numbers = #tpu.dot_dimension_numbers<[1], [0], [0], [1], [0, 0, 1, 1], [], []>} : vector<256x8xf32>, vector<8x32xf32>, vector<256x32xf32> -> vector<256x32xf32>
    %125 = arith.addf %105, %124 : vector<256x32xf32>
    %126 = vector.broadcast %44 : vector<1x32xf32> to vector<256x32xf32>
    %127 = arith.addf %125, %126 : vector<256x32xf32>
    %c0_57 = arith.constant 0 : index
    %c0_58 = arith.constant 0 : index
    %c0_59 = arith.constant 0 : index
    %128 = vector.load %arg13[%c0_57, %c0_58, %c0_59] : memref<1x256x32xf32, #tpu.memory_space<vmem>>, vector<1x256x32xf32>
    %129 = vector.shape_cast %128 : vector<1x256x32xf32> to vector<256x32xf32>
    %130 = vector.shape_cast %127 : vector<256x32xf32> to vector<1x256x32xf32>
    tpu.vector_store %arg13[%c0_57, %c0_58, %c0_59], %130 {strides = array<i32>} : memref<1x256x32xf32, #tpu.memory_space<vmem>>, vector<1x256x32xf32>,
    return
  }
  func.func @transform_0(%arg0: i32) -> (i32, i32, i32) {
    %c0_i32 = arith.constant 0 : i32
    %c0_i32_0 = arith.constant 0 : i32
    %c0_i32_1 = arith.constant 0 : i32
    return %arg0, %c0_i32, %c0_i32_0 : i32, i32, i32
  }
  func.func @transform_1(%arg0: i32) -> (i32, i32, i32) {
    %c0_i32 = arith.constant 0 : i32
    %c0_i32_0 = arith.constant 0 : i32
    %c0_i32_1 = arith.constant 0 : i32
    return %arg0, %c0_i32, %c0_i32_0 : i32, i32, i32
  }
  func.func @transform_2(%arg0: i32) -> (i32, i32) {
    %c0_i32 = arith.constant 0 : i32
    %c0_i32_0 = arith.constant 0 : i32
    %c0_i32_1 = arith.constant 0 : i32
    return %c0_i32, %c0_i32_0 : i32, i32
  }
  func.func @transform_3(%arg0: i32) -> (i32, i32) {
    %c0_i32 = arith.constant 0 : i32
    %c0_i32_0 = arith.constant 0 : i32
    %c0_i32_1 = arith.constant 0 : i32
    return %c0_i32, %c0_i32_0 : i32, i32
  }
  func.func @transform_4(%arg0: i32) -> (i32, i32) {
    %c0_i32 = arith.constant 0 : i32
    %c0_i32_0 = arith.constant 0 : i32
    %c0_i32_1 = arith.constant 0 : i32
    return %c0_i32, %c0_i32_0 : i32, i32
  }
  func.func @transform_5(%arg0: i32) -> (i32, i32) {
    %c0_i32 = arith.constant 0 : i32
    %c0_i32_0 = arith.constant 0 : i32
    %c0_i32_1 = arith.constant 0 : i32
    return %c0_i32, %c0_i32_0 : i32, i32
  }
  func.func @transform_6(%arg0: i32) -> (i32, i32) {
    %c0_i32 = arith.constant 0 : i32
    %c0_i32_0 = arith.constant 0 : i32
    %c0_i32_1 = arith.constant 0 : i32
    return %c0_i32, %c0_i32_0 : i32, i32
  }
  func.func @transform_7(%arg0: i32) -> (i32, i32) {
    %c0_i32 = arith.constant 0 : i32
    %c0_i32_0 = arith.constant 0 : i32
    %c0_i32_1 = arith.constant 0 : i32
    return %c0_i32, %c0_i32_0 : i32, i32
  }
  func.func @transform_8(%arg0: i32) -> (i32, i32) {
    %c0_i32 = arith.constant 0 : i32
    %c0_i32_0 = arith.constant 0 : i32
    %c0_i32_1 = arith.constant 0 : i32
    return %c0_i32, %c0_i32_0 : i32, i32
  }
  func.func @transform_9(%arg0: i32) -> (i32, i32) {
    %c0_i32 = arith.constant 0 : i32
    %c0_i32_0 = arith.constant 0 : i32
    %c0_i32_1 = arith.constant 0 : i32
    return %c0_i32, %c0_i32_0 : i32, i32
  }
  func.func @transform_10(%arg0: i32) -> (i32, i32) {
    %c0_i32 = arith.constant 0 : i32
    %c0_i32_0 = arith.constant 0 : i32
    %c0_i32_1 = arith.constant 0 : i32
    return %c0_i32, %c0_i32_0 : i32, i32
  }
  func.func @transform_11(%arg0: i32) -> (i32, i32) {
    %c0_i32 = arith.constant 0 : i32
    %c0_i32_0 = arith.constant 0 : i32
    %c0_i32_1 = arith.constant 0 : i32
    return %c0_i32, %c0_i32_0 : i32, i32
  }
  func.func @transform_12(%arg0: i32) -> (i32, i32, i32) {
    %c0_i32 = arith.constant 0 : i32
    %c0_i32_0 = arith.constant 0 : i32
    %c0_i32_1 = arith.constant 0 : i32
    return %arg0, %c0_i32, %c0_i32_0 : i32, i32, i32
  }
}

</mosaic_0001>

<llo_original>
// kernel: tpu_custom_call.1
$region0: #{tpu_custom_call.1}
  #allocation0 [shape = 'u32[]', space=smem, size = 0x4, offset = 0x4, fixed_abs, tag = 'smem constant byte address 0x4 - core index']
  #allocation1 [shape = 'u32[72,128]{1,0:T(1,128)}', space=vmem, size = 0x9000, scoped, tag = 'internal scratch']
  %s0 = inlined_call_operand.vmem [shape: f32[2,256,32], index: 0, kind: input, shape index: {}]
  %s1 = inlined_call_operand.vmem [shape: f32[2,64,128], index: 1, kind: input, shape index: {}]
  %s2 = inlined_call_operand.vmem [shape: f32[32,32], index: 2, kind: input, shape index: {}]
  %s3 = inlined_call_operand.vmem [shape: f32[1,32], index: 3, kind: input, shape index: {}]
  %s4 = inlined_call_operand.vmem [shape: f32[128,32], index: 4, kind: input, shape index: {}]
  %s5 = inlined_call_operand.vmem [shape: f32[1,32], index: 5, kind: input, shape index: {}]
  %s6 = inlined_call_operand.vmem [shape: f32[1,32], index: 6, kind: input, shape index: {}]
  %s7 = inlined_call_operand.vmem [shape: f32[1,32], index: 7, kind: input, shape index: {}]
  %s8 = inlined_call_operand.vmem [shape: f32[32,64], index: 8, kind: input, shape index: {}]
  %s9 = inlined_call_operand.vmem [shape: f32[1,64], index: 9, kind: input, shape index: {}]
  %s10 = inlined_call_operand.vmem [shape: f32[32,32], index: 10, kind: input, shape index: {}]
  %s11 = inlined_call_operand.vmem [shape: f32[1,32], index: 11, kind: input, shape index: {}]
  %s12 = inlined_call_operand.vmem [shape: f32[2,256,32], index: 12, kind: output, shape index: {}]
  %s13 = sld [smem:[#allocation0]]
  $region81: #{tpu_custom_call.1} parent=0
    _
  %s15 = ssub.s32 1, %s13
  %s16 = scalar_select 0, %s15, %s13
  loop: start=0, step=1, limit=4
  $region2: #{tpu_custom_call.1} parent=0 // loop_pre_header
    _
  $region3: #{tpu_custom_call.1} parent=0 // loop_header
    %s18 = sphi 0, %s22
    %p19 = scmp.ge.s32.totalorder %s18, 4
    %s28 = sphi 0, %s30
    %s31 = sphi 0, %s28
    %s32 = sphi 0, %s31
    %s48 = sphi 0, %s32
    %s54 = sphi 0, %s56
    %s57 = sphi 0, %s54
    %s58 = sphi 0, %s57
    %s74 = sphi 0, %s58
    %s78 = sphi 0, %s78
    %s80 = sphi 0, %s78
    %s81 = sphi 0, %s80
    %s95 = sphi 0, %s81
    %s99 = sphi 0, %s99
    %s101 = sphi 0, %s99
    %s102 = sphi 0, %s101
    %s116 = sphi 0, %s102
    %s120 = sphi 0, %s120
    %s122 = sphi 0, %s120
    %s123 = sphi 0, %s122
    %s137 = sphi 0, %s123
    %s141 = sphi 0, %s141
    %s143 = sphi 0, %s141
    %s144 = sphi 0, %s143
    %s158 = sphi 0, %s144
    %s162 = sphi 0, %s162
    %s164 = sphi 0, %s162
    %s165 = sphi 0, %s164
    %s179 = sphi 0, %s165
    %s183 = sphi 0, %s183
    %s185 = sphi 0, %s183
    %s186 = sphi 0, %s185
    %s200 = sphi 0, %s186
    %s204 = sphi 0, %s204
    %s206 = sphi 0, %s204
    %s207 = sphi 0, %s206
    %s221 = sphi 0, %s207
    %s225 = sphi 0, %s225
    %s227 = sphi 0, %s225
    %s228 = sphi 0, %s227
    %s242 = sphi 0, %s228
    %s246 = sphi 0, %s246
    %s248 = sphi 0, %s246
    %s249 = sphi 0, %s248
    %s263 = sphi 0, %s249
    %s267 = sphi 0, %s267
    %s269 = sphi 0, %s267
    %s270 = sphi 0, %s269
    %s284 = sphi 0, %s270
    %s290 = sphi 0, %s292
    %s293 = sphi 0, %s290
    %s294 = sphi 0, %s293
    %s310 = sphi 0, %s294
  $region4: #{tpu_custom_call.1} parent=0 // loop_header_branch
    %21 = sbr.rel (%p19) target = $region8
  $region5: #{tpu_custom_call.1} parent=0 // loop_body
    %s23 = ssub.s32 %s18, 1
    %s24 = ssub.s32 %s18, 2
    %s25 = sadd.s32 %s18, 1
    %s26 = ssub.s32 %s18, %s25
    %p27 = scmp.eq.s32.totalorder %s26, 0
    %s29 = sadd.s32 %s28, 1
    %s30 = scalar_select %p27, %s28, %s29
    %p33 = pneg %p27
    %p34 = scmp.eq.s32.totalorder %s18, 1
    %p35 = por %p33, %p34
    %p36 = scmp.ne.s32.totalorder %s28, %s31
    %p37 = scmp.eq.s32.totalorder %s18, 0
    %p38 = por %p36, %p37
    %p39 = scmp.ne.s32.totalorder %s28, %s31
    %p40 = scmp.eq.s32.totalorder %s23, 1
    %p41 = por %p39, %p40
    %p42 = scmp.ne.s32.totalorder %s31, %s32
    %p43 = scmp.eq.s32.totalorder %s23, 0
    %p44 = por %p42, %p43
    %p45 = scmp.ne.s32.totalorder %s31, %s32
    %p46 = scmp.eq.s32.totalorder %s24, 1
    %p47 = por %p45, %p46
    %p49 = scmp.ne.s32.totalorder %s32, %s48
    %p50 = scmp.eq.s32.totalorder %s24, 0
    %p51 = por %p49, %p50
    %s52 = ssub.s32 %s18, %s25
    %p53 = scmp.eq.s32.totalorder %s52, 0
    %s55 = sadd.s32 %s54, 1
    %s56 = scalar_select %p53, %s54, %s55
    %p59 = pneg %p53
    %p60 = scmp.eq.s32.totalorder %s18, 1
    %p61 = por %p59, %p60
    %p62 = scmp.ne.s32.totalorder %s54, %s57
    %p63 = scmp.eq.s32.totalorder %s18, 0
    %p64 = por %p62, %p63
    %p65 = scmp.ne.s32.totalorder %s54, %s57
    %p66 = scmp.eq.s32.totalorder %s23, 1
    %p67 = por %p65, %p66
    %p68 = scmp.ne.s32.totalorder %s57, %s58
    %p69 = scmp.eq.s32.totalorder %s23, 0
    %p70 = por %p68, %p69
    %p71 = scmp.ne.s32.totalorder %s57, %s58
    %p72 = scmp.eq.s32.totalorder %s24, 1
    %p73 = por %p71, %p72
    %p75 = scmp.ne.s32.totalorder %s58, %s74
    %p76 = scmp.eq.s32.totalorder %s24, 0
    %p77 = por %p75, %p76
    %s79 = sadd.s32 %s78, 1
    %p82 = scmp.eq.s32.totalorder %s18, 1
    %p83 = scmp.ne.s32.totalorder %s78, %s80
    %p84 = scmp.eq.s32.totalorder %s18, 0
    %p85 = por %p83, %p84
    %p86 = scmp.ne.s32.totalorder %s78, %s80
    %p87 = scmp.eq.s32.totalorder %s23, 1
    %p88 = por %p86, %p87
    %p89 = scmp.ne.s32.totalorder %s80, %s81
    %p90 = scmp.eq.s32.totalorder %s23, 0
    %p91 = por %p89, %p90
    %p92 = scmp.ne.s32.totalorder %s80, %s81
    %p93 = scmp.eq.s32.totalorder %s24, 1
    %p94 = por %p92, %p93
    %p96 = scmp.ne.s32.totalorder %s81, %s95
    %p97 = scmp.eq.s32.totalorder %s24, 0
    %p98 = por %p96, %p97
    %s100 = sadd.s32 %s99, 1
    %p103 = scmp.eq.s32.totalorder %s18, 1
    %p104 = scmp.ne.s32.totalorder %s99, %s101
    %p105 = scmp.eq.s32.totalorder %s18, 0
    %p106 = por %p104, %p105
    %p107 = scmp.ne.s32.totalorder %s99, %s101
    %p108 = scmp.eq.s32.totalorder %s23, 1
    %p109 = por %p107, %p108
    %p110 = scmp.ne.s32.totalorder %s101, %s102
    %p111 = scmp.eq.s32.totalorder %s23, 0
    %p112 = por %p110, %p111
    %p113 = scmp.ne.s32.totalorder %s101, %s102
    %p114 = scmp.eq.s32.totalorder %s24, 1
    %p115 = por %p113, %p114
    %p117 = scmp.ne.s32.totalorder %s102, %s116
    %p118 = scmp.eq.s32.totalorder %s24, 0
    %p119 = por %p117, %p118
    %s121 = sadd.s32 %s120, 1
    %p124 = scmp.eq.s32.totalorder %s18, 1
    %p125 = scmp.ne.s32.totalorder %s120, %s122
    %p126 = scmp.eq.s32.totalorder %s18, 0
    %p127 = por %p125, %p126
    %p128 = scmp.ne.s32.totalorder %s120, %s122
    %p129 = scmp.eq.s32.totalorder %s23, 1
    %p130 = por %p128, %p129
    %p131 = scmp.ne.s32.totalorder %s122, %s123
    %p132 = scmp.eq.s32.totalorder %s23, 0
    %p133 = por %p131, %p132
    %p134 = scmp.ne.s32.totalorder %s122, %s123
    %p135 = scmp.eq.s32.totalorder %s24, 1
    %p136 = por %p134, %p135
    %p138 = scmp.ne.s32.totalorder %s123, %s137
    %p139 = scmp.eq.s32.totalorder %s24, 0
    %p140 = por %p138, %p139
    %s142 = sadd.s32 %s141, 1
    %p145 = scmp.eq.s32.totalorder %s18, 1
    %p146 = scmp.ne.s32.totalorder %s141, %s143
    %p147 = scmp.eq.s32.totalorder %s18, 0
    %p148 = por %p146, %p147
    %p149 = scmp.ne.s32.totalorder %s141, %s143
    %p150 = scmp.eq.s32.totalorder %s23, 1
    %p151 = por %p149, %p150
    %p152 = scmp.ne.s32.totalorder %s143, %s144
    %p153 = scmp.eq.s32.totalorder %s23, 0
    %p154 = por %p152, %p153
    %p155 = scmp.ne.s32.totalorder %s143, %s144
    %p156 = scmp.eq.s32.totalorder %s24, 1
    %p157 = por %p155, %p156
    %p159 = scmp.ne.s32.totalorder %s144, %s158
    %p160 = scmp.eq.s32.totalorder %s24, 0
    %p161 = por %p159, %p160
    %s163 = sadd.s32 %s162, 1
    %p166 = scmp.eq.s32.totalorder %s18, 1
    %p167 = scmp.ne.s32.totalorder %s162, %s164
    %p168 = scmp.eq.s32.totalorder %s18, 0
    %p169 = por %p167, %p168
    %p170 = scmp.ne.s32.totalorder %s162, %s164
    %p171 = scmp.eq.s32.totalorder %s23, 1
    %p172 = por %p170, %p171
    %p173 = scmp.ne.s32.totalorder %s164, %s165
    %p174 = scmp.eq.s32.totalorder %s23, 0
    %p175 = por %p173, %p174
    %p176 = scmp.ne.s32.totalorder %s164, %s165
    %p177 = scmp.eq.s32.totalorder %s24, 1
    %p178 = por %p176, %p177
    %p180 = scmp.ne.s32.totalorder %s165, %s179
    %p181 = scmp.eq.s32.totalorder %s24, 0
    %p182 = por %p180, %p181
    %s184 = sadd.s32 %s183, 1
    %p187 = scmp.eq.s32.totalorder %s18, 1
    %p188 = scmp.ne.s32.totalorder %s183, %s185
    %p189 = scmp.eq.s32.totalorder %s18, 0
    %p190 = por %p188, %p189
    %p191 = scmp.ne.s32.totalorder %s183, %s185
    %p192 = scmp.eq.s32.totalorder %s23, 1
    %p193 = por %p191, %p192
    %p194 = scmp.ne.s32.totalorder %s185, %s186
    %p195 = scmp.eq.s32.totalorder %s23, 0
    %p196 = por %p194, %p195
    %p197 = scmp.ne.s32.totalorder %s185, %s186
    %p198 = scmp.eq.s32.totalorder %s24, 1
    %p199 = por %p197, %p198
    %p201 = scmp.ne.s32.totalorder %s186, %s200
    %p202 = scmp.eq.s32.totalorder %s24, 0
    %p203 = por %p201, %p202
    %s205 = sadd.s32 %s204, 1
    %p208 = scmp.eq.s32.totalorder %s18, 1
    %p209 = scmp.ne.s32.totalorder %s204, %s206
    %p210 = scmp.eq.s32.totalorder %s18, 0
    %p211 = por %p209, %p210
    %p212 = scmp.ne.s32.totalorder %s204, %s206
    %p213 = scmp.eq.s32.totalorder %s23, 1
    %p214 = por %p212, %p213
    %p215 = scmp.ne.s32.totalorder %s206, %s207
    %p216 = scmp.eq.s32.totalorder %s23, 0
    %p217 = por %p215, %p216
    %p218 = scmp.ne.s32.totalorder %s206, %s207
    %p219 = scmp.eq.s32.totalorder %s24, 1
    %p220 = por %p218, %p219
    %p222 = scmp.ne.s32.totalorder %s207, %s221
    %p223 = scmp.eq.s32.totalorder %s24, 0
    %p224 = por %p222, %p223
    %s226 = sadd.s32 %s225, 1
    %p229 = scmp.eq.s32.totalorder %s18, 1
    %p230 = scmp.ne.s32.totalorder %s225, %s227
    %p231 = scmp.eq.s32.totalorder %s18, 0
    %p232 = por %p230, %p231
    %p233 = scmp.ne.s32.totalorder %s225, %s227
    %p234 = scmp.eq.s32.totalorder %s23, 1
    %p235 = por %p233, %p234
    %p236 = scmp.ne.s32.totalorder %s227, %s228
    %p237 = scmp.eq.s32.totalorder %s23, 0
    %p238 = por %p236, %p237
    %p239 = scmp.ne.s32.totalorder %s227, %s228
    %p240 = scmp.eq.s32.totalorder %s24, 1
    %p241 = por %p239, %p240
    %p243 = scmp.ne.s32.totalorder %s228, %s242
    %p244 = scmp.eq.s32.totalorder %s24, 0
    %p245 = por %p243, %p244
    %s247 = sadd.s32 %s246, 1
    %p250 = scmp.eq.s32.totalorder %s18, 1
    %p251 = scmp.ne.s32.totalorder %s246, %s248
    %p252 = scmp.eq.s32.totalorder %s18, 0
    %p253 = por %p251, %p252
    %p254 = scmp.ne.s32.totalorder %s246, %s248
    %p255 = scmp.eq.s32.totalorder %s23, 1
    %p256 = por %p254, %p255
    %p257 = scmp.ne.s32.totalorder %s248, %s249
    %p258 = scmp.eq.s32.totalorder %s23, 0
    %p259 = por %p257, %p258
    %p260 = scmp.ne.s32.totalorder %s248, %s249
    %p261 = scmp.eq.s32.totalorder %s24, 1
    %p262 = por %p260, %p261
    %p264 = scmp.ne.s32.totalorder %s249, %s263
    %p265 = scmp.eq.s32.totalorder %s24, 0
    %p266 = por %p264, %p265
    %s268 = sadd.s32 %s267, 1
    %p271 = scmp.eq.s32.totalorder %s18, 1
    %p272 = scmp.ne.s32.totalorder %s267, %s269
    %p273 = scmp.eq.s32.totalorder %s18, 0
    %p274 = por %p272, %p273
    %p275 = scmp.ne.s32.totalorder %s267, %s269
    %p276 = scmp.eq.s32.totalorder %s23, 1
    %p277 = por %p275, %p276
    %p278 = scmp.ne.s32.totalorder %s269, %s270
    %p279 = scmp.eq.s32.totalorder %s23, 0
    %p280 = por %p278, %p279
    %p281 = scmp.ne.s32.totalorder %s269, %s270
    %p282 = scmp.eq.s32.totalorder %s24, 1
    %p283 = por %p281, %p282
    %p285 = scmp.ne.s32.totalorder %s270, %s284
    %p286 = scmp.eq.s32.totalorder %s24, 0
    %p287 = por %p285, %p286
    %s288 = ssub.s32 %s18, %s25
    %p289 = scmp.eq.s32.totalorder %s288, 0
    %s291 = sadd.s32 %s290, 1
    %s292 = scalar_select %p289, %s290, %s291
    %p295 = pneg %p289
    %p296 = scmp.eq.s32.totalorder %s18, 1
    %p297 = por %p295, %p296
    %p298 = scmp.ne.s32.totalorder %s290, %s293
    %p299 = scmp.eq.s32.totalorder %s18, 0
    %p300 = por %p298, %p299
    %p301 = scmp.ne.s32.totalorder %s290, %s293
    %p302 = scmp.eq.s32.totalorder %s23, 1
    %p303 = por %p301, %p302
    %p304 = scmp.ne.s32.totalorder %s293, %s294
    %p305 = scmp.eq.s32.totalorder %s23, 0
    %p306 = por %p304, %p305
    %p307 = scmp.ne.s32.totalorder %s293, %s294
    %p308 = scmp.eq.s32.totalorder %s24, 1
    %p309 = por %p307, %p308
    %p311 = scmp.ne.s32.totalorder %s294, %s310
    %p312 = scmp.eq.s32.totalorder %s24, 0
    %p313 = por %p311, %p312
    %p314 = scmp.le.s32.totalorder 1, %s18
    %p315 = scmp.lt.s32.totalorder %s18, 3
    %p316 = pnand %p314, %p315
    %p317 = pneg %p316
    // Predicated region
    $region9: #{tpu_custom_call.1} parent=5 // pred_check
      _
    $region10: #{tpu_custom_call.1} parent=5 // pred_check_branch
      %319 = sbr.rel (%p316) target = $region12
    $region11: #{tpu_custom_call.1} parent=5 // pred_region
      %s320 = ssub.s32 %s18, 1
      // Predicated region
      $region13: #{tpu_custom_call.1} parent=11 // pred_check
        %p321 = pneg %p91
      $region14: #{tpu_custom_call.1} parent=11 // pred_check_branch
        %323 = sbr.rel (%p321) target = $region16
      $region15: #{tpu_custom_call.1} parent=11 // pred_region
        _
      $region16: #{tpu_custom_call.1} parent=11 // pred_fallthru
        _
      // Predicated region
      $region17: #{tpu_custom_call.1} parent=11 // pred_check
        %p324 = pneg %p112
      $region18: #{tpu_custom_call.1} parent=11 // pred_check_branch
        %326 = sbr.rel (%p324) target = $region20
      $region19: #{tpu_custom_call.1} parent=11 // pred_region
        _
      $region20: #{tpu_custom_call.1} parent=11 // pred_fallthru
        _
      // Predicated region
      $region21: #{tpu_custom_call.1} parent=11 // pred_check
        %p327 = pneg %p133
      $region22: #{tpu_custom_call.1} parent=11 // pred_check_branch
        %329 = sbr.rel (%p327) target = $region24
      $region23: #{tpu_custom_call.1} parent=11 // pred_region
        _
      $region24: #{tpu_custom_call.1} parent=11 // pred_fallthru
        _
      // Predicated region
      $region25: #{tpu_custom_call.1} parent=11 // pred_check
        %p330 = pneg %p154
      $region26: #{tpu_custom_call.1} parent=11 // pred_check_branch
        %332 = sbr.rel (%p330) target = $region28
      $region27: #{tpu_custom_call.1} parent=11 // pred_region
        _
      $region28: #{tpu_custom_call.1} parent=11 // pred_fallthru
        _
      // Predicated region
      $region29: #{tpu_custom_call.1} parent=11 // pred_check
        %p333 = pneg %p175
      $region30: #{tpu_custom_call.1} parent=11 // pred_check_branch
        %335 = sbr.rel (%p333) target = $region32
      $region31: #{tpu_custom_call.1} parent=11 // pred_region
        _
      $region32: #{tpu_custom_call.1} parent=11 // pred_fallthru
        _
      // Predicated region
      $region33: #{tpu_custom_call.1} parent=11 // pred_check
        %p336 = pneg %p196
      $region34: #{tpu_custom_call.1} parent=11 // pred_check_branch
        %338 = sbr.rel (%p336) target = $region36
      $region35: #{tpu_custom_call.1} parent=11 // pred_region
        _
      $region36: #{tpu_custom_call.1} parent=11 // pred_fallthru
        _
      // Predicated region
      $region37: #{tpu_custom_call.1} parent=11 // pred_check
        %p339 = pneg %p217
      $region38: #{tpu_custom_call.1} parent=11 // pred_check_branch
        %341 = sbr.rel (%p339) target = $region40
      $region39: #{tpu_custom_call.1} parent=11 // pred_region
        _
      $region40: #{tpu_custom_call.1} parent=11 // pred_fallthru
        _
      // Predicated region
      $region41: #{tpu_custom_call.1} parent=11 // pred_check
        %p342 = pneg %p238
      $region42: #{tpu_custom_call.1} parent=11 // pred_check_branch
        %344 = sbr.rel (%p342) target = $region44
      $region43: #{tpu_custom_call.1} parent=11 // pred_region
        _
      $region44: #{tpu_custom_call.1} parent=11 // pred_fallthru
        _
      // Predicated region
      $region45: #{tpu_custom_call.1} parent=11 // pred_check
        %p345 = pneg %p259
      $region46: #{tpu_custom_call.1} parent=11 // pred_check_branch
        %347 = sbr.rel (%p345) target = $region48
      $region47: #{tpu_custom_call.1} parent=11 // pred_region
        _
      $region48: #{tpu_custom_call.1} parent=11 // pred_fallthru
        _
      // Predicated region
      $region49: #{tpu_custom_call.1} parent=11 // pred_check
        %p348 = pneg %p280
      $region50: #{tpu_custom_call.1} parent=11 // pred_check_branch
        %350 = sbr.rel (%p348) target = $region52
      $region51: #{tpu_custom_call.1} parent=11 // pred_region
        _
      $region52: #{tpu_custom_call.1} parent=11 // pred_fallthru
        _
    $region12: #{tpu_custom_call.1} parent=5 // pred_fallthru
      _
    %p351 = scmp.lt.s32.totalorder %s18, 2
    // Predicated region
    $region53: #{tpu_custom_call.1} parent=5 // pred_check
      %p352 = pneg %p351
    $region54: #{tpu_custom_call.1} parent=5 // pred_check_branch
      %354 = sbr.rel (%p352) target = $region56
    $region55: #{tpu_custom_call.1} parent=5 // pred_region
      // Predicated region
      $region57: #{tpu_custom_call.1} parent=55 // pred_check
        %p355 = pneg %p38
      $region58: #{tpu_custom_call.1} parent=55 // pred_check_branch
        %357 = sbr.rel (%p355) target = $region60
      $region59: #{tpu_custom_call.1} parent=55 // pred_region
        %p358 = scmp.lt.s32.totalorder %s18, 1
        %s359 = scalar_select %p358, %s18, 1
        %s360 = smul.addr %s359, 32
        %s361 = smul.addr %s360, 8
        %s362 = scalar_lea.vmem %s0, %s361
      $region60: #{tpu_custom_call.1} parent=55 // pred_fallthru
        _
      // Predicated region
      $region61: #{tpu_custom_call.1} parent=55 // pred_check
        %p363 = pneg %p64
      $region62: #{tpu_custom_call.1} parent=55 // pred_check_branch
        %365 = sbr.rel (%p363) target = $region64
      $region63: #{tpu_custom_call.1} parent=55 // pred_region
        %p366 = scmp.lt.s32.totalorder %s18, 1
        %s367 = scalar_select %p366, %s18, 1
        %s368 = smul.addr %s367, 8
        %s369 = smul.addr %s368, 8
        %s370 = scalar_lea.vmem %s1, %s369
      $region64: #{tpu_custom_call.1} parent=55 // pred_fallthru
        _
    $region56: #{tpu_custom_call.1} parent=5 // pred_fallthru
      _
    %p371 = scmp.le.s32.totalorder 1, %s18
    %p372 = scmp.lt.s32.totalorder %s18, 3
    %p373 = pnand %p371, %p372
    %p374 = pneg %p373
    // Predicated region
    $region65: #{tpu_custom_call.1} parent=5 // pred_check
      _
    $region66: #{tpu_custom_call.1} parent=5 // pred_check_branch
      %376 = sbr.rel (%p373) target = $region68
    $region67: #{tpu_custom_call.1} parent=5 // pred_region
      %s377 = ssub.s32 %s18, 1
      %p378 = scmp.lt.s32.totalorder %s23, 1
      %s379 = scalar_select %p378, %s23, 1
      %s380 = smul.addr %s379, 32
      %s381 = smul.addr %s380, 8
      %s382 = scalar_lea.vmem %s0, %s381
      %p383 = pneg %p44
      %p384 = pneg %p41
      %p385 = scmp.lt.s32.totalorder %s23, 1
      %s386 = scalar_select %p385, %s23, 1
      %s387 = smul.addr %s386, 8
      %s388 = smul.addr %s387, 8
      %s389 = scalar_lea.vmem %s1, %s388
      %p390 = pneg %p70
      %p391 = pneg %p67
      %p392 = pneg %p91
      %p393 = pneg %p88
      %p394 = pneg %p112
      %p395 = pneg %p109
      %p396 = pneg %p133
      %p397 = pneg %p130
      %p398 = pneg %p154
      %p399 = pneg %p151
      %p400 = pneg %p175
      %p401 = pneg %p172
      %p402 = pneg %p196
      %p403 = pneg %p193
      %p404 = pneg %p217
      %p405 = pneg %p214
      %p406 = pneg %p238
      %p407 = pneg %p235
      %p408 = pneg %p259
      %p409 = pneg %p256
      %p410 = pneg %p280
      %p411 = pneg %p277
      %p412 = pneg %p306
      %p413 = pneg %p303
      %p414 = scmp.lt.s32.totalorder %s23, 1
      %s415 = scalar_select %p414, %s23, 1
      %s416 = smul.addr %s415, 32
      %s417 = smul.addr %s416, 8
      %s418 = scalar_lea.vmem %s12, %s417
      %p419 = scmp.lt.s32.totalorder %s23, 1
      %s420 = scalar_select %p419, %s23, 1
      %s421 = smul.addr %s420, 32
      %s422 = smul.addr %s421, 8
      %s423 = scalar_lea.vmem %s0, %s422
      %p424 = scmp.lt.s32.totalorder %s23, 1
      %s425 = scalar_select %p424, %s23, 1
      %s426 = smul.addr %s425, 8
      %s427 = smul.addr %s426, 8
      %s428 = scalar_lea.vmem %s1, %s427
      %p429 = scmp.lt.s32.totalorder %s23, 1
      %s430 = scalar_select %p429, %s23, 1
      %s431 = smul.addr %s430, 32
      %s432 = smul.addr %s431, 8
      %s433 = scalar_lea.vmem %s12, %s432
      %v434 = vld [vmem:[%s423] sm:$0xff]
      %v435 = vld [vmem:[%s423 + $0x8] sm:$0xff]
      %v436 = vld [vmem:[%s423 + $0x10] sm:$0xff]
      %v437 = vld [vmem:[%s423 + $0x18] sm:$0xff]
      %v438 = vld [vmem:[%s423 + $0x20] sm:$0xff]
      %v439 = vld [vmem:[%s423 + $0x28] sm:$0xff]
      %v440 = vld [vmem:[%s423 + $0x30] sm:$0xff]
      %v441 = vld [vmem:[%s423 + $0x38] sm:$0xff]
      %v442 = vld [vmem:[%s423 + $0x40] sm:$0xff]
      %v443 = vld [vmem:[%s423 + $0x48] sm:$0xff]
      %v444 = vld [vmem:[%s423 + $0x50] sm:$0xff]
      %v445 = vld [vmem:[%s423 + $0x58] sm:$0xff]
      %v446 = vld [vmem:[%s423 + $0x60] sm:$0xff]
      %v447 = vld [vmem:[%s423 + $0x68] sm:$0xff]
      %v448 = vld [vmem:[%s423 + $0x70] sm:$0xff]
      %v449 = vld [vmem:[%s423 + $0x78] sm:$0xff]
      %v450 = vld [vmem:[%s423 + $0x80] sm:$0xff]
      %v451 = vld [vmem:[%s423 + $0x88] sm:$0xff]
      %v452 = vld [vmem:[%s423 + $0x90] sm:$0xff]
      %v453 = vld [vmem:[%s423 + $0x98] sm:$0xff]
      %v454 = vld [vmem:[%s423 + $0xa0] sm:$0xff]
      %v455 = vld [vmem:[%s423 + $0xa8] sm:$0xff]
      %v456 = vld [vmem:[%s423 + $0xb0] sm:$0xff]
      %v457 = vld [vmem:[%s423 + $0xb8] sm:$0xff]
      %v458 = vld [vmem:[%s423 + $0xc0] sm:$0xff]
      %v459 = vld [vmem:[%s423 + $0xc8] sm:$0xff]
      %v460 = vld [vmem:[%s423 + $0xd0] sm:$0xff]
      %v461 = vld [vmem:[%s423 + $0xd8] sm:$0xff]
      %v462 = vld [vmem:[%s423 + $0xe0] sm:$0xff]
      %v463 = vld [vmem:[%s423 + $0xe8] sm:$0xff]
      %v464 = vld [vmem:[%s423 + $0xf0] sm:$0xff]
      %v465 = vld [vmem:[%s423 + $0xf8] sm:$0xff]
      %v466 = vld [vmem:[%s428] sm:$0xff]
      %v467 = vld [vmem:[%s428 + $0x8] sm:$0xff]
      %v468 = vld [vmem:[%s428 + $0x10] sm:$0xff]
      %v469 = vld [vmem:[%s428 + $0x18] sm:$0xff]
      %v470 = vld [vmem:[%s428 + $0x20] sm:$0xff]
      %v471 = vld [vmem:[%s428 + $0x28] sm:$0xff]
      %v472 = vld [vmem:[%s428 + $0x30] sm:$0xff]
      %v473 = vld [vmem:[%s428 + $0x38] sm:$0xff]
      %v474 = vld [vmem:[%s2] sm:$0xff]
      %v475 = vld [vmem:[%s2 + $0x8] sm:$0xff]
      %v476 = vld [vmem:[%s2 + $0x10] sm:$0xff]
      %v477 = vld [vmem:[%s2 + $0x18] sm:$0xff]
      %v478 = vld [vmem:[%s3] sm:$0x1]
      %v480 = vperm.slane %v478, 0
      %vm482 = vcmask 261120
      %v484 = vsel %vm482, %v434, 0
      %v487 = vsel %vm482, %v435, 0
      %v490 = vsel %vm482, %v436, 0
      %v493 = vsel %vm482, %v437, 0
      %v496 = vsel %vm482, %v438, 0
      %v499 = vsel %vm482, %v439, 0
      %v502 = vsel %vm482, %v440, 0
      %v505 = vsel %vm482, %v441, 0
      %v508 = vsel %vm482, %v442, 0
      %v511 = vsel %vm482, %v443, 0
      %v514 = vsel %vm482, %v444, 0
      %v517 = vsel %vm482, %v445, 0
      %v520 = vsel %vm482, %v446, 0
      %v523 = vsel %vm482, %v447, 0
      %v526 = vsel %vm482, %v448, 0
      %v529 = vsel %vm482, %v449, 0
      %v532 = vsel %vm482, %v450, 0
      %v535 = vsel %vm482, %v451, 0
      %v538 = vsel %vm482, %v452, 0
      %v541 = vsel %vm482, %v453, 0
      %v544 = vsel %vm482, %v454, 0
      %v547 = vsel %vm482, %v455, 0
      %v550 = vsel %vm482, %v456, 0
      %v553 = vsel %vm482, %v457, 0
      %v556 = vsel %vm482, %v458, 0
      %v559 = vsel %vm482, %v459, 0
      %v562 = vsel %vm482, %v460, 0
      %v565 = vsel %vm482, %v461, 0
      %v568 = vsel %vm482, %v462, 0
      %v571 = vsel %vm482, %v463, 0
      %v574 = vsel %vm482, %v464, 0
      %v577 = vsel %vm482, %v465, 0
      %579 = vmatpush.msra.mxu0 0.0
      %580 = vmatpush.msra.mxu0 0.0
      %581 = vmatpush.msra.mxu0 0.0
      %582 = vmatpush.msra.mxu0 0.0
      %583 = vmatpush.msra.mxu0 0.0
      %584 = vmatpush.msra.mxu0 0.0
      %585 = vmatpush.msra.mxu0 0.0
      %586 = vmatpush.msra.mxu0 0.0
      %587 = vmatpush.msra.mxu0 0.0
      %588 = vmatpush.msra.mxu0 0.0
      %589 = vmatpush.msra.mxu0 0.0
      %590 = vmatpush.msra.mxu0 0.0
      %591 = vmatpush.msra.mxu0 %v477
      %592 = vmatpush.msra.mxu0 %v476
      %593 = vmatpush.msra.mxu0 %v475
      %594 = vmatpush.msra.mxu0 %v474
      %595 = vmatmul.f32.gmra.mxu0 %v484
      %v596 = vpop.f32.mrf.mxu0
      %v597 = vadd.f32 %v480, %v596
      %598 = vmatmul.f32.gmra.mxu0 %v487
      %v599 = vpop.f32.mrf.mxu0
      %v600 = vadd.f32 %v480, %v599
      %601 = vmatmul.f32.gmra.mxu0 %v490
      %v602 = vpop.f32.mrf.mxu0
      %v603 = vadd.f32 %v480, %v602
      %604 = vmatmul.f32.gmra.mxu0 %v493
      %v605 = vpop.f32.mrf.mxu0
      %v606 = vadd.f32 %v480, %v605
      %607 = vmatmul.f32.gmra.mxu0 %v496
      %v608 = vpop.f32.mrf.mxu0
      %v609 = vadd.f32 %v480, %v608
      %610 = vmatmul.f32.gmra.mxu0 %v499
      %v611 = vpop.f32.mrf.mxu0
      %v612 = vadd.f32 %v480, %v611
      %613 = vmatmul.f32.gmra.mxu0 %v502
      %v614 = vpop.f32.mrf.mxu0
      %v615 = vadd.f32 %v480, %v614
      %616 = vmatmul.f32.gmra.mxu0 %v505
      %v617 = vpop.f32.mrf.mxu0
      %v618 = vadd.f32 %v480, %v617
      %619 = vmatmul.f32.gmra.mxu0 %v508
      %v620 = vpop.f32.mrf.mxu0
      %v621 = vadd.f32 %v480, %v620
      %622 = vmatmul.f32.gmra.mxu0 %v511
      %v623 = vpop.f32.mrf.mxu0
      %v624 = vadd.f32 %v480, %v623
      %625 = vmatmul.f32.gmra.mxu0 %v514
      %v626 = vpop.f32.mrf.mxu0
      %v627 = vadd.f32 %v480, %v626
      %628 = vmatmul.f32.gmra.mxu0 %v517
      %v629 = vpop.f32.mrf.mxu0
      %v630 = vadd.f32 %v480, %v629
      %631 = vmatmul.f32.gmra.mxu0 %v520
      %v632 = vpop.f32.mrf.mxu0
      %v633 = vadd.f32 %v480, %v632
      %634 = vmatmul.f32.gmra.mxu0 %v523
      %v635 = vpop.f32.mrf.mxu0
      %v636 = vadd.f32 %v480, %v635
      %637 = vmatmul.f32.gmra.mxu0 %v526
      %v638 = vpop.f32.mrf.mxu0
      %v639 = vadd.f32 %v480, %v638
      %640 = vmatmul.f32.gmra.mxu0 %v529
      %v641 = vpop.f32.mrf.mxu0
      %v642 = vadd.f32 %v480, %v641
      %643 = vmatmul.f32.gmra.mxu0 %v532
      %v644 = vpop.f32.mrf.mxu0
      %v645 = vadd.f32 %v480, %v644
      %646 = vmatmul.f32.gmra.mxu0 %v535
      %v647 = vpop.f32.mrf.mxu0
      %v648 = vadd.f32 %v480, %v647
      %649 = vmatmul.f32.gmra.mxu0 %v538
      %v650 = vpop.f32.mrf.mxu0
      %v651 = vadd.f32 %v480, %v650
      %652 = vmatmul.f32.gmra.mxu0 %v541
      %v653 = vpop.f32.mrf.mxu0
      %v654 = vadd.f32 %v480, %v653
      %655 = vmatmul.f32.gmra.mxu0 %v544
      %v656 = vpop.f32.mrf.mxu0
      %v657 = vadd.f32 %v480, %v656
      %658 = vmatmul.f32.gmra.mxu0 %v547
      %v659 = vpop.f32.mrf.mxu0
      %v660 = vadd.f32 %v480, %v659
      %661 = vmatmul.f32.gmra.mxu0 %v550
      %v662 = vpop.f32.mrf.mxu0
      %v663 = vadd.f32 %v480, %v662
      %664 = vmatmul.f32.gmra.mxu0 %v553
      %v665 = vpop.f32.mrf.mxu0
      %v666 = vadd.f32 %v480, %v665
      %667 = vmatmul.f32.gmra.mxu0 %v556
      %v668 = vpop.f32.mrf.mxu0
      %v669 = vadd.f32 %v480, %v668
      %670 = vmatmul.f32.gmra.mxu0 %v559
      %v671 = vpop.f32.mrf.mxu0
      %v672 = vadd.f32 %v480, %v671
      %673 = vmatmul.f32.gmra.mxu0 %v562
      %v674 = vpop.f32.mrf.mxu0
      %v675 = vadd.f32 %v480, %v674
      %676 = vmatmul.f32.gmra.mxu0 %v565
      %v677 = vpop.f32.mrf.mxu0
      %v678 = vadd.f32 %v480, %v677
      %679 = vmatmul.f32.gmra.mxu0 %v568
      %v680 = vpop.f32.mrf.mxu0
      %v681 = vadd.f32 %v480, %v680
      %682 = vmatmul.f32.gmra.mxu0 %v571
      %v683 = vpop.f32.mrf.mxu0
      %v684 = vadd.f32 %v480, %v683
      %685 = vmatmul.f32.gmra.mxu0 %v574
      %v686 = vpop.f32.mrf.mxu0
      %v687 = vadd.f32 %v480, %v686
      %688 = vmatmul.f32.gmra.mxu0 %v577
      %v689 = vpop.f32.mrf.mxu0
      %v690 = vadd.f32 %v480, %v689
      %691 = vdwg.mxu0
      %v692 = vld [vmem:[%s4] sm:$0xff]
      %v693 = vld [vmem:[%s4 + $0x8] sm:$0xff]
      %v694 = vld [vmem:[%s4 + $0x10] sm:$0xff]
      %v695 = vld [vmem:[%s4 + $0x18] sm:$0xff]
      %v696 = vld [vmem:[%s4 + $0x20] sm:$0xff]
      %v697 = vld [vmem:[%s4 + $0x28] sm:$0xff]
      %v698 = vld [vmem:[%s4 + $0x30] sm:$0xff]
      %v699 = vld [vmem:[%s4 + $0x38] sm:$0xff]
      %v700 = vld [vmem:[%s4 + $0x40] sm:$0xff]
      %v701 = vld [vmem:[%s4 + $0x48] sm:$0xff]
      %v702 = vld [vmem:[%s4 + $0x50] sm:$0xff]
      %v703 = vld [vmem:[%s4 + $0x58] sm:$0xff]
      %v704 = vld [vmem:[%s4 + $0x60] sm:$0xff]
      %v705 = vld [vmem:[%s4 + $0x68] sm:$0xff]
      %v706 = vld [vmem:[%s4 + $0x70] sm:$0xff]
      %v707 = vld [vmem:[%s4 + $0x78] sm:$0xff]
      %v708 = vld [vmem:[%s5] sm:$0x1]
      %v710 = vperm.slane %v708, 0
      %712 = vmatpush.msra.mxu0 %v707
      %713 = vmatpush.msra.mxu0 %v706
      %714 = vmatpush.msra.mxu0 %v705
      %715 = vmatpush.msra.mxu0 %v704
      %716 = vmatpush.msra.mxu0 %v703
      %717 = vmatpush.msra.mxu0 %v702
      %718 = vmatpush.msra.mxu0 %v701
      %719 = vmatpush.msra.mxu0 %v700
      %720 = vmatpush.msra.mxu0 %v699
      %721 = vmatpush.msra.mxu0 %v698
      %722 = vmatpush.msra.mxu0 %v697
      %723 = vmatpush.msra.mxu0 %v696
      %724 = vmatpush.msra.mxu0 %v695
      %725 = vmatpush.msra.mxu0 %v694
      %726 = vmatpush.msra.mxu0 %v693
      %727 = vmatpush.msra.mxu0 %v692
      %728 = vmatmul.f32.gmra.mxu0 %v466
      %v729 = vpop.f32.mrf.mxu0
      %v730 = vadd.f32 %v710, %v729
      %731 = vmatmul.f32.gmra.mxu0 %v467
      %v732 = vpop.f32.mrf.mxu0
      %v733 = vadd.f32 %v710, %v732
      %734 = vmatmul.f32.gmra.mxu0 %v468
      %v735 = vpop.f32.mrf.mxu0
      %v736 = vadd.f32 %v710, %v735
      %737 = vmatmul.f32.gmra.mxu0 %v469
      %v738 = vpop.f32.mrf.mxu0
      %v739 = vadd.f32 %v710, %v738
      %740 = vmatmul.f32.gmra.mxu0 %v470
      %v741 = vpop.f32.mrf.mxu0
      %v742 = vadd.f32 %v710, %v741
      %743 = vmatmul.f32.gmra.mxu0 %v471
      %v744 = vpop.f32.mrf.mxu0
      %v745 = vadd.f32 %v710, %v744
      %746 = vmatmul.f32.gmra.mxu0 %v472
      %v747 = vpop.f32.mrf.mxu0
      %v748 = vadd.f32 %v710, %v747
      %749 = vmatmul.f32.gmra.mxu0 %v473
      %v750 = vpop.f32.mrf.mxu0
      %v751 = vadd.f32 %v710, %v750
      %752 = vdwg.mxu0
      %v753 = vsel %vm482, %v730, 0.0
      %754 = vadd.xlane.f32.xlu0 %v753
      %v755 = vpop.xlane.xlu0 %754
      %v756 = vsel %vm482, %v733, 0.0
      %757 = vadd.xlane.f32.xlu0 %v756
      %v758 = vpop.xlane.xlu0 %757
      %v759 = vsel %vm482, %v736, 0.0
      %760 = vadd.xlane.f32.xlu0 %v759
      %v761 = vpop.xlane.xlu0 %760
      %v762 = vsel %vm482, %v739, 0.0
      %763 = vadd.xlane.f32.xlu0 %v762
      %v764 = vpop.xlane.xlu0 %763
      %v765 = vsel %vm482, %v742, 0.0
      %766 = vadd.xlane.f32.xlu0 %v765
      %v767 = vpop.xlane.xlu0 %766
      %v768 = vsel %vm482, %v745, 0.0
      %769 = vadd.xlane.f32.xlu0 %v768
      %v770 = vpop.xlane.xlu0 %769
      %v771 = vsel %vm482, %v748, 0.0
      %772 = vadd.xlane.f32.xlu0 %v771
      %v773 = vpop.xlane.xlu0 %772
      %v774 = vsel %vm482, %v751, 0.0
      %775 = vadd.xlane.f32.xlu0 %v774
      %v776 = vpop.xlane.xlu0 %775
      %v777 = vrcp.pop 32.0
      %v778 = vmul.f32 32.0, %v777
      %v779 = vsub.f32 1.0, %v778
      %v780 = vmul.f32 %v777, %v779
      %v781 = vadd.f32 %v777, %v780
      %vm782 = vweird.f32 %v777
      %v783 = vsel %vm782, %v777, %v781
      %v784 = vmul.f32 %v755, %v783
      %v785 = vmul.f32 %v758, %v783
      %v786 = vmul.f32 %v761, %v783
      %v787 = vmul.f32 %v764, %v783
      %v788 = vmul.f32 %v767, %v783
      %v789 = vmul.f32 %v770, %v783
      %v790 = vmul.f32 %v773, %v783
      %v791 = vmul.f32 %v776, %v783
      %v792 = vsub.f32 %v730, %v784
      %v793 = vsub.f32 %v733, %v785
      %v794 = vsub.f32 %v736, %v786
      %v795 = vsub.f32 %v739, %v787
      %v796 = vsub.f32 %v742, %v788
      %v797 = vsub.f32 %v745, %v789
      %v798 = vsub.f32 %v748, %v790
      %v799 = vsub.f32 %v751, %v791
      %v800 = vmul.f32 %v792, %v792
      %v801 = vmul.f32 %v793, %v793
      %v802 = vmul.f32 %v794, %v794
      %v803 = vmul.f32 %v795, %v795
      %v804 = vmul.f32 %v796, %v796
      %v805 = vmul.f32 %v797, %v797
      %v806 = vmul.f32 %v798, %v798
      %v807 = vmul.f32 %v799, %v799
      %v808 = vsel %vm482, %v800, 0.0
      %809 = vadd.xlane.f32.xlu0 %v808
      %v810 = vpop.xlane.xlu0 %809
      %v811 = vsel %vm482, %v801, 0.0
      %812 = vadd.xlane.f32.xlu0 %v811
      %v813 = vpop.xlane.xlu0 %812
      %v814 = vsel %vm482, %v802, 0.0
      %815 = vadd.xlane.f32.xlu0 %v814
      %v816 = vpop.xlane.xlu0 %815
      %v817 = vsel %vm482, %v803, 0.0
      %818 = vadd.xlane.f32.xlu0 %v817
      %v819 = vpop.xlane.xlu0 %818
      %v820 = vsel %vm482, %v804, 0.0
      %821 = vadd.xlane.f32.xlu0 %v820
      %v822 = vpop.xlane.xlu0 %821
      %v823 = vsel %vm482, %v805, 0.0
      %824 = vadd.xlane.f32.xlu0 %v823
      %v825 = vpop.xlane.xlu0 %824
      %v826 = vsel %vm482, %v806, 0.0
      %827 = vadd.xlane.f32.xlu0 %v826
      %v828 = vpop.xlane.xlu0 %827
      %v829 = vsel %vm482, %v807, 0.0
      %830 = vadd.xlane.f32.xlu0 %v829
      %v831 = vpop.xlane.xlu0 %830
      %v832 = vmul.f32 %v810, %v783
      %v833 = vmul.f32 %v813, %v783
      %v834 = vmul.f32 %v816, %v783
      %v835 = vmul.f32 %v819, %v783
      %v836 = vmul.f32 %v822, %v783
      %v837 = vmul.f32 %v825, %v783
      %v838 = vmul.f32 %v828, %v783
      %v839 = vmul.f32 %v831, %v783
      %v840 = vadd.f32 %v832, 1e-05
      %v841 = vadd.f32 %v833, 1e-05
      %v842 = vadd.f32 %v834, 1e-05
      %v843 = vadd.f32 %v835, 1e-05
      %v844 = vadd.f32 %v836, 1e-05
      %v845 = vadd.f32 %v837, 1e-05
      %v846 = vadd.f32 %v838, 1e-05
      %v847 = vadd.f32 %v839, 1e-05
      %v848 = vrsqrt.pop %v840
      %v849 = vmul.f32 %v848, %v840
      %v850 = vmul.f32 %v849, %v848
      %v851 = vmul.f32 0.5, %v850
      %v852 = vsub.f32 1.5, %v851
      %v853 = vmul.f32 %v848, %v852
      %vm854 = vweird.f32 %v840
      %vm855 = vweird.f32 %v848
      %vm856 = vmor %vm854, %vm855
      %v857 = vsel %vm856, %v848, %v853
      %v858 = vrsqrt.pop %v841
      %v859 = vmul.f32 %v858, %v841
      %v860 = vmul.f32 %v859, %v858
      %v861 = vmul.f32 0.5, %v860
      %v862 = vsub.f32 1.5, %v861
      %v863 = vmul.f32 %v858, %v862
      %vm864 = vweird.f32 %v841
      %vm865 = vweird.f32 %v858
      %vm866 = vmor %vm864, %vm865
      %v867 = vsel %vm866, %v858, %v863
      %v868 = vrsqrt.pop %v842
      %v869 = vmul.f32 %v868, %v842
      %v870 = vmul.f32 %v869, %v868
      %v871 = vmul.f32 0.5, %v870
      %v872 = vsub.f32 1.5, %v871
      %v873 = vmul.f32 %v868, %v872
      %vm874 = vweird.f32 %v842
      %vm875 = vweird.f32 %v868
      %vm876 = vmor %vm874, %vm875
      %v877 = vsel %vm876, %v868, %v873
      %v878 = vrsqrt.pop %v843
      %v879 = vmul.f32 %v878, %v843
      %v880 = vmul.f32 %v879, %v878
      %v881 = vmul.f32 0.5, %v880
      %v882 = vsub.f32 1.5, %v881
      %v883 = vmul.f32 %v878, %v882
      %vm884 = vweird.f32 %v843
      %vm885 = vweird.f32 %v878
      %vm886 = vmor %vm884, %vm885
      %v887 = vsel %vm886, %v878, %v883
      %v888 = vrsqrt.pop %v844
      %v889 = vmul.f32 %v888, %v844
      %v890 = vmul.f32 %v889, %v888
      %v891 = vmul.f32 0.5, %v890
      %v892 = vsub.f32 1.5, %v891
      %v893 = vmul.f32 %v888, %v892
      %vm894 = vweird.f32 %v844
      %vm895 = vweird.f32 %v888
      %vm896 = vmor %vm894, %vm895
      %v897 = vsel %vm896, %v888, %v893
      %v898 = vrsqrt.pop %v845
      %v899 = vmul.f32 %v898, %v845
      %v900 = vmul.f32 %v899, %v898
      %v901 = vmul.f32 0.5, %v900
      %v902 = vsub.f32 1.5, %v901
      %v903 = vmul.f32 %v898, %v902
      %vm904 = vweird.f32 %v845
      %vm905 = vweird.f32 %v898
      %vm906 = vmor %vm904, %vm905
      %v907 = vsel %vm906, %v898, %v903
      %v908 = vrsqrt.pop %v846
      %v909 = vmul.f32 %v908, %v846
      %v910 = vmul.f32 %v909, %v908
      %v911 = vmul.f32 0.5, %v910
      %v912 = vsub.f32 1.5, %v911
      %v913 = vmul.f32 %v908, %v912
      %vm914 = vweird.f32 %v846
      %vm915 = vweird.f32 %v908
      %vm916 = vmor %vm914, %vm915
      %v917 = vsel %vm916, %v908, %v913
      %v918 = vrsqrt.pop %v847
      %v919 = vmul.f32 %v918, %v847
      %v920 = vmul.f32 %v919, %v918
      %v921 = vmul.f32 0.5, %v920
      %v922 = vsub.f32 1.5, %v921
      %v923 = vmul.f32 %v918, %v922
      %vm924 = vweird.f32 %v847
      %vm925 = vweird.f32 %v918
      %vm926 = vmor %vm924, %vm925
      %v927 = vsel %vm926, %v918, %v923
      %v928 = vmul.f32 %v792, %v857
      %v929 = vmul.f32 %v793, %v867
      %v930 = vmul.f32 %v794, %v877
      %v931 = vmul.f32 %v795, %v887
      %v932 = vmul.f32 %v796, %v897
      %v933 = vmul.f32 %v797, %v907
      %v934 = vmul.f32 %v798, %v917
      %v935 = vmul.f32 %v799, %v927
      %v936 = vld [vmem:[%s6] sm:$0x1]
      %v938 = vperm.slane %v936, 0
      %v940 = vmul.f32 %v928, %v938
      %v941 = vmul.f32 %v929, %v938
      %v942 = vmul.f32 %v930, %v938
      %v943 = vmul.f32 %v931, %v938
      %v944 = vmul.f32 %v932, %v938
      %v945 = vmul.f32 %v933, %v938
      %v946 = vmul.f32 %v934, %v938
      %v947 = vmul.f32 %v935, %v938
      %v948 = vld [vmem:[%s7] sm:$0x1]
      %v950 = vperm.slane %v948, 0
      %v952 = vadd.f32 %v940, %v950
      %v953 = vadd.f32 %v941, %v950
      %v954 = vadd.f32 %v942, %v950
      %v955 = vadd.f32 %v943, %v950
      %v956 = vadd.f32 %v944, %v950
      %v957 = vadd.f32 %v945, %v950
      %v958 = vadd.f32 %v946, %v950
      %v959 = vadd.f32 %v947, %v950
      %v960 = vld [vmem:[%s8] sm:$0xff]
      %v961 = vld [vmem:[%s8 + $0x8] sm:$0xff]
      %v962 = vld [vmem:[%s8 + $0x10] sm:$0xff]
      %v963 = vld [vmem:[%s8 + $0x18] sm:$0xff]
      %v964 = vld [vmem:[%s9] sm:$0x1]
      %v966 = vperm.slane %v964, 0
      %v969 = vsel %vm482, %v952, 0
      %v972 = vsel %vm482, %v953, 0
      %v975 = vsel %vm482, %v954, 0
      %v978 = vsel %vm482, %v955, 0
      %v981 = vsel %vm482, %v956, 0
      %v984 = vsel %vm482, %v957, 0
      %v987 = vsel %vm482, %v958, 0
      %v990 = vsel %vm482, %v959, 0
      %992 = vmatpush.msra.mxu0 0.0
      %993 = vmatpush.msra.mxu0 0.0
      %994 = vmatpush.msra.mxu0 0.0
      %995 = vmatpush.msra.mxu0 0.0
      %996 = vmatpush.msra.mxu0 0.0
      %997 = vmatpush.msra.mxu0 0.0
      %998 = vmatpush.msra.mxu0 0.0
      %999 = vmatpush.msra.mxu0 0.0
      %1000 = vmatpush.msra.mxu0 0.0
      %1001 = vmatpush.msra.mxu0 0.0
      %1002 = vmatpush.msra.mxu0 0.0
      %1003 = vmatpush.msra.mxu0 0.0
      %1004 = vmatpush.msra.mxu0 %v963
      %1005 = vmatpush.msra.mxu0 %v962
      %1006 = vmatpush.msra.mxu0 %v961
      %1007 = vmatpush.msra.mxu0 %v960
      %1008 = vmatmul.f32.gmra.mxu0 %v969
      %v1009 = vpop.f32.mrf.mxu0
      %v1010 = vadd.f32 %v966, %v1009
      %1011 = vmatmul.f32.gmra.mxu0 %v972
      %v1012 = vpop.f32.mrf.mxu0
      %v1013 = vadd.f32 %v966, %v1012
      %1014 = vmatmul.f32.gmra.mxu0 %v975
      %v1015 = vpop.f32.mrf.mxu0
      %v1016 = vadd.f32 %v966, %v1015
      %1017 = vmatmul.f32.gmra.mxu0 %v978
      %v1018 = vpop.f32.mrf.mxu0
      %v1019 = vadd.f32 %v966, %v1018
      %1020 = vmatmul.f32.gmra.mxu0 %v981
      %v1021 = vpop.f32.mrf.mxu0
      %v1022 = vadd.f32 %v966, %v1021
      %1023 = vmatmul.f32.gmra.mxu0 %v984
      %v1024 = vpop.f32.mrf.mxu0
      %v1025 = vadd.f32 %v966, %v1024
      %1026 = vmatmul.f32.gmra.mxu0 %v987
      %v1027 = vpop.f32.mrf.mxu0
      %v1028 = vadd.f32 %v966, %v1027
      %1029 = vmatmul.f32.gmra.mxu0 %v990
      %v1030 = vpop.f32.mrf.mxu0
      %v1031 = vadd.f32 %v966, %v1030
      %1032 = vdwg.mxu0
      %v1033 = vld [vmem:[%s10] sm:$0xff]
      %v1034 = vld [vmem:[%s10 + $0x8] sm:$0xff]
      %v1035 = vld [vmem:[%s10 + $0x10] sm:$0xff]
      %v1036 = vld [vmem:[%s10 + $0x18] sm:$0xff]
      %v1037 = vld [vmem:[%s11] sm:$0x1]
      %vm1038 = vcmask 64512
      %v1040 = vsel %vm1038, %v597, 0
      %v1043 = vsel %vm1038, %v600, 0
      %v1046 = vsel %vm1038, %v603, 0
      %v1049 = vsel %vm1038, %v606, 0
      %v1052 = vsel %vm1038, %v609, 0
      %v1055 = vsel %vm1038, %v612, 0
      %v1058 = vsel %vm1038, %v615, 0
      %v1061 = vsel %vm1038, %v618, 0
      %v1064 = vsel %vm1038, %v621, 0
      %v1067 = vsel %vm1038, %v624, 0
      %v1070 = vsel %vm1038, %v627, 0
      %v1073 = vsel %vm1038, %v630, 0
      %v1076 = vsel %vm1038, %v633, 0
      %v1079 = vsel %vm1038, %v636, 0
      %v1082 = vsel %vm1038, %v639, 0
      %v1085 = vsel %vm1038, %v642, 0
      %v1088 = vsel %vm1038, %v645, 0
      %v1091 = vsel %vm1038, %v648, 0
      %v1094 = vsel %vm1038, %v651, 0
      %v1097 = vsel %vm1038, %v654, 0
      %v1100 = vsel %vm1038, %v657, 0
      %v1103 = vsel %vm1038, %v660, 0
      %v1106 = vsel %vm1038, %v663, 0
      %v1109 = vsel %vm1038, %v666, 0
      %v1112 = vsel %vm1038, %v669, 0
      %v1115 = vsel %vm1038, %v672, 0
      %v1118 = vsel %vm1038, %v675, 0
      %v1121 = vsel %vm1038, %v678, 0
      %v1124 = vsel %vm1038, %v681, 0
      %v1127 = vsel %vm1038, %v684, 0
      %v1130 = vsel %vm1038, %v687, 0
      %v1133 = vsel %vm1038, %v690, 0
      %v1136 = vsel %vm1038, %v1010, 0
      %v1139 = vsel %vm1038, %v1013, 0
      %v1142 = vsel %vm1038, %v1016, 0
      %v1145 = vsel %vm1038, %v1019, 0
      %v1148 = vsel %vm1038, %v1022, 0
      %v1151 = vsel %vm1038, %v1025, 0
      %v1154 = vsel %vm1038, %v1028, 0
      %v1157 = vsel %vm1038, %v1031, 0
      %1159 = vmatpush.xpose.msra.mxu0 0.0
      %1160 = vmatpush.xpose.msra.mxu0 0.0
      %1161 = vmatpush.xpose.msra.mxu0 0.0
      %1162 = vmatpush.xpose.msra.mxu0 0.0
      %1163 = vmatpush.xpose.msra.mxu0 0.0
      %1164 = vmatpush.xpose.msra.mxu0 0.0
      %1165 = vmatpush.xpose.msra.mxu0 0.0
      %1166 = vmatpush.xpose.msra.mxu0 0.0
      %1167 = vmatpush.xpose.msra.mxu0 %v1157
      %1168 = vmatpush.xpose.msra.mxu0 %v1154
      %1169 = vmatpush.xpose.msra.mxu0 %v1151
      %1170 = vmatpush.xpose.msra.mxu0 %v1148
      %1171 = vmatpush.xpose.msra.mxu0 %v1145
      %1172 = vmatpush.xpose.msra.mxu0 %v1142
      %1173 = vmatpush.xpose.msra.mxu0 %v1139
      %1174 = vmatpush.xpose.msra.mxu0 %v1136
      %1175 = vmatmul.f32.gmra.mxu0 %v1040
      %v1176 = vpop.f32.mrf.mxu0
      %v1177 = vadd.f32 0.0, %v1176
      %1178 = vmatmul.f32.gmra.mxu0 %v1043
      %v1179 = vpop.f32.mrf.mxu0
      %v1180 = vadd.f32 0.0, %v1179
      %1181 = vmatmul.f32.gmra.mxu0 %v1046
      %v1182 = vpop.f32.mrf.mxu0
      %v1183 = vadd.f32 0.0, %v1182
      %1184 = vmatmul.f32.gmra.mxu0 %v1049
      %v1185 = vpop.f32.mrf.mxu0
      %v1186 = vadd.f32 0.0, %v1185
      %1187 = vmatmul.f32.gmra.mxu0 %v1052
      %v1188 = vpop.f32.mrf.mxu0
      %v1189 = vadd.f32 0.0, %v1188
      %1190 = vmatmul.f32.gmra.mxu0 %v1055
      %v1191 = vpop.f32.mrf.mxu0
      %v1192 = vadd.f32 0.0, %v1191
      %1193 = vmatmul.f32.gmra.mxu0 %v1058
      %v1194 = vpop.f32.mrf.mxu0
      %v1195 = vadd.f32 0.0, %v1194
      %1196 = vmatmul.f32.gmra.mxu0 %v1061
      %v1197 = vpop.f32.mrf.mxu0
      %v1198 = vadd.f32 0.0, %v1197
      %1199 = vmatmul.f32.gmra.mxu0 %v1064
      %v1200 = vpop.f32.mrf.mxu0
      %v1201 = vadd.f32 0.0, %v1200
      %1202 = vmatmul.f32.gmra.mxu0 %v1067
      %v1203 = vpop.f32.mrf.mxu0
      %v1204 = vadd.f32 0.0, %v1203
      %1205 = vmatmul.f32.gmra.mxu0 %v1070
      %v1206 = vpop.f32.mrf.mxu0
      %v1207 = vadd.f32 0.0, %v1206
      %1208 = vmatmul.f32.gmra.mxu0 %v1073
      %v1209 = vpop.f32.mrf.mxu0
      %v1210 = vadd.f32 0.0, %v1209
      %1211 = vmatmul.f32.gmra.mxu0 %v1076
      %v1212 = vpop.f32.mrf.mxu0
      %v1213 = vadd.f32 0.0, %v1212
      %1214 = vmatmul.f32.gmra.mxu0 %v1079
      %v1215 = vpop.f32.mrf.mxu0
      %v1216 = vadd.f32 0.0, %v1215
      %1217 = vmatmul.f32.gmra.mxu0 %v1082
      %v1218 = vpop.f32.mrf.mxu0
      %v1219 = vadd.f32 0.0, %v1218
      %1220 = vmatmul.f32.gmra.mxu0 %v1085
      %v1221 = vpop.f32.mrf.mxu0
      %v1222 = vadd.f32 0.0, %v1221
      %1223 = vmatmul.f32.gmra.mxu0 %v1088
      %v1224 = vpop.f32.mrf.mxu0
      %v1225 = vadd.f32 0.0, %v1224
      %1226 = vmatmul.f32.gmra.mxu0 %v1091
      %v1227 = vpop.f32.mrf.mxu0
      %v1228 = vadd.f32 0.0, %v1227
      %1229 = vmatmul.f32.gmra.mxu0 %v1094
      %v1230 = vpop.f32.mrf.mxu0
      %v1231 = vadd.f32 0.0, %v1230
      %1232 = vmatmul.f32.gmra.mxu0 %v1097
      %v1233 = vpop.f32.mrf.mxu0
      %v1234 = vadd.f32 0.0, %v1233
      %1235 = vmatmul.f32.gmra.mxu0 %v1100
      %v1236 = vpop.f32.mrf.mxu0
      %v1237 = vadd.f32 0.0, %v1236
      %1238 = vmatmul.f32.gmra.mxu0 %v1103
      %v1239 = vpop.f32.mrf.mxu0
      %v1240 = vadd.f32 0.0, %v1239
      %1241 = vmatmul.f32.gmra.mxu0 %v1106
      %v1242 = vpop.f32.mrf.mxu0
      %v1243 = vadd.f32 0.0, %v1242
      %1244 = vmatmul.f32.gmra.mxu0 %v1109
      %v1245 = vpop.f32.mrf.mxu0
      %v1246 = vadd.f32 0.0, %v1245
      %1247 = vmatmul.f32.gmra.mxu0 %v1112
      %v1248 = vpop.f32.mrf.mxu0
      %v1249 = vadd.f32 0.0, %v1248
      %1250 = vmatmul.f32.gmra.mxu0 %v1115
      %v1251 = vpop.f32.mrf.mxu0
      %v1252 = vadd.f32 0.0, %v1251
      %1253 = vmatmul.f32.gmra.mxu0 %v1118
      %v1254 = vpop.f32.mrf.mxu0
      %v1255 = vadd.f32 0.0, %v1254
      %1256 = vmatmul.f32.gmra.mxu0 %v1121
      %v1257 = vpop.f32.mrf.mxu0
      %v1258 = vadd.f32 0.0, %v1257
      %1259 = vmatmul.f32.gmra.mxu0 %v1124
      %v1260 = vpop.f32.mrf.mxu0
      %v1261 = vadd.f32 0.0, %v1260
      %1262 = vmatmul.f32.gmra.mxu0 %v1127
      %v1263 = vpop.f32.mrf.mxu0
      %v1264 = vadd.f32 0.0, %v1263
      %1265 = vmatmul.f32.gmra.mxu0 %v1130
      %v1266 = vpop.f32.mrf.mxu0
      %v1267 = vadd.f32 0.0, %v1266
      %1268 = vmatmul.f32.gmra.mxu0 %v1133
      %v1269 = vpop.f32.mrf.mxu0
      %v1270 = vadd.f32 0.0, %v1269
      %1271 = vdwg.mxu0
      %v1272 = vmul.f32 %v1177, 0.35355338
      %v1273 = vmul.f32 %v1180, 0.35355338
      %v1274 = vmul.f32 %v1183, 0.35355338
      %v1275 = vmul.f32 %v1186, 0.35355338
      %v1276 = vmul.f32 %v1189, 0.35355338
      %v1277 = vmul.f32 %v1192, 0.35355338
      %v1278 = vmul.f32 %v1195, 0.35355338
      %v1279 = vmul.f32 %v1198, 0.35355338
      %v1280 = vmul.f32 %v1201, 0.35355338
      %v1281 = vmul.f32 %v1204, 0.35355338
      %v1282 = vmul.f32 %v1207, 0.35355338
      %v1283 = vmul.f32 %v1210, 0.35355338
      %v1284 = vmul.f32 %v1213, 0.35355338
      %v1285 = vmul.f32 %v1216, 0.35355338
      %v1286 = vmul.f32 %v1219, 0.35355338
      %v1287 = vmul.f32 %v1222, 0.35355338
      %v1288 = vmul.f32 %v1225, 0.35355338
      %v1289 = vmul.f32 %v1228, 0.35355338
      %v1290 = vmul.f32 %v1231, 0.35355338
      %v1291 = vmul.f32 %v1234, 0.35355338
      %v1292 = vmul.f32 %v1237, 0.35355338
      %v1293 = vmul.f32 %v1240, 0.35355338
      %v1294 = vmul.f32 %v1243, 0.35355338
      %v1295 = vmul.f32 %v1246, 0.35355338
      %v1296 = vmul.f32 %v1249, 0.35355338
      %v1297 = vmul.f32 %v1252, 0.35355338
      %v1298 = vmul.f32 %v1255, 0.35355338
      %v1299 = vmul.f32 %v1258, 0.35355338
      %v1300 = vmul.f32 %v1261, 0.35355338
      %v1301 = vmul.f32 %v1264, 0.35355338
      %v1302 = vmul.f32 %v1267, 0.35355338
      %v1303 = vmul.f32 %v1270, 0.35355338
      %vm1304 = vcmask 523264
      %v1305 = vsel %vm1304, %v1272, -inf
      %1306 = vmax.xlane.f32.xlu0 %v1305
      %v1307 = vpop.xlane.xlu0 %1306
      %v1308 = vsel %vm1304, %v1273, -inf
      %1309 = vmax.xlane.f32.xlu0 %v1308
      %v1310 = vpop.xlane.xlu0 %1309
      %v1311 = vsel %vm1304, %v1274, -inf
      %1312 = vmax.xlane.f32.xlu0 %v1311
      %v1313 = vpop.xlane.xlu0 %1312
      %v1314 = vsel %vm1304, %v1275, -inf
      %1315 = vmax.xlane.f32.xlu0 %v1314
      %v1316 = vpop.xlane.xlu0 %1315
      %v1317 = vsel %vm1304, %v1276, -inf
      %1318 = vmax.xlane.f32.xlu0 %v1317
      %v1319 = vpop.xlane.xlu0 %1318
      %v1320 = vsel %vm1304, %v1277, -inf
      %1321 = vmax.xlane.f32.xlu0 %v1320
      %v1322 = vpop.xlane.xlu0 %1321
      %v1323 = vsel %vm1304, %v1278, -inf
      %1324 = vmax.xlane.f32.xlu0 %v1323
      %v1325 = vpop.xlane.xlu0 %1324
      %v1326 = vsel %vm1304, %v1279, -inf
      %1327 = vmax.xlane.f32.xlu0 %v1326
      %v1328 = vpop.xlane.xlu0 %1327
      %v1329 = vsel %vm1304, %v1280, -inf
      %1330 = vmax.xlane.f32.xlu0 %v1329
      %v1331 = vpop.xlane.xlu0 %1330
      %v1332 = vsel %vm1304, %v1281, -inf
      %1333 = vmax.xlane.f32.xlu0 %v1332
      %v1334 = vpop.xlane.xlu0 %1333
      %v1335 = vsel %vm1304, %v1282, -inf
      %1336 = vmax.xlane.f32.xlu0 %v1335
      %v1337 = vpop.xlane.xlu0 %1336
      %v1338 = vsel %vm1304, %v1283, -inf
      %1339 = vmax.xlane.f32.xlu0 %v1338
      %v1340 = vpop.xlane.xlu0 %1339
      %v1341 = vsel %vm1304, %v1284, -inf
      %1342 = vmax.xlane.f32.xlu0 %v1341
      %v1343 = vpop.xlane.xlu0 %1342
      %v1344 = vsel %vm1304, %v1285, -inf
      %1345 = vmax.xlane.f32.xlu0 %v1344
      %v1346 = vpop.xlane.xlu0 %1345
      %v1347 = vsel %vm1304, %v1286, -inf
      %1348 = vmax.xlane.f32.xlu0 %v1347
      %v1349 = vpop.xlane.xlu0 %1348
      %v1350 = vsel %vm1304, %v1287, -inf
      %1351 = vmax.xlane.f32.xlu0 %v1350
      %v1352 = vpop.xlane.xlu0 %1351
      %v1353 = vsel %vm1304, %v1288, -inf
      %1354 = vmax.xlane.f32.xlu0 %v1353
      %v1355 = vpop.xlane.xlu0 %1354
      %v1356 = vsel %vm1304, %v1289, -inf
      %1357 = vmax.xlane.f32.xlu0 %v1356
      %v1358 = vpop.xlane.xlu0 %1357
      %v1359 = vsel %vm1304, %v1290, -inf
      %1360 = vmax.xlane.f32.xlu0 %v1359
      %v1361 = vpop.xlane.xlu0 %1360
      %v1362 = vsel %vm1304, %v1291, -inf
      %1363 = vmax.xlane.f32.xlu0 %v1362
      %v1364 = vpop.xlane.xlu0 %1363
      %v1365 = vsel %vm1304, %v1292, -inf
      %1366 = vmax.xlane.f32.xlu0 %v1365
      %v1367 = vpop.xlane.xlu0 %1366
      %v1368 = vsel %vm1304, %v1293, -inf
      %1369 = vmax.xlane.f32.xlu0 %v1368
      %v1370 = vpop.xlane.xlu0 %1369
      %v1371 = vsel %vm1304, %v1294, -inf
      %1372 = vmax.xlane.f32.xlu0 %v1371
      %v1373 = vpop.xlane.xlu0 %1372
      %v1374 = vsel %vm1304, %v1295, -inf
      %1375 = vmax.xlane.f32.xlu0 %v1374
      %v1376 = vpop.xlane.xlu0 %1375
      %v1377 = vsel %vm1304, %v1296, -inf
      %1378 = vmax.xlane.f32.xlu0 %v1377
      %v1379 = vpop.xlane.xlu0 %1378
      %v1380 = vsel %vm1304, %v1297, -inf
      %1381 = vmax.xlane.f32.xlu0 %v1380
      %v1382 = vpop.xlane.xlu0 %1381
      %v1383 = vsel %vm1304, %v1298, -inf
      %1384 = vmax.xlane.f32.xlu0 %v1383
      %v1385 = vpop.xlane.xlu0 %1384
      %v1386 = vsel %vm1304, %v1299, -inf
      %1387 = vmax.xlane.f32.xlu0 %v1386
      %v1388 = vpop.xlane.xlu0 %1387
      %v1389 = vsel %vm1304, %v1300, -inf
      %1390 = vmax.xlane.f32.xlu0 %v1389
      %v1391 = vpop.xlane.xlu0 %1390
      %v1392 = vsel %vm1304, %v1301, -inf
      %1393 = vmax.xlane.f32.xlu0 %v1392
      %v1394 = vpop.xlane.xlu0 %1393
      %v1395 = vsel %vm1304, %v1302, -inf
      %1396 = vmax.xlane.f32.xlu0 %v1395
      %v1397 = vpop.xlane.xlu0 %1396
      %v1398 = vsel %vm1304, %v1303, -inf
      %1399 = vmax.xlane.f32.xlu0 %v1398
      %v1400 = vpop.xlane.xlu0 %1399
      %v1401 = vsub.f32 %v1272, %v1307
      %v1402 = vsub.f32 %v1273, %v1310
      %v1403 = vsub.f32 %v1274, %v1313
      %v1404 = vsub.f32 %v1275, %v1316
      %v1405 = vsub.f32 %v1276, %v1319
      %v1406 = vsub.f32 %v1277, %v1322
      %v1407 = vsub.f32 %v1278, %v1325
      %v1408 = vsub.f32 %v1279, %v1328
      %v1409 = vsub.f32 %v1280, %v1331
      %v1410 = vsub.f32 %v1281, %v1334
      %v1411 = vsub.f32 %v1282, %v1337
      %v1412 = vsub.f32 %v1283, %v1340
      %v1413 = vsub.f32 %v1284, %v1343
      %v1414 = vsub.f32 %v1285, %v1346
      %v1415 = vsub.f32 %v1286, %v1349
      %v1416 = vsub.f32 %v1287, %v1352
      %v1417 = vsub.f32 %v1288, %v1355
      %v1418 = vsub.f32 %v1289, %v1358
      %v1419 = vsub.f32 %v1290, %v1361
      %v1420 = vsub.f32 %v1291, %v1364
      %v1421 = vsub.f32 %v1292, %v1367
      %v1422 = vsub.f32 %v1293, %v1370
      %v1423 = vsub.f32 %v1294, %v1373
      %v1424 = vsub.f32 %v1295, %v1376
      %v1425 = vsub.f32 %v1296, %v1379
      %v1426 = vsub.f32 %v1297, %v1382
      %v1427 = vsub.f32 %v1298, %v1385
      %v1428 = vsub.f32 %v1299, %v1388
      %v1429 = vsub.f32 %v1300, %v1391
      %v1430 = vsub.f32 %v1301, %v1394
      %v1431 = vsub.f32 %v1302, %v1397
      %v1432 = vsub.f32 %v1303, %v1400
      %v1433 = vmul.f32 %v1401, 1.442695
      %v1434 = vpow.pop %v1433
      %v1435 = vmul.f32 %v1402, 1.442695
      %v1436 = vpow.pop %v1435
      %v1437 = vmul.f32 %v1403, 1.442695
      %v1438 = vpow.pop %v1437
      %v1439 = vmul.f32 %v1404, 1.442695
      %v1440 = vpow.pop %v1439
      %v1441 = vmul.f32 %v1405, 1.442695
      %v1442 = vpow.pop %v1441
      %v1443 = vmul.f32 %v1406, 1.442695
      %v1444 = vpow.pop %v1443
      %v1445 = vmul.f32 %v1407, 1.442695
      %v1446 = vpow.pop %v1445
      %v1447 = vmul.f32 %v1408, 1.442695
      %v1448 = vpow.pop %v1447
      %v1449 = vmul.f32 %v1409, 1.442695
      %v1450 = vpow.pop %v1449
      %v1451 = vmul.f32 %v1410, 1.442695
      %v1452 = vpow.pop %v1451
      %v1453 = vmul.f32 %v1411, 1.442695
      %v1454 = vpow.pop %v1453
      %v1455 = vmul.f32 %v1412, 1.442695
      %v1456 = vpow.pop %v1455
      %v1457 = vmul.f32 %v1413, 1.442695
      %v1458 = vpow.pop %v1457
      %v1459 = vmul.f32 %v1414, 1.442695
      %v1460 = vpow.pop %v1459
      %v1461 = vmul.f32 %v1415, 1.442695
      %v1462 = vpow.pop %v1461
      %v1463 = vmul.f32 %v1416, 1.442695
      %v1464 = vpow.pop %v1463
      %v1465 = vmul.f32 %v1417, 1.442695
      %v1466 = vpow.pop %v1465
      %v1467 = vmul.f32 %v1418, 1.442695
      %v1468 = vpow.pop %v1467
      %v1469 = vmul.f32 %v1419, 1.442695
      %v1470 = vpow.pop %v1469
      %v1471 = vmul.f32 %v1420, 1.442695
      %v1472 = vpow.pop %v1471
      %v1473 = vmul.f32 %v1421, 1.442695
      %v1474 = vpow.pop %v1473
      %v1475 = vmul.f32 %v1422, 1.442695
      %v1476 = vpow.pop %v1475
      %v1477 = vmul.f32 %v1423, 1.442695
      %v1478 = vpow.pop %v1477
      %v1479 = vmul.f32 %v1424, 1.442695
      %v1480 = vpow.pop %v1479
      %v1481 = vmul.f32 %v1425, 1.442695
      %v1482 = vpow.pop %v1481
      %v1483 = vmul.f32 %v1426, 1.442695
      %v1484 = vpow.pop %v1483
      %v1485 = vmul.f32 %v1427, 1.442695
      %v1486 = vpow.pop %v1485
      %v1487 = vmul.f32 %v1428, 1.442695
      %v1488 = vpow.pop %v1487
      %v1489 = vmul.f32 %v1429, 1.442695
      %v1490 = vpow.pop %v1489
      %v1491 = vmul.f32 %v1430, 1.442695
      %v1492 = vpow.pop %v1491
      %v1493 = vmul.f32 %v1431, 1.442695
      %v1494 = vpow.pop %v1493
      %v1495 = vmul.f32 %v1432, 1.442695
      %v1496 = vpow.pop %v1495
      %v1497 = vsel %vm1304, %v1434, 0.0
      %1498 = vadd.xlane.f32.xlu0 %v1497
      %v1499 = vpop.xlane.xlu0 %1498
      %v1500 = vsel %vm1304, %v1436, 0.0
      %1501 = vadd.xlane.f32.xlu0 %v1500
      %v1502 = vpop.xlane.xlu0 %1501
      %v1503 = vsel %vm1304, %v1438, 0.0
      %1504 = vadd.xlane.f32.xlu0 %v1503
      %v1505 = vpop.xlane.xlu0 %1504
      %v1506 = vsel %vm1304, %v1440, 0.0
      %1507 = vadd.xlane.f32.xlu0 %v1506
      %v1508 = vpop.xlane.xlu0 %1507
      %v1509 = vsel %vm1304, %v1442, 0.0
      %1510 = vadd.xlane.f32.xlu0 %v1509
      %v1511 = vpop.xlane.xlu0 %1510
      %v1512 = vsel %vm1304, %v1444, 0.0
      %1513 = vadd.xlane.f32.xlu0 %v1512
      %v1514 = vpop.xlane.xlu0 %1513
      %v1515 = vsel %vm1304, %v1446, 0.0
      %1516 = vadd.xlane.f32.xlu0 %v1515
      %v1517 = vpop.xlane.xlu0 %1516
      %v1518 = vsel %vm1304, %v1448, 0.0
      %1519 = vadd.xlane.f32.xlu0 %v1518
      %v1520 = vpop.xlane.xlu0 %1519
      %v1521 = vsel %vm1304, %v1450, 0.0
      %1522 = vadd.xlane.f32.xlu0 %v1521
      %v1523 = vpop.xlane.xlu0 %1522
      %v1524 = vsel %vm1304, %v1452, 0.0
      %1525 = vadd.xlane.f32.xlu0 %v1524
      %v1526 = vpop.xlane.xlu0 %1525
      %v1527 = vsel %vm1304, %v1454, 0.0
      %1528 = vadd.xlane.f32.xlu0 %v1527
      %v1529 = vpop.xlane.xlu0 %1528
      %v1530 = vsel %vm1304, %v1456, 0.0
      %1531 = vadd.xlane.f32.xlu0 %v1530
      %v1532 = vpop.xlane.xlu0 %1531
      %v1533 = vsel %vm1304, %v1458, 0.0
      %1534 = vadd.xlane.f32.xlu0 %v1533
      %v1535 = vpop.xlane.xlu0 %1534
      %v1536 = vsel %vm1304, %v1460, 0.0
      %1537 = vadd.xlane.f32.xlu0 %v1536
      %v1538 = vpop.xlane.xlu0 %1537
      %v1539 = vsel %vm1304, %v1462, 0.0
      %1540 = vadd.xlane.f32.xlu0 %v1539
      %v1541 = vpop.xlane.xlu0 %1540
      %v1542 = vsel %vm1304, %v1464, 0.0
      %1543 = vadd.xlane.f32.xlu0 %v1542
      %v1544 = vpop.xlane.xlu0 %1543
      %v1545 = vsel %vm1304, %v1466, 0.0
      %1546 = vadd.xlane.f32.xlu0 %v1545
      %v1547 = vpop.xlane.xlu0 %1546
      %v1548 = vsel %vm1304, %v1468, 0.0
      %1549 = vadd.xlane.f32.xlu0 %v1548
      %v1550 = vpop.xlane.xlu0 %1549
      %v1551 = vsel %vm1304, %v1470, 0.0
      %1552 = vadd.xlane.f32.xlu0 %v1551
      %v1553 = vpop.xlane.xlu0 %1552
      %v1554 = vsel %vm1304, %v1472, 0.0
      %1555 = vadd.xlane.f32.xlu0 %v1554
      %v1556 = vpop.xlane.xlu0 %1555
      %v1557 = vsel %vm1304, %v1474, 0.0
      %1558 = vadd.xlane.f32.xlu0 %v1557
      %v1559 = vpop.xlane.xlu0 %1558
      %v1560 = vsel %vm1304, %v1476, 0.0
      %1561 = vadd.xlane.f32.xlu0 %v1560
      %v1562 = vpop.xlane.xlu0 %1561
      %v1563 = vsel %vm1304, %v1478, 0.0
      %1564 = vadd.xlane.f32.xlu0 %v1563
      %v1565 = vpop.xlane.xlu0 %1564
      %v1566 = vsel %vm1304, %v1480, 0.0
      %1567 = vadd.xlane.f32.xlu0 %v1566
      %v1568 = vpop.xlane.xlu0 %1567
      %v1569 = vsel %vm1304, %v1482, 0.0
      %1570 = vadd.xlane.f32.xlu0 %v1569
      %v1571 = vpop.xlane.xlu0 %1570
      %v1572 = vsel %vm1304, %v1484, 0.0
      %1573 = vadd.xlane.f32.xlu0 %v1572
      %v1574 = vpop.xlane.xlu0 %1573
      %v1575 = vsel %vm1304, %v1486, 0.0
      %1576 = vadd.xlane.f32.xlu0 %v1575
      %v1577 = vpop.xlane.xlu0 %1576
      %v1578 = vsel %vm1304, %v1488, 0.0
      %1579 = vadd.xlane.f32.xlu0 %v1578
      %v1580 = vpop.xlane.xlu0 %1579
      %v1581 = vsel %vm1304, %v1490, 0.0
      %1582 = vadd.xlane.f32.xlu0 %v1581
      %v1583 = vpop.xlane.xlu0 %1582
      %v1584 = vsel %vm1304, %v1492, 0.0
      %1585 = vadd.xlane.f32.xlu0 %v1584
      %v1586 = vpop.xlane.xlu0 %1585
      %v1587 = vsel %vm1304, %v1494, 0.0
      %1588 = vadd.xlane.f32.xlu0 %v1587
      %v1589 = vpop.xlane.xlu0 %1588
      %v1590 = vsel %vm1304, %v1496, 0.0
      %1591 = vadd.xlane.f32.xlu0 %v1590
      %v1592 = vpop.xlane.xlu0 %1591
      %1593 = vrot.lane.b32.xlu0 %v1010, 96
      %v1594 = vpop.permute.xlu0 %1593
      %1595 = vrot.lane.b32.xlu0 %v1013, 96
      %v1596 = vpop.permute.xlu0 %1595
      %1597 = vrot.lane.b32.xlu0 %v1016, 96
      %v1598 = vpop.permute.xlu0 %1597
      %1599 = vrot.lane.b32.xlu0 %v1019, 96
      %v1600 = vpop.permute.xlu0 %1599
      %1601 = vrot.lane.b32.xlu0 %v1022, 96
      %v1602 = vpop.permute.xlu0 %1601
      %1603 = vrot.lane.b32.xlu0 %v1025, 96
      %v1604 = vpop.permute.xlu0 %1603
      %1605 = vrot.lane.b32.xlu0 %v1028, 96
      %v1606 = vpop.permute.xlu0 %1605
      %1607 = vrot.lane.b32.xlu0 %v1031, 96
      %v1608 = vpop.permute.xlu0 %1607
      %v1618 = vsel %vm1304, %v1434, 0
      %v1621 = vsel %vm1304, %v1436, 0
      %v1624 = vsel %vm1304, %v1438, 0
      %v1627 = vsel %vm1304, %v1440, 0
      %v1630 = vsel %vm1304, %v1442, 0
      %v1633 = vsel %vm1304, %v1444, 0
      %v1636 = vsel %vm1304, %v1446, 0
      %v1639 = vsel %vm1304, %v1448, 0
      %v1642 = vsel %vm1304, %v1450, 0
      %v1645 = vsel %vm1304, %v1452, 0
      %v1648 = vsel %vm1304, %v1454, 0
      %v1651 = vsel %vm1304, %v1456, 0
      %v1654 = vsel %vm1304, %v1458, 0
      %v1657 = vsel %vm1304, %v1460, 0
      %v1660 = vsel %vm1304, %v1462, 0
      %v1663 = vsel %vm1304, %v1464, 0
      %v1666 = vsel %vm1304, %v1466, 0
      %v1669 = vsel %vm1304, %v1468, 0
      %v1672 = vsel %vm1304, %v1470, 0
      %v1675 = vsel %vm1304, %v1472, 0
      %v1678 = vsel %vm1304, %v1474, 0
      %v1681 = vsel %vm1304, %v1476, 0
      %v1684 = vsel %vm1304, %v1478, 0
      %v1687 = vsel %vm1304, %v1480, 0
      %v1690 = vsel %vm1304, %v1482, 0
      %v1693 = vsel %vm1304, %v1484, 0
      %v1696 = vsel %vm1304, %v1486, 0
      %v1699 = vsel %vm1304, %v1488, 0
      %v1702 = vsel %vm1304, %v1490, 0
      %v1705 = vsel %vm1304, %v1492, 0
      %v1708 = vsel %vm1304, %v1494, 0
      %v1711 = vsel %vm1304, %v1496, 0
      %1713 = vmatpush.msra.mxu0 0.0
      %1714 = vmatpush.msra.mxu0 0.0
      %1715 = vmatpush.msra.mxu0 0.0
      %1716 = vmatpush.msra.mxu0 0.0
      %1717 = vmatpush.msra.mxu0 0.0
      %1718 = vmatpush.msra.mxu0 0.0
      %1719 = vmatpush.msra.mxu0 0.0
      %1720 = vmatpush.msra.mxu0 0.0
      %1721 = vmatpush.msra.mxu0 %v1608
      %1722 = vmatpush.msra.mxu0 %v1606
      %1723 = vmatpush.msra.mxu0 %v1604
      %1724 = vmatpush.msra.mxu0 %v1602
      %1725 = vmatpush.msra.mxu0 %v1600
      %1726 = vmatpush.msra.mxu0 %v1598
      %1727 = vmatpush.msra.mxu0 %v1596
      %1728 = vmatpush.msra.mxu0 %v1594
      %1729 = vmatmul.f32.gmra.mxu0 %v1618
      %v1730 = vpop.f32.mrf.mxu0
      %v1731 = vadd.f32 0.0, %v1730
      %1732 = vmatmul.f32.gmra.mxu0 %v1621
      %v1733 = vpop.f32.mrf.mxu0
      %v1734 = vadd.f32 0.0, %v1733
      %1735 = vmatmul.f32.gmra.mxu0 %v1624
      %v1736 = vpop.f32.mrf.mxu0
      %v1737 = vadd.f32 0.0, %v1736
      %1738 = vmatmul.f32.gmra.mxu0 %v1627
      %v1739 = vpop.f32.mrf.mxu0
      %v1740 = vadd.f32 0.0, %v1739
      %1741 = vmatmul.f32.gmra.mxu0 %v1630
      %v1742 = vpop.f32.mrf.mxu0
      %v1743 = vadd.f32 0.0, %v1742
      %1744 = vmatmul.f32.gmra.mxu0 %v1633
      %v1745 = vpop.f32.mrf.mxu0
      %v1746 = vadd.f32 0.0, %v1745
      %1747 = vmatmul.f32.gmra.mxu0 %v1636
      %v1748 = vpop.f32.mrf.mxu0
      %v1749 = vadd.f32 0.0, %v1748
      %1750 = vmatmul.f32.gmra.mxu0 %v1639
      %v1751 = vpop.f32.mrf.mxu0
      %v1752 = vadd.f32 0.0, %v1751
      %1753 = vmatmul.f32.gmra.mxu0 %v1642
      %v1754 = vpop.f32.mrf.mxu0
      %v1755 = vadd.f32 0.0, %v1754
      %1756 = vmatmul.f32.gmra.mxu0 %v1645
      %v1757 = vpop.f32.mrf.mxu0
      %v1758 = vadd.f32 0.0, %v1757
      %1759 = vmatmul.f32.gmra.mxu0 %v1648
      %v1760 = vpop.f32.mrf.mxu0
      %v1761 = vadd.f32 0.0, %v1760
      %1762 = vmatmul.f32.gmra.mxu0 %v1651
      %v1763 = vpop.f32.mrf.mxu0
      %v1764 = vadd.f32 0.0, %v1763
      %1765 = vmatmul.f32.gmra.mxu0 %v1654
      %v1766 = vpop.f32.mrf.mxu0
      %v1767 = vadd.f32 0.0, %v1766
      %1768 = vmatmul.f32.gmra.mxu0 %v1657
      %v1769 = vpop.f32.mrf.mxu0
      %v1770 = vadd.f32 0.0, %v1769
      %1771 = vmatmul.f32.gmra.mxu0 %v1660
      %v1772 = vpop.f32.mrf.mxu0
      %v1773 = vadd.f32 0.0, %v1772
      %1774 = vmatmul.f32.gmra.mxu0 %v1663
      %v1775 = vpop.f32.mrf.mxu0
      %v1776 = vadd.f32 0.0, %v1775
      %1777 = vmatmul.f32.gmra.mxu0 %v1666
      %v1778 = vpop.f32.mrf.mxu0
      %v1779 = vadd.f32 0.0, %v1778
      %1780 = vmatmul.f32.gmra.mxu0 %v1669
      %v1781 = vpop.f32.mrf.mxu0
      %v1782 = vadd.f32 0.0, %v1781
      %1783 = vmatmul.f32.gmra.mxu0 %v1672
      %v1784 = vpop.f32.mrf.mxu0
      %v1785 = vadd.f32 0.0, %v1784
      %1786 = vmatmul.f32.gmra.mxu0 %v1675
      %v1787 = vpop.f32.mrf.mxu0
      %v1788 = vadd.f32 0.0, %v1787
      %1789 = vmatmul.f32.gmra.mxu0 %v1678
      %v1790 = vpop.f32.mrf.mxu0
      %v1791 = vadd.f32 0.0, %v1790
      %1792 = vmatmul.f32.gmra.mxu0 %v1681
      %v1793 = vpop.f32.mrf.mxu0
      %v1794 = vadd.f32 0.0, %v1793
      %1795 = vmatmul.f32.gmra.mxu0 %v1684
      %v1796 = vpop.f32.mrf.mxu0
      %v1797 = vadd.f32 0.0, %v1796
      %1798 = vmatmul.f32.gmra.mxu0 %v1687
      %v1799 = vpop.f32.mrf.mxu0
      %v1800 = vadd.f32 0.0, %v1799
      %1801 = vmatmul.f32.gmra.mxu0 %v1690
      %v1802 = vpop.f32.mrf.mxu0
      %v1803 = vadd.f32 0.0, %v1802
      %1804 = vmatmul.f32.gmra.mxu0 %v1693
      %v1805 = vpop.f32.mrf.mxu0
      %v1806 = vadd.f32 0.0, %v1805
      %1807 = vmatmul.f32.gmra.mxu0 %v1696
      %v1808 = vpop.f32.mrf.mxu0
      %v1809 = vadd.f32 0.0, %v1808
      %1810 = vmatmul.f32.gmra.mxu0 %v1699
      %v1811 = vpop.f32.mrf.mxu0
      %v1812 = vadd.f32 0.0, %v1811
      %1813 = vmatmul.f32.gmra.mxu0 %v1702
      %v1814 = vpop.f32.mrf.mxu0
      %v1815 = vadd.f32 0.0, %v1814
      %1816 = vmatmul.f32.gmra.mxu0 %v1705
      %v1817 = vpop.f32.mrf.mxu0
      %v1818 = vadd.f32 0.0, %v1817
      %1819 = vmatmul.f32.gmra.mxu0 %v1708
      %v1820 = vpop.f32.mrf.mxu0
      %v1821 = vadd.f32 0.0, %v1820
      %1822 = vmatmul.f32.gmra.mxu0 %v1711
      %v1823 = vpop.f32.mrf.mxu0
      %v1824 = vadd.f32 0.0, %v1823
      %1825 = vdwg.mxu0
      %v1826 = vrcp.pop %v1499
      %v1827 = vrcp.pop %v1502
      %v1828 = vrcp.pop %v1505
      %v1829 = vrcp.pop %v1508
      %v1830 = vrcp.pop %v1511
      %v1831 = vrcp.pop %v1514
      %v1832 = vrcp.pop %v1517
      %v1833 = vrcp.pop %v1520
      %v1834 = vrcp.pop %v1523
      %v1835 = vrcp.pop %v1526
      %v1836 = vrcp.pop %v1529
      %v1837 = vrcp.pop %v1532
      %v1838 = vrcp.pop %v1535
      %v1839 = vrcp.pop %v1538
      %v1840 = vrcp.pop %v1541
      %v1841 = vrcp.pop %v1544
      %v1842 = vrcp.pop %v1547
      %v1843 = vrcp.pop %v1550
      %v1844 = vrcp.pop %v1553
      %v1845 = vrcp.pop %v1556
      %v1846 = vrcp.pop %v1559
      %v1847 = vrcp.pop %v1562
      %v1848 = vrcp.pop %v1565
      %v1849 = vrcp.pop %v1568
      %v1850 = vrcp.pop %v1571
      %v1851 = vrcp.pop %v1574
      %v1852 = vrcp.pop %v1577
      %v1853 = vrcp.pop %v1580
      %v1854 = vrcp.pop %v1583
      %v1855 = vrcp.pop %v1586
      %v1856 = vrcp.pop %v1589
      %v1857 = vrcp.pop %v1592
      %v1858 = vmul.f32 %v1731, %v1826
      %v1859 = vmul.f32 %v1734, %v1827
      %v1860 = vmul.f32 %v1737, %v1828
      %v1861 = vmul.f32 %v1740, %v1829
      %v1862 = vmul.f32 %v1743, %v1830
      %v1863 = vmul.f32 %v1746, %v1831
      %v1864 = vmul.f32 %v1749, %v1832
      %v1865 = vmul.f32 %v1752, %v1833
      %v1866 = vmul.f32 %v1755, %v1834
      %v1867 = vmul.f32 %v1758, %v1835
      %v1868 = vmul.f32 %v1761, %v1836
      %v1869 = vmul.f32 %v1764, %v1837
      %v1870 = vmul.f32 %v1767, %v1838
      %v1871 = vmul.f32 %v1770, %v1839
      %v1872 = vmul.f32 %v1773, %v1840
      %v1873 = vmul.f32 %v1776, %v1841
      %v1874 = vmul.f32 %v1779, %v1842
      %v1875 = vmul.f32 %v1782, %v1843
      %v1876 = vmul.f32 %v1785, %v1844
      %v1877 = vmul.f32 %v1788, %v1845
      %v1878 = vmul.f32 %v1791, %v1846
      %v1879 = vmul.f32 %v1794, %v1847
      %v1880 = vmul.f32 %v1797, %v1848
      %v1881 = vmul.f32 %v1800, %v1849
      %v1882 = vmul.f32 %v1803, %v1850
      %v1883 = vmul.f32 %v1806, %v1851
      %v1884 = vmul.f32 %v1809, %v1852
      %v1885 = vmul.f32 %v1812, %v1853
      %v1886 = vmul.f32 %v1815, %v1854
      %v1887 = vmul.f32 %v1818, %v1855
      %v1888 = vmul.f32 %v1821, %v1856
      %v1889 = vmul.f32 %v1824, %v1857
      %1890 = vrot.lane.b32.xlu0 %v597, 120
      %v1891 = vpop.permute.xlu0 %1890
      %1892 = vrot.lane.b32.xlu0 %v600, 120
      %v1893 = vpop.permute.xlu0 %1892
      %1894 = vrot.lane.b32.xlu0 %v603, 120
      %v1895 = vpop.permute.xlu0 %1894
      %1896 = vrot.lane.b32.xlu0 %v606, 120
      %v1897 = vpop.permute.xlu0 %1896
      %1898 = vrot.lane.b32.xlu0 %v609, 120
      %v1899 = vpop.permute.xlu0 %1898
      %1900 = vrot.lane.b32.xlu0 %v612, 120
      %v1901 = vpop.permute.xlu0 %1900
      %1902 = vrot.lane.b32.xlu0 %v615, 120
      %v1903 = vpop.permute.xlu0 %1902
      %1904 = vrot.lane.b32.xlu0 %v618, 120
      %v1905 = vpop.permute.xlu0 %1904
      %1906 = vrot.lane.b32.xlu0 %v621, 120
      %v1907 = vpop.permute.xlu0 %1906
      %1908 = vrot.lane.b32.xlu0 %v624, 120
      %v1909 = vpop.permute.xlu0 %1908
      %1910 = vrot.lane.b32.xlu0 %v627, 120
      %v1911 = vpop.permute.xlu0 %1910
      %1912 = vrot.lane.b32.xlu0 %v630, 120
      %v1913 = vpop.permute.xlu0 %1912
      %1914 = vrot.lane.b32.xlu0 %v633, 120
      %v1915 = vpop.permute.xlu0 %1914
      %1916 = vrot.lane.b32.xlu0 %v636, 120
      %v1917 = vpop.permute.xlu0 %1916
      %1918 = vrot.lane.b32.xlu0 %v639, 120
      %v1919 = vpop.permute.xlu0 %1918
      %1920 = vrot.lane.b32.xlu0 %v642, 120
      %v1921 = vpop.permute.xlu0 %1920
      %1922 = vrot.lane.b32.xlu0 %v645, 120
      %v1923 = vpop.permute.xlu0 %1922
      %1924 = vrot.lane.b32.xlu0 %v648, 120
      %v1925 = vpop.permute.xlu0 %1924
      %1926 = vrot.lane.b32.xlu0 %v651, 120
      %v1927 = vpop.permute.xlu0 %1926
      %1928 = vrot.lane.b32.xlu0 %v654, 120
      %v1929 = vpop.permute.xlu0 %1928
      %1930 = vrot.lane.b32.xlu0 %v657, 120
      %v1931 = vpop.permute.xlu0 %1930
      %1932 = vrot.lane.b32.xlu0 %v660, 120
      %v1933 = vpop.permute.xlu0 %1932
      %1934 = vrot.lane.b32.xlu0 %v663, 120
      %v1935 = vpop.permute.xlu0 %1934
      %1936 = vrot.lane.b32.xlu0 %v666, 120
      %v1937 = vpop.permute.xlu0 %1936
      %1938 = vrot.lane.b32.xlu0 %v669, 120
      %v1939 = vpop.permute.xlu0 %1938
      %1940 = vrot.lane.b32.xlu0 %v672, 120
      %v1941 = vpop.permute.xlu0 %1940
      %1942 = vrot.lane.b32.xlu0 %v675, 120
      %v1943 = vpop.permute.xlu0 %1942
      %1944 = vrot.lane.b32.xlu0 %v678, 120
      %v1945 = vpop.permute.xlu0 %1944
      %1946 = vrot.lane.b32.xlu0 %v681, 120
      %v1947 = vpop.permute.xlu0 %1946
      %1948 = vrot.lane.b32.xlu0 %v684, 120
      %v1949 = vpop.permute.xlu0 %1948
      %1950 = vrot.lane.b32.xlu0 %v687, 120
      %v1951 = vpop.permute.xlu0 %1950
      %1952 = vrot.lane.b32.xlu0 %v690, 120
      %v1953 = vpop.permute.xlu0 %1952
      %1954 = vrot.lane.b32.xlu0 %v1010, 120
      %v1955 = vpop.permute.xlu0 %1954
      %1956 = vrot.lane.b32.xlu0 %v1013, 120
      %v1957 = vpop.permute.xlu0 %1956
      %1958 = vrot.lane.b32.xlu0 %v1016, 120
      %v1959 = vpop.permute.xlu0 %1958
      %1960 = vrot.lane.b32.xlu0 %v1019, 120
      %v1961 = vpop.permute.xlu0 %1960
      %1962 = vrot.lane.b32.xlu0 %v1022, 120
      %v1963 = vpop.permute.xlu0 %1962
      %1964 = vrot.lane.b32.xlu0 %v1025, 120
      %v1965 = vpop.permute.xlu0 %1964
      %1966 = vrot.lane.b32.xlu0 %v1028, 120
      %v1967 = vpop.permute.xlu0 %1966
      %1968 = vrot.lane.b32.xlu0 %v1031, 120
      %v1969 = vpop.permute.xlu0 %1968
      %v1970 = vsel %vm1038, %v1891, 0
      %v1972 = vsel %vm1038, %v1893, 0
      %v1974 = vsel %vm1038, %v1895, 0
      %v1976 = vsel %vm1038, %v1897, 0
      %v1978 = vsel %vm1038, %v1899, 0
      %v1980 = vsel %vm1038, %v1901, 0
      %v1982 = vsel %vm1038, %v1903, 0
      %v1984 = vsel %vm1038, %v1905, 0
      %v1986 = vsel %vm1038, %v1907, 0
      %v1988 = vsel %vm1038, %v1909, 0
      %v1990 = vsel %vm1038, %v1911, 0
      %v1992 = vsel %vm1038, %v1913, 0
      %v1994 = vsel %vm1038, %v1915, 0
      %v1996 = vsel %vm1038, %v1917, 0
      %v1998 = vsel %vm1038, %v1919, 0
      %v2000 = vsel %vm1038, %v1921, 0
      %v2002 = vsel %vm1038, %v1923, 0
      %v2004 = vsel %vm1038, %v1925, 0
      %v2006 = vsel %vm1038, %v1927, 0
      %v2008 = vsel %vm1038, %v1929, 0
      %v2010 = vsel %vm1038, %v1931, 0
      %v2012 = vsel %vm1038, %v1933, 0
      %v2014 = vsel %vm1038, %v1935, 0
      %v2016 = vsel %vm1038, %v1937, 0
      %v2018 = vsel %vm1038, %v1939, 0
      %v2020 = vsel %vm1038, %v1941, 0
      %v2022 = vsel %vm1038, %v1943, 0
      %v2024 = vsel %vm1038, %v1945, 0
      %v2026 = vsel %vm1038, %v1947, 0
      %v2028 = vsel %vm1038, %v1949, 0
      %v2030 = vsel %vm1038, %v1951, 0
      %v2032 = vsel %vm1038, %v1953, 0
      %v2034 = vsel %vm1038, %v1955, 0
      %v2036 = vsel %vm1038, %v1957, 0
      %v2038 = vsel %vm1038, %v1959, 0
      %v2040 = vsel %vm1038, %v1961, 0
      %v2042 = vsel %vm1038, %v1963, 0
      %v2044 = vsel %vm1038, %v1965, 0
      %v2046 = vsel %vm1038, %v1967, 0
      %v2048 = vsel %vm1038, %v1969, 0
      %2050 = vmatpush.xpose.msra.mxu0 0.0
      %2051 = vmatpush.xpose.msra.mxu0 0.0
      %2052 = vmatpush.xpose.msra.mxu0 0.0
      %2053 = vmatpush.xpose.msra.mxu0 0.0
      %2054 = vmatpush.xpose.msra.mxu0 0.0
      %2055 = vmatpush.xpose.msra.mxu0 0.0
      %2056 = vmatpush.xpose.msra.mxu0 0.0
      %2057 = vmatpush.xpose.msra.mxu0 0.0
      %2058 = vmatpush.xpose.msra.mxu0 %v2048
      %2059 = vmatpush.xpose.msra.mxu0 %v2046
      %2060 = vmatpush.xpose.msra.mxu0 %v2044
      %2061 = vmatpush.xpose.msra.mxu0 %v2042
      %2062 = vmatpush.xpose.msra.mxu0 %v2040
      %2063 = vmatpush.xpose.msra.mxu0 %v2038
      %2064 = vmatpush.xpose.msra.mxu0 %v2036
      %2065 = vmatpush.xpose.msra.mxu0 %v2034
      %2066 = vmatmul.f32.gmra.mxu0 %v1970
      %v2067 = vpop.f32.mrf.mxu0
      %v2068 = vadd.f32 0.0, %v2067
      %2069 = vmatmul.f32.gmra.mxu0 %v1972
      %v2070 = vpop.f32.mrf.mxu0
      %v2071 = vadd.f32 0.0, %v2070
      %2072 = vmatmul.f32.gmra.mxu0 %v1974
      %v2073 = vpop.f32.mrf.mxu0
      %v2074 = vadd.f32 0.0, %v2073
      %2075 = vmatmul.f32.gmra.mxu0 %v1976
      %v2076 = vpop.f32.mrf.mxu0
      %v2077 = vadd.f32 0.0, %v2076
      %2078 = vmatmul.f32.gmra.mxu0 %v1978
      %v2079 = vpop.f32.mrf.mxu0
      %v2080 = vadd.f32 0.0, %v2079
      %2081 = vmatmul.f32.gmra.mxu0 %v1980
      %v2082 = vpop.f32.mrf.mxu0
      %v2083 = vadd.f32 0.0, %v2082
      %2084 = vmatmul.f32.gmra.mxu0 %v1982
      %v2085 = vpop.f32.mrf.mxu0
      %v2086 = vadd.f32 0.0, %v2085
      %2087 = vmatmul.f32.gmra.mxu0 %v1984
      %v2088 = vpop.f32.mrf.mxu0
      %v2089 = vadd.f32 0.0, %v2088
      %2090 = vmatmul.f32.gmra.mxu0 %v1986
      %v2091 = vpop.f32.mrf.mxu0
      %v2092 = vadd.f32 0.0, %v2091
      %2093 = vmatmul.f32.gmra.mxu0 %v1988
      %v2094 = vpop.f32.mrf.mxu0
      %v2095 = vadd.f32 0.0, %v2094
      %2096 = vmatmul.f32.gmra.mxu0 %v1990
      %v2097 = vpop.f32.mrf.mxu0
      %v2098 = vadd.f32 0.0, %v2097
      %2099 = vmatmul.f32.gmra.mxu0 %v1992
      %v2100 = vpop.f32.mrf.mxu0
      %v2101 = vadd.f32 0.0, %v2100
      %2102 = vmatmul.f32.gmra.mxu0 %v1994
      %v2103 = vpop.f32.mrf.mxu0
      %v2104 = vadd.f32 0.0, %v2103
      %2105 = vmatmul.f32.gmra.mxu0 %v1996
      %v2106 = vpop.f32.mrf.mxu0
      %v2107 = vadd.f32 0.0, %v2106
      %2108 = vmatmul.f32.gmra.mxu0 %v1998
      %v2109 = vpop.f32.mrf.mxu0
      %v2110 = vadd.f32 0.0, %v2109
      %2111 = vmatmul.f32.gmra.mxu0 %v2000
      %v2112 = vpop.f32.mrf.mxu0
      %v2113 = vadd.f32 0.0, %v2112
      %2114 = vmatmul.f32.gmra.mxu0 %v2002
      %v2115 = vpop.f32.mrf.mxu0
      %v2116 = vadd.f32 0.0, %v2115
      %2117 = vmatmul.f32.gmra.mxu0 %v2004
      %v2118 = vpop.f32.mrf.mxu0
      %v2119 = vadd.f32 0.0, %v2118
      %2120 = vmatmul.f32.gmra.mxu0 %v2006
      %v2121 = vpop.f32.mrf.mxu0
      %v2122 = vadd.f32 0.0, %v2121
      %2123 = vmatmul.f32.gmra.mxu0 %v2008
      %v2124 = vpop.f32.mrf.mxu0
      %v2125 = vadd.f32 0.0, %v2124
      %2126 = vmatmul.f32.gmra.mxu0 %v2010
      %v2127 = vpop.f32.mrf.mxu0
      %v2128 = vadd.f32 0.0, %v2127
      %2129 = vmatmul.f32.gmra.mxu0 %v2012
      %v2130 = vpop.f32.mrf.mxu0
      %v2131 = vadd.f32 0.0, %v2130
      %2132 = vmatmul.f32.gmra.mxu0 %v2014
      %v2133 = vpop.f32.mrf.mxu0
      %v2134 = vadd.f32 0.0, %v2133
      %2135 = vmatmul.f32.gmra.mxu0 %v2016
      %v2136 = vpop.f32.mrf.mxu0
      %v2137 = vadd.f32 0.0, %v2136
      %2138 = vmatmul.f32.gmra.mxu0 %v2018
      %v2139 = vpop.f32.mrf.mxu0
      %v2140 = vadd.f32 0.0, %v2139
      %2141 = vmatmul.f32.gmra.mxu0 %v2020
      %v2142 = vpop.f32.mrf.mxu0
      %v2143 = vadd.f32 0.0, %v2142
      %2144 = vmatmul.f32.gmra.mxu0 %v2022
      %v2145 = vpop.f32.mrf.mxu0
      %v2146 = vadd.f32 0.0, %v2145
      %2147 = vmatmul.f32.gmra.mxu0 %v2024
      %v2148 = vpop.f32.mrf.mxu0
      %v2149 = vadd.f32 0.0, %v2148
      %2150 = vmatmul.f32.gmra.mxu0 %v2026
      %v2151 = vpop.f32.mrf.mxu0
      %v2152 = vadd.f32 0.0, %v2151
      %2153 = vmatmul.f32.gmra.mxu0 %v2028
      %v2154 = vpop.f32.mrf.mxu0
      %v2155 = vadd.f32 0.0, %v2154
      %2156 = vmatmul.f32.gmra.mxu0 %v2030
      %v2157 = vpop.f32.mrf.mxu0
      %v2158 = vadd.f32 0.0, %v2157
      %2159 = vmatmul.f32.gmra.mxu0 %v2032
      %v2160 = vpop.f32.mrf.mxu0
      %v2161 = vadd.f32 0.0, %v2160
      %2162 = vdwg.mxu0
      %v2163 = vmul.f32 %v2068, 0.35355338
      %v2164 = vmul.f32 %v2071, 0.35355338
      %v2165 = vmul.f32 %v2074, 0.35355338
      %v2166 = vmul.f32 %v2077, 0.35355338
      %v2167 = vmul.f32 %v2080, 0.35355338
      %v2168 = vmul.f32 %v2083, 0.35355338
      %v2169 = vmul.f32 %v2086, 0.35355338
      %v2170 = vmul.f32 %v2089, 0.35355338
      %v2171 = vmul.f32 %v2092, 0.35355338
      %v2172 = vmul.f32 %v2095, 0.35355338
      %v2173 = vmul.f32 %v2098, 0.35355338
      %v2174 = vmul.f32 %v2101, 0.35355338
      %v2175 = vmul.f32 %v2104, 0.35355338
      %v2176 = vmul.f32 %v2107, 0.35355338
      %v2177 = vmul.f32 %v2110, 0.35355338
      %v2178 = vmul.f32 %v2113, 0.35355338
      %v2179 = vmul.f32 %v2116, 0.35355338
      %v2180 = vmul.f32 %v2119, 0.35355338
      %v2181 = vmul.f32 %v2122, 0.35355338
      %v2182 = vmul.f32 %v2125, 0.35355338
      %v2183 = vmul.f32 %v2128, 0.35355338
      %v2184 = vmul.f32 %v2131, 0.35355338
      %v2185 = vmul.f32 %v2134, 0.35355338
      %v2186 = vmul.f32 %v2137, 0.35355338
      %v2187 = vmul.f32 %v2140, 0.35355338
      %v2188 = vmul.f32 %v2143, 0.35355338
      %v2189 = vmul.f32 %v2146, 0.35355338
      %v2190 = vmul.f32 %v2149, 0.35355338
      %v2191 = vmul.f32 %v2152, 0.35355338
      %v2192 = vmul.f32 %v2155, 0.35355338
      %v2193 = vmul.f32 %v2158, 0.35355338
      %v2194 = vmul.f32 %v2161, 0.35355338
      %v2195 = vsel %vm1304, %v2163, -inf
      %2196 = vmax.xlane.f32.xlu0 %v2195
      %v2197 = vpop.xlane.xlu0 %2196
      %v2198 = vsel %vm1304, %v2164, -inf
      %2199 = vmax.xlane.f32.xlu0 %v2198
      %v2200 = vpop.xlane.xlu0 %2199
      %v2201 = vsel %vm1304, %v2165, -inf
      %2202 = vmax.xlane.f32.xlu0 %v2201
      %v2203 = vpop.xlane.xlu0 %2202
      %v2204 = vsel %vm1304, %v2166, -inf
      %2205 = vmax.xlane.f32.xlu0 %v2204
      %v2206 = vpop.xlane.xlu0 %2205
      %v2207 = vsel %vm1304, %v2167, -inf
      %2208 = vmax.xlane.f32.xlu0 %v2207
      %v2209 = vpop.xlane.xlu0 %2208
      %v2210 = vsel %vm1304, %v2168, -inf
      %2211 = vmax.xlane.f32.xlu0 %v2210
      %v2212 = vpop.xlane.xlu0 %2211
      %v2213 = vsel %vm1304, %v2169, -inf
      %2214 = vmax.xlane.f32.xlu0 %v2213
      %v2215 = vpop.xlane.xlu0 %2214
      %v2216 = vsel %vm1304, %v2170, -inf
      %2217 = vmax.xlane.f32.xlu0 %v2216
      %v2218 = vpop.xlane.xlu0 %2217
      %v2219 = vsel %vm1304, %v2171, -inf
      %2220 = vmax.xlane.f32.xlu0 %v2219
      %v2221 = vpop.xlane.xlu0 %2220
      %v2222 = vsel %vm1304, %v2172, -inf
      %2223 = vmax.xlane.f32.xlu0 %v2222
      %v2224 = vpop.xlane.xlu0 %2223
      %v2225 = vsel %vm1304, %v2173, -inf
      %2226 = vmax.xlane.f32.xlu0 %v2225
      %v2227 = vpop.xlane.xlu0 %2226
      %v2228 = vsel %vm1304, %v2174, -inf
      %2229 = vmax.xlane.f32.xlu0 %v2228
      %v2230 = vpop.xlane.xlu0 %2229
      %v2231 = vsel %vm1304, %v2175, -inf
      %2232 = vmax.xlane.f32.xlu0 %v2231
      %v2233 = vpop.xlane.xlu0 %2232
      %v2234 = vsel %vm1304, %v2176, -inf
      %2235 = vmax.xlane.f32.xlu0 %v2234
      %v2236 = vpop.xlane.xlu0 %2235
      %v2237 = vsel %vm1304, %v2177, -inf
      %2238 = vmax.xlane.f32.xlu0 %v2237
      %v2239 = vpop.xlane.xlu0 %2238
      %v2240 = vsel %vm1304, %v2178, -inf
      %2241 = vmax.xlane.f32.xlu0 %v2240
      %v2242 = vpop.xlane.xlu0 %2241
      %v2243 = vsel %vm1304, %v2179, -inf
      %2244 = vmax.xlane.f32.xlu0 %v2243
      %v2245 = vpop.xlane.xlu0 %2244
      %v2246 = vsel %vm1304, %v2180, -inf
      %2247 = vmax.xlane.f32.xlu0 %v2246
      %v2248 = vpop.xlane.xlu0 %2247
      %v2249 = vsel %vm1304, %v2181, -inf
      %2250 = vmax.xlane.f32.xlu0 %v2249
      %v2251 = vpop.xlane.xlu0 %2250
      %v2252 = vsel %vm1304, %v2182, -inf
      %2253 = vmax.xlane.f32.xlu0 %v2252
      %v2254 = vpop.xlane.xlu0 %2253
      %v2255 = vsel %vm1304, %v2183, -inf
      %2256 = vmax.xlane.f32.xlu0 %v2255
      %v2257 = vpop.xlane.xlu0 %2256
      %v2258 = vsel %vm1304, %v2184, -inf
      %2259 = vmax.xlane.f32.xlu0 %v2258
      %v2260 = vpop.xlane.xlu0 %2259
      %v2261 = vsel %vm1304, %v2185, -inf
      %2262 = vmax.xlane.f32.xlu0 %v2261
      %v2263 = vpop.xlane.xlu0 %2262
      %v2264 = vsel %vm1304, %v2186, -inf
      %2265 = vmax.xlane.f32.xlu0 %v2264
      %v2266 = vpop.xlane.xlu0 %2265
      %v2267 = vsel %vm1304, %v2187, -inf
      %2268 = vmax.xlane.f32.xlu0 %v2267
      %v2269 = vpop.xlane.xlu0 %2268
      %v2270 = vsel %vm1304, %v2188, -inf
      %2271 = vmax.xlane.f32.xlu0 %v2270
      %v2272 = vpop.xlane.xlu0 %2271
      %v2273 = vsel %vm1304, %v2189, -inf
      %2274 = vmax.xlane.f32.xlu0 %v2273
      %v2275 = vpop.xlane.xlu0 %2274
      %v2276 = vsel %vm1304, %v2190, -inf
      %2277 = vmax.xlane.f32.xlu0 %v2276
      %v2278 = vpop.xlane.xlu0 %2277
      %v2279 = vsel %vm1304, %v2191, -inf
      %2280 = vmax.xlane.f32.xlu0 %v2279
      %v2281 = vpop.xlane.xlu0 %2280
      %v2282 = vsel %vm1304, %v2192, -inf
      %2283 = vmax.xlane.f32.xlu0 %v2282
      %v2284 = vpop.xlane.xlu0 %2283
      %v2285 = vsel %vm1304, %v2193, -inf
      %2286 = vmax.xlane.f32.xlu0 %v2285
      %v2287 = vpop.xlane.xlu0 %2286
      %v2288 = vsel %vm1304, %v2194, -inf
      %2289 = vmax.xlane.f32.xlu0 %v2288
      %v2290 = vpop.xlane.xlu0 %2289
      %v2291 = vsub.f32 %v2163, %v2197
      %v2292 = vsub.f32 %v2164, %v2200
      %v2293 = vsub.f32 %v2165, %v2203
      %v2294 = vsub.f32 %v2166, %v2206
      %v2295 = vsub.f32 %v2167, %v2209
      %v2296 = vsub.f32 %v2168, %v2212
      %v2297 = vsub.f32 %v2169, %v2215
      %v2298 = vsub.f32 %v2170, %v2218
      %v2299 = vsub.f32 %v2171, %v2221
      %v2300 = vsub.f32 %v2172, %v2224
      %v2301 = vsub.f32 %v2173, %v2227
      %v2302 = vsub.f32 %v2174, %v2230
      %v2303 = vsub.f32 %v2175, %v2233
      %v2304 = vsub.f32 %v2176, %v2236
      %v2305 = vsub.f32 %v2177, %v2239
      %v2306 = vsub.f32 %v2178, %v2242
      %v2307 = vsub.f32 %v2179, %v2245
      %v2308 = vsub.f32 %v2180, %v2248
      %v2309 = vsub.f32 %v2181, %v2251
      %v2310 = vsub.f32 %v2182, %v2254
      %v2311 = vsub.f32 %v2183, %v2257
      %v2312 = vsub.f32 %v2184, %v2260
      %v2313 = vsub.f32 %v2185, %v2263
      %v2314 = vsub.f32 %v2186, %v2266
      %v2315 = vsub.f32 %v2187, %v2269
      %v2316 = vsub.f32 %v2188, %v2272
      %v2317 = vsub.f32 %v2189, %v2275
      %v2318 = vsub.f32 %v2190, %v2278
      %v2319 = vsub.f32 %v2191, %v2281
      %v2320 = vsub.f32 %v2192, %v2284
      %v2321 = vsub.f32 %v2193, %v2287
      %v2322 = vsub.f32 %v2194, %v2290
      %v2323 = vmul.f32 %v2291, 1.442695
      %v2324 = vpow.pop %v2323
      %v2325 = vmul.f32 %v2292, 1.442695
      %v2326 = vpow.pop %v2325
      %v2327 = vmul.f32 %v2293, 1.442695
      %v2328 = vpow.pop %v2327
      %v2329 = vmul.f32 %v2294, 1.442695
      %v2330 = vpow.pop %v2329
      %v2331 = vmul.f32 %v2295, 1.442695
      %v2332 = vpow.pop %v2331
      %v2333 = vmul.f32 %v2296, 1.442695
      %v2334 = vpow.pop %v2333
      %v2335 = vmul.f32 %v2297, 1.442695
      %v2336 = vpow.pop %v2335
      %v2337 = vmul.f32 %v2298, 1.442695
      %v2338 = vpow.pop %v2337
      %v2339 = vmul.f32 %v2299, 1.442695
      %v2340 = vpow.pop %v2339
      %v2341 = vmul.f32 %v2300, 1.442695
      %v2342 = vpow.pop %v2341
      %v2343 = vmul.f32 %v2301, 1.442695
      %v2344 = vpow.pop %v2343
      %v2345 = vmul.f32 %v2302, 1.442695
      %v2346 = vpow.pop %v2345
      %v2347 = vmul.f32 %v2303, 1.442695
      %v2348 = vpow.pop %v2347
      %v2349 = vmul.f32 %v2304, 1.442695
      %v2350 = vpow.pop %v2349
      %v2351 = vmul.f32 %v2305, 1.442695
      %v2352 = vpow.pop %v2351
      %v2353 = vmul.f32 %v2306, 1.442695
      %v2354 = vpow.pop %v2353
      %v2355 = vmul.f32 %v2307, 1.442695
      %v2356 = vpow.pop %v2355
      %v2357 = vmul.f32 %v2308, 1.442695
      %v2358 = vpow.pop %v2357
      %v2359 = vmul.f32 %v2309, 1.442695
      %v2360 = vpow.pop %v2359
      %v2361 = vmul.f32 %v2310, 1.442695
      %v2362 = vpow.pop %v2361
      %v2363 = vmul.f32 %v2311, 1.442695
      %v2364 = vpow.pop %v2363
      %v2365 = vmul.f32 %v2312, 1.442695
      %v2366 = vpow.pop %v2365
      %v2367 = vmul.f32 %v2313, 1.442695
      %v2368 = vpow.pop %v2367
      %v2369 = vmul.f32 %v2314, 1.442695
      %v2370 = vpow.pop %v2369
      %v2371 = vmul.f32 %v2315, 1.442695
      %v2372 = vpow.pop %v2371
      %v2373 = vmul.f32 %v2316, 1.442695
      %v2374 = vpow.pop %v2373
      %v2375 = vmul.f32 %v2317, 1.442695
      %v2376 = vpow.pop %v2375
      %v2377 = vmul.f32 %v2318, 1.442695
      %v2378 = vpow.pop %v2377
      %v2379 = vmul.f32 %v2319, 1.442695
      %v2380 = vpow.pop %v2379
      %v2381 = vmul.f32 %v2320, 1.442695
      %v2382 = vpow.pop %v2381
      %v2383 = vmul.f32 %v2321, 1.442695
      %v2384 = vpow.pop %v2383
      %v2385 = vmul.f32 %v2322, 1.442695
      %v2386 = vpow.pop %v2385
      %v2387 = vsel %vm1304, %v2324, 0.0
      %2388 = vadd.xlane.f32.xlu0 %v2387
      %v2389 = vpop.xlane.xlu0 %2388
      %v2390 = vsel %vm1304, %v2326, 0.0
      %2391 = vadd.xlane.f32.xlu0 %v2390
      %v2392 = vpop.xlane.xlu0 %2391
      %v2393 = vsel %vm1304, %v2328, 0.0
      %2394 = vadd.xlane.f32.xlu0 %v2393
      %v2395 = vpop.xlane.xlu0 %2394
      %v2396 = vsel %vm1304, %v2330, 0.0
      %2397 = vadd.xlane.f32.xlu0 %v2396
      %v2398 = vpop.xlane.xlu0 %2397
      %v2399 = vsel %vm1304, %v2332, 0.0
      %2400 = vadd.xlane.f32.xlu0 %v2399
      %v2401 = vpop.xlane.xlu0 %2400
      %v2402 = vsel %vm1304, %v2334, 0.0
      %2403 = vadd.xlane.f32.xlu0 %v2402
      %v2404 = vpop.xlane.xlu0 %2403
      %v2405 = vsel %vm1304, %v2336, 0.0
      %2406 = vadd.xlane.f32.xlu0 %v2405
      %v2407 = vpop.xlane.xlu0 %2406
      %v2408 = vsel %vm1304, %v2338, 0.0
      %2409 = vadd.xlane.f32.xlu0 %v2408
      %v2410 = vpop.xlane.xlu0 %2409
      %v2411 = vsel %vm1304, %v2340, 0.0
      %2412 = vadd.xlane.f32.xlu0 %v2411
      %v2413 = vpop.xlane.xlu0 %2412
      %v2414 = vsel %vm1304, %v2342, 0.0
      %2415 = vadd.xlane.f32.xlu0 %v2414
      %v2416 = vpop.xlane.xlu0 %2415
      %v2417 = vsel %vm1304, %v2344, 0.0
      %2418 = vadd.xlane.f32.xlu0 %v2417
      %v2419 = vpop.xlane.xlu0 %2418
      %v2420 = vsel %vm1304, %v2346, 0.0
      %2421 = vadd.xlane.f32.xlu0 %v2420
      %v2422 = vpop.xlane.xlu0 %2421
      %v2423 = vsel %vm1304, %v2348, 0.0
      %2424 = vadd.xlane.f32.xlu0 %v2423
      %v2425 = vpop.xlane.xlu0 %2424
      %v2426 = vsel %vm1304, %v2350, 0.0
      %2427 = vadd.xlane.f32.xlu0 %v2426
      %v2428 = vpop.xlane.xlu0 %2427
      %v2429 = vsel %vm1304, %v2352, 0.0
      %2430 = vadd.xlane.f32.xlu0 %v2429
      %v2431 = vpop.xlane.xlu0 %2430
      %v2432 = vsel %vm1304, %v2354, 0.0
      %2433 = vadd.xlane.f32.xlu0 %v2432
      %v2434 = vpop.xlane.xlu0 %2433
      %v2435 = vsel %vm1304, %v2356, 0.0
      %2436 = vadd.xlane.f32.xlu0 %v2435
      %v2437 = vpop.xlane.xlu0 %2436
      %v2438 = vsel %vm1304, %v2358, 0.0
      %2439 = vadd.xlane.f32.xlu0 %v2438
      %v2440 = vpop.xlane.xlu0 %2439
      %v2441 = vsel %vm1304, %v2360, 0.0
      %2442 = vadd.xlane.f32.xlu0 %v2441
      %v2443 = vpop.xlane.xlu0 %2442
      %v2444 = vsel %vm1304, %v2362, 0.0
      %2445 = vadd.xlane.f32.xlu0 %v2444
      %v2446 = vpop.xlane.xlu0 %2445
      %v2447 = vsel %vm1304, %v2364, 0.0
      %2448 = vadd.xlane.f32.xlu0 %v2447
      %v2449 = vpop.xlane.xlu0 %2448
      %v2450 = vsel %vm1304, %v2366, 0.0
      %2451 = vadd.xlane.f32.xlu0 %v2450
      %v2452 = vpop.xlane.xlu0 %2451
      %v2453 = vsel %vm1304, %v2368, 0.0
      %2454 = vadd.xlane.f32.xlu0 %v2453
      %v2455 = vpop.xlane.xlu0 %2454
      %v2456 = vsel %vm1304, %v2370, 0.0
      %2457 = vadd.xlane.f32.xlu0 %v2456
      %v2458 = vpop.xlane.xlu0 %2457
      %v2459 = vsel %vm1304, %v2372, 0.0
      %2460 = vadd.xlane.f32.xlu0 %v2459
      %v2461 = vpop.xlane.xlu0 %2460
      %v2462 = vsel %vm1304, %v2374, 0.0
      %2463 = vadd.xlane.f32.xlu0 %v2462
      %v2464 = vpop.xlane.xlu0 %2463
      %v2465 = vsel %vm1304, %v2376, 0.0
      %2466 = vadd.xlane.f32.xlu0 %v2465
      %v2467 = vpop.xlane.xlu0 %2466
      %v2468 = vsel %vm1304, %v2378, 0.0
      %2469 = vadd.xlane.f32.xlu0 %v2468
      %v2470 = vpop.xlane.xlu0 %2469
      %v2471 = vsel %vm1304, %v2380, 0.0
      %2472 = vadd.xlane.f32.xlu0 %v2471
      %v2473 = vpop.xlane.xlu0 %2472
      %v2474 = vsel %vm1304, %v2382, 0.0
      %2475 = vadd.xlane.f32.xlu0 %v2474
      %v2476 = vpop.xlane.xlu0 %2475
      %v2477 = vsel %vm1304, %v2384, 0.0
      %2478 = vadd.xlane.f32.xlu0 %v2477
      %v2479 = vpop.xlane.xlu0 %2478
      %v2480 = vsel %vm1304, %v2386, 0.0
      %2481 = vadd.xlane.f32.xlu0 %v2480
      %v2482 = vpop.xlane.xlu0 %2481
      %2483 = vrot.lane.b32.xlu0 %v1010, 88
      %v2484 = vpop.permute.xlu0 %2483
      %2485 = vrot.lane.b32.xlu0 %v1013, 88
      %v2486 = vpop.permute.xlu0 %2485
      %2487 = vrot.lane.b32.xlu0 %v1016, 88
      %v2488 = vpop.permute.xlu0 %2487
      %2489 = vrot.lane.b32.xlu0 %v1019, 88
      %v2490 = vpop.permute.xlu0 %2489
      %2491 = vrot.lane.b32.xlu0 %v1022, 88
      %v2492 = vpop.permute.xlu0 %2491
      %2493 = vrot.lane.b32.xlu0 %v1025, 88
      %v2494 = vpop.permute.xlu0 %2493
      %2495 = vrot.lane.b32.xlu0 %v1028, 88
      %v2496 = vpop.permute.xlu0 %2495
      %2497 = vrot.lane.b32.xlu0 %v1031, 88
      %v2498 = vpop.permute.xlu0 %2497
      %v2508 = vsel %vm1304, %v2324, 0
      %v2511 = vsel %vm1304, %v2326, 0
      %v2514 = vsel %vm1304, %v2328, 0
      %v2517 = vsel %vm1304, %v2330, 0
      %v2520 = vsel %vm1304, %v2332, 0
      %v2523 = vsel %vm1304, %v2334, 0
      %v2526 = vsel %vm1304, %v2336, 0
      %v2529 = vsel %vm1304, %v2338, 0
      %v2532 = vsel %vm1304, %v2340, 0
      %v2535 = vsel %vm1304, %v2342, 0
      %v2538 = vsel %vm1304, %v2344, 0
      %v2541 = vsel %vm1304, %v2346, 0
      %v2544 = vsel %vm1304, %v2348, 0
      %v2547 = vsel %vm1304, %v2350, 0
      %v2550 = vsel %vm1304, %v2352, 0
      %v2553 = vsel %vm1304, %v2354, 0
      %v2556 = vsel %vm1304, %v2356, 0
      %v2559 = vsel %vm1304, %v2358, 0
      %v2562 = vsel %vm1304, %v2360, 0
      %v2565 = vsel %vm1304, %v2362, 0
      %v2568 = vsel %vm1304, %v2364, 0
      %v2571 = vsel %vm1304, %v2366, 0
      %v2574 = vsel %vm1304, %v2368, 0
      %v2577 = vsel %vm1304, %v2370, 0
      %v2580 = vsel %vm1304, %v2372, 0
      %v2583 = vsel %vm1304, %v2374, 0
      %v2586 = vsel %vm1304, %v2376, 0
      %v2589 = vsel %vm1304, %v2378, 0
      %v2592 = vsel %vm1304, %v2380, 0
      %v2595 = vsel %vm1304, %v2382, 0
      %v2598 = vsel %vm1304, %v2384, 0
      %v2601 = vsel %vm1304, %v2386, 0
      %2603 = vmatpush.msra.mxu0 0.0
      %2604 = vmatpush.msra.mxu0 0.0
      %2605 = vmatpush.msra.mxu0 0.0
      %2606 = vmatpush.msra.mxu0 0.0
      %2607 = vmatpush.msra.mxu0 0.0
      %2608 = vmatpush.msra.mxu0 0.0
      %2609 = vmatpush.msra.mxu0 0.0
      %2610 = vmatpush.msra.mxu0 0.0
      %2611 = vmatpush.msra.mxu0 %v2498
      %2612 = vmatpush.msra.mxu0 %v2496
      %2613 = vmatpush.msra.mxu0 %v2494
      %2614 = vmatpush.msra.mxu0 %v2492
      %2615 = vmatpush.msra.mxu0 %v2490
      %2616 = vmatpush.msra.mxu0 %v2488
      %2617 = vmatpush.msra.mxu0 %v2486
      %2618 = vmatpush.msra.mxu0 %v2484
      %2619 = vmatmul.f32.gmra.mxu0 %v2508
      %v2620 = vpop.f32.mrf.mxu0
      %v2621 = vadd.f32 0.0, %v2620
      %2622 = vmatmul.f32.gmra.mxu0 %v2511
      %v2623 = vpop.f32.mrf.mxu0
      %v2624 = vadd.f32 0.0, %v2623
      %2625 = vmatmul.f32.gmra.mxu0 %v2514
      %v2626 = vpop.f32.mrf.mxu0
      %v2627 = vadd.f32 0.0, %v2626
      %2628 = vmatmul.f32.gmra.mxu0 %v2517
      %v2629 = vpop.f32.mrf.mxu0
      %v2630 = vadd.f32 0.0, %v2629
      %2631 = vmatmul.f32.gmra.mxu0 %v2520
      %v2632 = vpop.f32.mrf.mxu0
      %v2633 = vadd.f32 0.0, %v2632
      %2634 = vmatmul.f32.gmra.mxu0 %v2523
      %v2635 = vpop.f32.mrf.mxu0
      %v2636 = vadd.f32 0.0, %v2635
      %2637 = vmatmul.f32.gmra.mxu0 %v2526
      %v2638 = vpop.f32.mrf.mxu0
      %v2639 = vadd.f32 0.0, %v2638
      %2640 = vmatmul.f32.gmra.mxu0 %v2529
      %v2641 = vpop.f32.mrf.mxu0
      %v2642 = vadd.f32 0.0, %v2641
      %2643 = vmatmul.f32.gmra.mxu0 %v2532
      %v2644 = vpop.f32.mrf.mxu0
      %v2645 = vadd.f32 0.0, %v2644
      %2646 = vmatmul.f32.gmra.mxu0 %v2535
      %v2647 = vpop.f32.mrf.mxu0
      %v2648 = vadd.f32 0.0, %v2647
      %2649 = vmatmul.f32.gmra.mxu0 %v2538
      %v2650 = vpop.f32.mrf.mxu0
      %v2651 = vadd.f32 0.0, %v2650
      %2652 = vmatmul.f32.gmra.mxu0 %v2541
      %v2653 = vpop.f32.mrf.mxu0
      %v2654 = vadd.f32 0.0, %v2653
      %2655 = vmatmul.f32.gmra.mxu0 %v2544
      %v2656 = vpop.f32.mrf.mxu0
      %v2657 = vadd.f32 0.0, %v2656
      %2658 = vmatmul.f32.gmra.mxu0 %v2547
      %v2659 = vpop.f32.mrf.mxu0
      %v2660 = vadd.f32 0.0, %v2659
      %2661 = vmatmul.f32.gmra.mxu0 %v2550
      %v2662 = vpop.f32.mrf.mxu0
      %v2663 = vadd.f32 0.0, %v2662
      %2664 = vmatmul.f32.gmra.mxu0 %v2553
      %v2665 = vpop.f32.mrf.mxu0
      %v2666 = vadd.f32 0.0, %v2665
      %2667 = vmatmul.f32.gmra.mxu0 %v2556
      %v2668 = vpop.f32.mrf.mxu0
      %v2669 = vadd.f32 0.0, %v2668
      %2670 = vmatmul.f32.gmra.mxu0 %v2559
      %v2671 = vpop.f32.mrf.mxu0
      %v2672 = vadd.f32 0.0, %v2671
      %2673 = vmatmul.f32.gmra.mxu0 %v2562
      %v2674 = vpop.f32.mrf.mxu0
      %v2675 = vadd.f32 0.0, %v2674
      %2676 = vmatmul.f32.gmra.mxu0 %v2565
      %v2677 = vpop.f32.mrf.mxu0
      %v2678 = vadd.f32 0.0, %v2677
      %2679 = vmatmul.f32.gmra.mxu0 %v2568
      %v2680 = vpop.f32.mrf.mxu0
      %v2681 = vadd.f32 0.0, %v2680
      %2682 = vmatmul.f32.gmra.mxu0 %v2571
      %v2683 = vpop.f32.mrf.mxu0
      %v2684 = vadd.f32 0.0, %v2683
      %2685 = vmatmul.f32.gmra.mxu0 %v2574
      %v2686 = vpop.f32.mrf.mxu0
      %v2687 = vadd.f32 0.0, %v2686
      %2688 = vmatmul.f32.gmra.mxu0 %v2577
      %v2689 = vpop.f32.mrf.mxu0
      %v2690 = vadd.f32 0.0, %v2689
      %2691 = vmatmul.f32.gmra.mxu0 %v2580
      %v2692 = vpop.f32.mrf.mxu0
      %v2693 = vadd.f32 0.0, %v2692
      %2694 = vmatmul.f32.gmra.mxu0 %v2583
      %v2695 = vpop.f32.mrf.mxu0
      %v2696 = vadd.f32 0.0, %v2695
      %2697 = vmatmul.f32.gmra.mxu0 %v2586
      %v2698 = vpop.f32.mrf.mxu0
      %v2699 = vadd.f32 0.0, %v2698
      %2700 = vmatmul.f32.gmra.mxu0 %v2589
      %v2701 = vpop.f32.mrf.mxu0
      %v2702 = vadd.f32 0.0, %v2701
      %2703 = vmatmul.f32.gmra.mxu0 %v2592
      %v2704 = vpop.f32.mrf.mxu0
      %v2705 = vadd.f32 0.0, %v2704
      %2706 = vmatmul.f32.gmra.mxu0 %v2595
      %v2707 = vpop.f32.mrf.mxu0
      %v2708 = vadd.f32 0.0, %v2707
      %2709 = vmatmul.f32.gmra.mxu0 %v2598
      %v2710 = vpop.f32.mrf.mxu0
      %v2711 = vadd.f32 0.0, %v2710
      %2712 = vmatmul.f32.gmra.mxu0 %v2601
      %v2713 = vpop.f32.mrf.mxu0
      %v2714 = vadd.f32 0.0, %v2713
      %2715 = vdwg.mxu0
      %v2716 = vrcp.pop %v2389
      %v2717 = vrcp.pop %v2392
      %v2718 = vrcp.pop %v2395
      %v2719 = vrcp.pop %v2398
      %v2720 = vrcp.pop %v2401
      %v2721 = vrcp.pop %v2404
      %v2722 = vrcp.pop %v2407
      %v2723 = vrcp.pop %v2410
      %v2724 = vrcp.pop %v2413
      %v2725 = vrcp.pop %v2416
      %v2726 = vrcp.pop %v2419
      %v2727 = vrcp.pop %v2422
      %v2728 = vrcp.pop %v2425
      %v2729 = vrcp.pop %v2428
      %v2730 = vrcp.pop %v2431
      %v2731 = vrcp.pop %v2434
      %v2732 = vrcp.pop %v2437
      %v2733 = vrcp.pop %v2440
      %v2734 = vrcp.pop %v2443
      %v2735 = vrcp.pop %v2446
      %v2736 = vrcp.pop %v2449
      %v2737 = vrcp.pop %v2452
      %v2738 = vrcp.pop %v2455
      %v2739 = vrcp.pop %v2458
      %v2740 = vrcp.pop %v2461
      %v2741 = vrcp.pop %v2464
      %v2742 = vrcp.pop %v2467
      %v2743 = vrcp.pop %v2470
      %v2744 = vrcp.pop %v2473
      %v2745 = vrcp.pop %v2476
      %v2746 = vrcp.pop %v2479
      %v2747 = vrcp.pop %v2482
      %v2748 = vmul.f32 %v2621, %v2716
      %v2749 = vmul.f32 %v2624, %v2717
      %v2750 = vmul.f32 %v2627, %v2718
      %v2751 = vmul.f32 %v2630, %v2719
      %v2752 = vmul.f32 %v2633, %v2720
      %v2753 = vmul.f32 %v2636, %v2721
      %v2754 = vmul.f32 %v2639, %v2722
      %v2755 = vmul.f32 %v2642, %v2723
      %v2756 = vmul.f32 %v2645, %v2724
      %v2757 = vmul.f32 %v2648, %v2725
      %v2758 = vmul.f32 %v2651, %v2726
      %v2759 = vmul.f32 %v2654, %v2727
      %v2760 = vmul.f32 %v2657, %v2728
      %v2761 = vmul.f32 %v2660, %v2729
      %v2762 = vmul.f32 %v2663, %v2730
      %v2763 = vmul.f32 %v2666, %v2731
      %v2764 = vmul.f32 %v2669, %v2732
      %v2765 = vmul.f32 %v2672, %v2733
      %v2766 = vmul.f32 %v2675, %v2734
      %v2767 = vmul.f32 %v2678, %v2735
      %v2768 = vmul.f32 %v2681, %v2736
      %v2769 = vmul.f32 %v2684, %v2737
      %v2770 = vmul.f32 %v2687, %v2738
      %v2771 = vmul.f32 %v2690, %v2739
      %v2772 = vmul.f32 %v2693, %v2740
      %v2773 = vmul.f32 %v2696, %v2741
      %v2774 = vmul.f32 %v2699, %v2742
      %v2775 = vmul.f32 %v2702, %v2743
      %v2776 = vmul.f32 %v2705, %v2744
      %v2777 = vmul.f32 %v2708, %v2745
      %v2778 = vmul.f32 %v2711, %v2746
      %v2779 = vmul.f32 %v2714, %v2747
      %v2781 = vsel %vm1038, %v2748, 0
      %v2784 = vsel %vm1038, %v2749, 0
      %v2787 = vsel %vm1038, %v2750, 0
      %v2790 = vsel %vm1038, %v2751, 0
      %v2793 = vsel %vm1038, %v2752, 0
      %v2796 = vsel %vm1038, %v2753, 0
      %v2799 = vsel %vm1038, %v2754, 0
      %v2802 = vsel %vm1038, %v2755, 0
      %v2805 = vsel %vm1038, %v2756, 0
      %v2808 = vsel %vm1038, %v2757, 0
      %v2811 = vsel %vm1038, %v2758, 0
      %v2814 = vsel %vm1038, %v2759, 0
      %v2817 = vsel %vm1038, %v2760, 0
      %v2820 = vsel %vm1038, %v2761, 0
      %v2823 = vsel %vm1038, %v2762, 0
      %v2826 = vsel %vm1038, %v2763, 0
      %v2829 = vsel %vm1038, %v2764, 0
      %v2832 = vsel %vm1038, %v2765, 0
      %v2835 = vsel %vm1038, %v2766, 0
      %v2838 = vsel %vm1038, %v2767, 0
      %v2841 = vsel %vm1038, %v2768, 0
      %v2844 = vsel %vm1038, %v2769, 0
      %v2847 = vsel %vm1038, %v2770, 0
      %v2850 = vsel %vm1038, %v2771, 0
      %v2853 = vsel %vm1038, %v2772, 0
      %v2856 = vsel %vm1038, %v2773, 0
      %v2859 = vsel %vm1038, %v2774, 0
      %v2862 = vsel %vm1038, %v2775, 0
      %v2865 = vsel %vm1038, %v2776, 0
      %v2868 = vsel %vm1038, %v2777, 0
      %v2871 = vsel %vm1038, %v2778, 0
      %v2874 = vsel %vm1038, %v2779, 0
      %2876 = vmatpush.msra.mxu0 0.0
      %2877 = vmatpush.msra.mxu0 0.0
      %2878 = vmatpush.msra.mxu0 0.0
      %2879 = vmatpush.msra.mxu0 0.0
      %2880 = vmatpush.msra.mxu0 0.0
      %2881 = vmatpush.msra.mxu0 0.0
      %2882 = vmatpush.msra.mxu0 0.0
      %2883 = vmatpush.msra.mxu0 0.0
      %2884 = vmatpush.msra.mxu0 0.0
      %2885 = vmatpush.msra.mxu0 0.0
      %2886 = vmatpush.msra.mxu0 0.0
      %2887 = vmatpush.msra.mxu0 0.0
      %2888 = vmatpush.msra.mxu0 0.0
      %2889 = vmatpush.msra.mxu0 0.0
      %2890 = vmatpush.msra.mxu0 0.0
      %2891 = vmatpush.msra.mxu0 %v1034
      %2892 = vmatmul.f32.gmra.mxu0 %v2781
      %v2893 = vpop.f32.mrf.mxu0
      %v2894 = vadd.f32 0.0, %v2893
      %2895 = vmatmul.f32.gmra.mxu0 %v2784
      %v2896 = vpop.f32.mrf.mxu0
      %v2897 = vadd.f32 0.0, %v2896
      %2898 = vmatmul.f32.gmra.mxu0 %v2787
      %v2899 = vpop.f32.mrf.mxu0
      %v2900 = vadd.f32 0.0, %v2899
      %2901 = vmatmul.f32.gmra.mxu0 %v2790
      %v2902 = vpop.f32.mrf.mxu0
      %v2903 = vadd.f32 0.0, %v2902
      %2904 = vmatmul.f32.gmra.mxu0 %v2793
      %v2905 = vpop.f32.mrf.mxu0
      %v2906 = vadd.f32 0.0, %v2905
      %2907 = vmatmul.f32.gmra.mxu0 %v2796
      %v2908 = vpop.f32.mrf.mxu0
      %v2909 = vadd.f32 0.0, %v2908
      %2910 = vmatmul.f32.gmra.mxu0 %v2799
      %v2911 = vpop.f32.mrf.mxu0
      %v2912 = vadd.f32 0.0, %v2911
      %2913 = vmatmul.f32.gmra.mxu0 %v2802
      %v2914 = vpop.f32.mrf.mxu0
      %v2915 = vadd.f32 0.0, %v2914
      %2916 = vmatmul.f32.gmra.mxu0 %v2805
      %v2917 = vpop.f32.mrf.mxu0
      %v2918 = vadd.f32 0.0, %v2917
      %2919 = vmatmul.f32.gmra.mxu0 %v2808
      %v2920 = vpop.f32.mrf.mxu0
      %v2921 = vadd.f32 0.0, %v2920
      %2922 = vmatmul.f32.gmra.mxu0 %v2811
      %v2923 = vpop.f32.mrf.mxu0
      %v2924 = vadd.f32 0.0, %v2923
      %2925 = vmatmul.f32.gmra.mxu0 %v2814
      %v2926 = vpop.f32.mrf.mxu0
      %v2927 = vadd.f32 0.0, %v2926
      %2928 = vmatmul.f32.gmra.mxu0 %v2817
      %v2929 = vpop.f32.mrf.mxu0
      %v2930 = vadd.f32 0.0, %v2929
      %2931 = vmatmul.f32.gmra.mxu0 %v2820
      %v2932 = vpop.f32.mrf.mxu0
      %v2933 = vadd.f32 0.0, %v2932
      %2934 = vmatmul.f32.gmra.mxu0 %v2823
      %v2935 = vpop.f32.mrf.mxu0
      %v2936 = vadd.f32 0.0, %v2935
      %2937 = vmatmul.f32.gmra.mxu0 %v2826
      %v2938 = vpop.f32.mrf.mxu0
      %v2939 = vadd.f32 0.0, %v2938
      %2940 = vmatmul.f32.gmra.mxu0 %v2829
      %v2941 = vpop.f32.mrf.mxu0
      %v2942 = vadd.f32 0.0, %v2941
      %2943 = vmatmul.f32.gmra.mxu0 %v2832
      %v2944 = vpop.f32.mrf.mxu0
      %v2945 = vadd.f32 0.0, %v2944
      %2946 = vmatmul.f32.gmra.mxu0 %v2835
      %v2947 = vpop.f32.mrf.mxu0
      %v2948 = vadd.f32 0.0, %v2947
      %2949 = vmatmul.f32.gmra.mxu0 %v2838
      %v2950 = vpop.f32.mrf.mxu0
      %v2951 = vadd.f32 0.0, %v2950
      %2952 = vmatmul.f32.gmra.mxu0 %v2841
      %v2953 = vpop.f32.mrf.mxu0
      %v2954 = vadd.f32 0.0, %v2953
      %2955 = vmatmul.f32.gmra.mxu0 %v2844
      %v2956 = vpop.f32.mrf.mxu0
      %v2957 = vadd.f32 0.0, %v2956
      %2958 = vmatmul.f32.gmra.mxu0 %v2847
      %v2959 = vpop.f32.mrf.mxu0
      %v2960 = vadd.f32 0.0, %v2959
      %2961 = vmatmul.f32.gmra.mxu0 %v2850
      %v2962 = vpop.f32.mrf.mxu0
      %v2963 = vadd.f32 0.0, %v2962
      %2964 = vmatmul.f32.gmra.mxu0 %v2853
      %v2965 = vpop.f32.mrf.mxu0
      %v2966 = vadd.f32 0.0, %v2965
      %2967 = vmatmul.f32.gmra.mxu0 %v2856
      %v2968 = vpop.f32.mrf.mxu0
      %v2969 = vadd.f32 0.0, %v2968
      %2970 = vmatmul.f32.gmra.mxu0 %v2859
      %v2971 = vpop.f32.mrf.mxu0
      %v2972 = vadd.f32 0.0, %v2971
      %2973 = vmatmul.f32.gmra.mxu0 %v2862
      %v2974 = vpop.f32.mrf.mxu0
      %v2975 = vadd.f32 0.0, %v2974
      %2976 = vmatmul.f32.gmra.mxu0 %v2865
      %v2977 = vpop.f32.mrf.mxu0
      %v2978 = vadd.f32 0.0, %v2977
      %2979 = vmatmul.f32.gmra.mxu0 %v2868
      %v2980 = vpop.f32.mrf.mxu0
      %v2981 = vadd.f32 0.0, %v2980
      %2982 = vmatmul.f32.gmra.mxu0 %v2871
      %v2983 = vpop.f32.mrf.mxu0
      %v2984 = vadd.f32 0.0, %v2983
      %2985 = vmatmul.f32.gmra.mxu0 %v2874
      %v2986 = vpop.f32.mrf.mxu0
      %v2987 = vadd.f32 0.0, %v2986
      %2988 = vdwg.mxu0
      %v2990 = vsel %vm1038, %v1858, 0
      %v2993 = vsel %vm1038, %v1859, 0
      %v2996 = vsel %vm1038, %v1860, 0
      %v2999 = vsel %vm1038, %v1861, 0
      %v3002 = vsel %vm1038, %v1862, 0
      %v3005 = vsel %vm1038, %v1863, 0
      %v3008 = vsel %vm1038, %v1864, 0
      %v3011 = vsel %vm1038, %v1865, 0
      %v3014 = vsel %vm1038, %v1866, 0
      %v3017 = vsel %vm1038, %v1867, 0
      %v3020 = vsel %vm1038, %v1868, 0
      %v3023 = vsel %vm1038, %v1869, 0
      %v3026 = vsel %vm1038, %v1870, 0
      %v3029 = vsel %vm1038, %v1871, 0
      %v3032 = vsel %vm1038, %v1872, 0
      %v3035 = vsel %vm1038, %v1873, 0
      %v3038 = vsel %vm1038, %v1874, 0
      %v3041 = vsel %vm1038, %v1875, 0
      %v3044 = vsel %vm1038, %v1876, 0
      %v3047 = vsel %vm1038, %v1877, 0
      %v3050 = vsel %vm1038, %v1878, 0
      %v3053 = vsel %vm1038, %v1879, 0
      %v3056 = vsel %vm1038, %v1880, 0
      %v3059 = vsel %vm1038, %v1881, 0
      %v3062 = vsel %vm1038, %v1882, 0
      %v3065 = vsel %vm1038, %v1883, 0
      %v3068 = vsel %vm1038, %v1884, 0
      %v3071 = vsel %vm1038, %v1885, 0
      %v3074 = vsel %vm1038, %v1886, 0
      %v3077 = vsel %vm1038, %v1887, 0
      %v3080 = vsel %vm1038, %v1888, 0
      %v3083 = vsel %vm1038, %v1889, 0
      %3085 = vmatpush.msra.mxu0 0.0
      %3086 = vmatpush.msra.mxu0 0.0
      %3087 = vmatpush.msra.mxu0 0.0
      %3088 = vmatpush.msra.mxu0 0.0
      %3089 = vmatpush.msra.mxu0 0.0
      %3090 = vmatpush.msra.mxu0 0.0
      %3091 = vmatpush.msra.mxu0 0.0
      %3092 = vmatpush.msra.mxu0 0.0
      %3093 = vmatpush.msra.mxu0 0.0
      %3094 = vmatpush.msra.mxu0 0.0
      %3095 = vmatpush.msra.mxu0 0.0
      %3096 = vmatpush.msra.mxu0 0.0
      %3097 = vmatpush.msra.mxu0 0.0
      %3098 = vmatpush.msra.mxu0 0.0
      %3099 = vmatpush.msra.mxu0 0.0
      %3100 = vmatpush.msra.mxu0 %v1033
      %3101 = vmatmul.f32.gmra.mxu0 %v2990
      %v3102 = vpop.f32.mrf.mxu0
      %v3103 = vadd.f32 %v2894, %v3102
      %3104 = vmatmul.f32.gmra.mxu0 %v2993
      %v3105 = vpop.f32.mrf.mxu0
      %v3106 = vadd.f32 %v2897, %v3105
      %3107 = vmatmul.f32.gmra.mxu0 %v2996
      %v3108 = vpop.f32.mrf.mxu0
      %v3109 = vadd.f32 %v2900, %v3108
      %3110 = vmatmul.f32.gmra.mxu0 %v2999
      %v3111 = vpop.f32.mrf.mxu0
      %v3112 = vadd.f32 %v2903, %v3111
      %3113 = vmatmul.f32.gmra.mxu0 %v3002
      %v3114 = vpop.f32.mrf.mxu0
      %v3115 = vadd.f32 %v2906, %v3114
      %3116 = vmatmul.f32.gmra.mxu0 %v3005
      %v3117 = vpop.f32.mrf.mxu0
      %v3118 = vadd.f32 %v2909, %v3117
      %3119 = vmatmul.f32.gmra.mxu0 %v3008
      %v3120 = vpop.f32.mrf.mxu0
      %v3121 = vadd.f32 %v2912, %v3120
      %3122 = vmatmul.f32.gmra.mxu0 %v3011
      %v3123 = vpop.f32.mrf.mxu0
      %v3124 = vadd.f32 %v2915, %v3123
      %3125 = vmatmul.f32.gmra.mxu0 %v3014
      %v3126 = vpop.f32.mrf.mxu0
      %v3127 = vadd.f32 %v2918, %v3126
      %3128 = vmatmul.f32.gmra.mxu0 %v3017
      %v3129 = vpop.f32.mrf.mxu0
      %v3130 = vadd.f32 %v2921, %v3129
      %3131 = vmatmul.f32.gmra.mxu0 %v3020
      %v3132 = vpop.f32.mrf.mxu0
      %v3133 = vadd.f32 %v2924, %v3132
      %3134 = vmatmul.f32.gmra.mxu0 %v3023
      %v3135 = vpop.f32.mrf.mxu0
      %v3136 = vadd.f32 %v2927, %v3135
      %3137 = vmatmul.f32.gmra.mxu0 %v3026
      %v3138 = vpop.f32.mrf.mxu0
      %v3139 = vadd.f32 %v2930, %v3138
      %3140 = vmatmul.f32.gmra.mxu0 %v3029
      %v3141 = vpop.f32.mrf.mxu0
      %v3142 = vadd.f32 %v2933, %v3141
      %3143 = vmatmul.f32.gmra.mxu0 %v3032
      %v3144 = vpop.f32.mrf.mxu0
      %v3145 = vadd.f32 %v2936, %v3144
      %3146 = vmatmul.f32.gmra.mxu0 %v3035
      %v3147 = vpop.f32.mrf.mxu0
      %v3148 = vadd.f32 %v2939, %v3147
      %3149 = vmatmul.f32.gmra.mxu0 %v3038
      %v3150 = vpop.f32.mrf.mxu0
      %v3151 = vadd.f32 %v2942, %v3150
      %3152 = vmatmul.f32.gmra.mxu0 %v3041
      %v3153 = vpop.f32.mrf.mxu0
      %v3154 = vadd.f32 %v2945, %v3153
      %3155 = vmatmul.f32.gmra.mxu0 %v3044
      %v3156 = vpop.f32.mrf.mxu0
      %v3157 = vadd.f32 %v2948, %v3156
      %3158 = vmatmul.f32.gmra.mxu0 %v3047
      %v3159 = vpop.f32.mrf.mxu0
      %v3160 = vadd.f32 %v2951, %v3159
      %3161 = vmatmul.f32.gmra.mxu0 %v3050
      %v3162 = vpop.f32.mrf.mxu0
      %v3163 = vadd.f32 %v2954, %v3162
      %3164 = vmatmul.f32.gmra.mxu0 %v3053
      %v3165 = vpop.f32.mrf.mxu0
      %v3166 = vadd.f32 %v2957, %v3165
      %3167 = vmatmul.f32.gmra.mxu0 %v3056
      %v3168 = vpop.f32.mrf.mxu0
      %v3169 = vadd.f32 %v2960, %v3168
      %3170 = vmatmul.f32.gmra.mxu0 %v3059
      %v3171 = vpop.f32.mrf.mxu0
      %v3172 = vadd.f32 %v2963, %v3171
      %3173 = vmatmul.f32.gmra.mxu0 %v3062
      %v3174 = vpop.f32.mrf.mxu0
      %v3175 = vadd.f32 %v2966, %v3174
      %3176 = vmatmul.f32.gmra.mxu0 %v3065
      %v3177 = vpop.f32.mrf.mxu0
      %v3178 = vadd.f32 %v2969, %v3177
      %3179 = vmatmul.f32.gmra.mxu0 %v3068
      %v3180 = vpop.f32.mrf.mxu0
      %v3181 = vadd.f32 %v2972, %v3180
      %3182 = vmatmul.f32.gmra.mxu0 %v3071
      %v3183 = vpop.f32.mrf.mxu0
      %v3184 = vadd.f32 %v2975, %v3183
      %3185 = vmatmul.f32.gmra.mxu0 %v3074
      %v3186 = vpop.f32.mrf.mxu0
      %v3187 = vadd.f32 %v2978, %v3186
      %3188 = vmatmul.f32.gmra.mxu0 %v3077
      %v3189 = vpop.f32.mrf.mxu0
      %v3190 = vadd.f32 %v2981, %v3189
      %3191 = vmatmul.f32.gmra.mxu0 %v3080
      %v3192 = vpop.f32.mrf.mxu0
      %v3193 = vadd.f32 %v2984, %v3192
      %3194 = vmatmul.f32.gmra.mxu0 %v3083
      %v3195 = vpop.f32.mrf.mxu0
      %v3196 = vadd.f32 %v2987, %v3195
      %3197 = vdwg.mxu0
      %3198 = vrot.lane.b32.xlu0 %v597, 112
      %v3199 = vpop.permute.xlu0 %3198
      %3200 = vrot.lane.b32.xlu0 %v600, 112
      %v3201 = vpop.permute.xlu0 %3200
      %3202 = vrot.lane.b32.xlu0 %v603, 112
      %v3203 = vpop.permute.xlu0 %3202
      %3204 = vrot.lane.b32.xlu0 %v606, 112
      %v3205 = vpop.permute.xlu0 %3204
      %3206 = vrot.lane.b32.xlu0 %v609, 112
      %v3207 = vpop.permute.xlu0 %3206
      %3208 = vrot.lane.b32.xlu0 %v612, 112
      %v3209 = vpop.permute.xlu0 %3208
      %3210 = vrot.lane.b32.xlu0 %v615, 112
      %v3211 = vpop.permute.xlu0 %3210
      %3212 = vrot.lane.b32.xlu0 %v618, 112
      %v3213 = vpop.permute.xlu0 %3212
      %3214 = vrot.lane.b32.xlu0 %v621, 112
      %v3215 = vpop.permute.xlu0 %3214
      %3216 = vrot.lane.b32.xlu0 %v624, 112
      %v3217 = vpop.permute.xlu0 %3216
      %3218 = vrot.lane.b32.xlu0 %v627, 112
      %v3219 = vpop.permute.xlu0 %3218
      %3220 = vrot.lane.b32.xlu0 %v630, 112
      %v3221 = vpop.permute.xlu0 %3220
      %3222 = vrot.lane.b32.xlu0 %v633, 112
      %v3223 = vpop.permute.xlu0 %3222
      %3224 = vrot.lane.b32.xlu0 %v636, 112
      %v3225 = vpop.permute.xlu0 %3224
      %3226 = vrot.lane.b32.xlu0 %v639, 112
      %v3227 = vpop.permute.xlu0 %3226
      %3228 = vrot.lane.b32.xlu0 %v642, 112
      %v3229 = vpop.permute.xlu0 %3228
      %3230 = vrot.lane.b32.xlu0 %v645, 112
      %v3231 = vpop.permute.xlu0 %3230
      %3232 = vrot.lane.b32.xlu0 %v648, 112
      %v3233 = vpop.permute.xlu0 %3232
      %3234 = vrot.lane.b32.xlu0 %v651, 112
      %v3235 = vpop.permute.xlu0 %3234
      %3236 = vrot.lane.b32.xlu0 %v654, 112
      %v3237 = vpop.permute.xlu0 %3236
      %3238 = vrot.lane.b32.xlu0 %v657, 112
      %v3239 = vpop.permute.xlu0 %3238
      %3240 = vrot.lane.b32.xlu0 %v660, 112
      %v3241 = vpop.permute.xlu0 %3240
      %3242 = vrot.lane.b32.xlu0 %v663, 112
      %v3243 = vpop.permute.xlu0 %3242
      %3244 = vrot.lane.b32.xlu0 %v666, 112
      %v3245 = vpop.permute.xlu0 %3244
      %3246 = vrot.lane.b32.xlu0 %v669, 112
      %v3247 = vpop.permute.xlu0 %3246
      %3248 = vrot.lane.b32.xlu0 %v672, 112
      %v3249 = vpop.permute.xlu0 %3248
      %3250 = vrot.lane.b32.xlu0 %v675, 112
      %v3251 = vpop.permute.xlu0 %3250
      %3252 = vrot.lane.b32.xlu0 %v678, 112
      %v3253 = vpop.permute.xlu0 %3252
      %3254 = vrot.lane.b32.xlu0 %v681, 112
      %v3255 = vpop.permute.xlu0 %3254
      %3256 = vrot.lane.b32.xlu0 %v684, 112
      %v3257 = vpop.permute.xlu0 %3256
      %3258 = vrot.lane.b32.xlu0 %v687, 112
      %v3259 = vpop.permute.xlu0 %3258
      %3260 = vrot.lane.b32.xlu0 %v690, 112
      %v3261 = vpop.permute.xlu0 %3260
      %3262 = vrot.lane.b32.xlu0 %v1010, 112
      %v3263 = vpop.permute.xlu0 %3262
      %3264 = vrot.lane.b32.xlu0 %v1013, 112
      %v3265 = vpop.permute.xlu0 %3264
      %3266 = vrot.lane.b32.xlu0 %v1016, 112
      %v3267 = vpop.permute.xlu0 %3266
      %3268 = vrot.lane.b32.xlu0 %v1019, 112
      %v3269 = vpop.permute.xlu0 %3268
      %3270 = vrot.lane.b32.xlu0 %v1022, 112
      %v3271 = vpop.permute.xlu0 %3270
      %3272 = vrot.lane.b32.xlu0 %v1025, 112
      %v3273 = vpop.permute.xlu0 %3272
      %3274 = vrot.lane.b32.xlu0 %v1028, 112
      %v3275 = vpop.permute.xlu0 %3274
      %3276 = vrot.lane.b32.xlu0 %v1031, 112
      %v3277 = vpop.permute.xlu0 %3276
      %v3278 = vsel %vm1038, %v3199, 0
      %v3280 = vsel %vm1038, %v3201, 0
      %v3282 = vsel %vm1038, %v3203, 0
      %v3284 = vsel %vm1038, %v3205, 0
      %v3286 = vsel %vm1038, %v3207, 0
      %v3288 = vsel %vm1038, %v3209, 0
      %v3290 = vsel %vm1038, %v3211, 0
      %v3292 = vsel %vm1038, %v3213, 0
      %v3294 = vsel %vm1038, %v3215, 0
      %v3296 = vsel %vm1038, %v3217, 0
      %v3298 = vsel %vm1038, %v3219, 0
      %v3300 = vsel %vm1038, %v3221, 0
      %v3302 = vsel %vm1038, %v3223, 0
      %v3304 = vsel %vm1038, %v3225, 0
      %v3306 = vsel %vm1038, %v3227, 0
      %v3308 = vsel %vm1038, %v3229, 0
      %v3310 = vsel %vm1038, %v3231, 0
      %v3312 = vsel %vm1038, %v3233, 0
      %v3314 = vsel %vm1038, %v3235, 0
      %v3316 = vsel %vm1038, %v3237, 0
      %v3318 = vsel %vm1038, %v3239, 0
      %v3320 = vsel %vm1038, %v3241, 0
      %v3322 = vsel %vm1038, %v3243, 0
      %v3324 = vsel %vm1038, %v3245, 0
      %v3326 = vsel %vm1038, %v3247, 0
      %v3328 = vsel %vm1038, %v3249, 0
      %v3330 = vsel %vm1038, %v3251, 0
      %v3332 = vsel %vm1038, %v3253, 0
      %v3334 = vsel %vm1038, %v3255, 0
      %v3336 = vsel %vm1038, %v3257, 0
      %v3338 = vsel %vm1038, %v3259, 0
      %v3340 = vsel %vm1038, %v3261, 0
      %v3342 = vsel %vm1038, %v3263, 0
      %v3344 = vsel %vm1038, %v3265, 0
      %v3346 = vsel %vm1038, %v3267, 0
      %v3348 = vsel %vm1038, %v3269, 0
      %v3350 = vsel %vm1038, %v3271, 0
      %v3352 = vsel %vm1038, %v3273, 0
      %v3354 = vsel %vm1038, %v3275, 0
      %v3356 = vsel %vm1038, %v3277, 0
      %3358 = vmatpush.xpose.msra.mxu0 0.0
      %3359 = vmatpush.xpose.msra.mxu0 0.0
      %3360 = vmatpush.xpose.msra.mxu0 0.0
      %3361 = vmatpush.xpose.msra.mxu0 0.0
      %3362 = vmatpush.xpose.msra.mxu0 0.0
      %3363 = vmatpush.xpose.msra.mxu0 0.0
      %3364 = vmatpush.xpose.msra.mxu0 0.0
      %3365 = vmatpush.xpose.msra.mxu0 0.0
      %3366 = vmatpush.xpose.msra.mxu0 %v3356
      %3367 = vmatpush.xpose.msra.mxu0 %v3354
      %3368 = vmatpush.xpose.msra.mxu0 %v3352
      %3369 = vmatpush.xpose.msra.mxu0 %v3350
      %3370 = vmatpush.xpose.msra.mxu0 %v3348
      %3371 = vmatpush.xpose.msra.mxu0 %v3346
      %3372 = vmatpush.xpose.msra.mxu0 %v3344
      %3373 = vmatpush.xpose.msra.mxu0 %v3342
      %3374 = vmatmul.f32.gmra.mxu0 %v3278
      %v3375 = vpop.f32.mrf.mxu0
      %v3376 = vadd.f32 0.0, %v3375
      %3377 = vmatmul.f32.gmra.mxu0 %v3280
      %v3378 = vpop.f32.mrf.mxu0
      %v3379 = vadd.f32 0.0, %v3378
      %3380 = vmatmul.f32.gmra.mxu0 %v3282
      %v3381 = vpop.f32.mrf.mxu0
      %v3382 = vadd.f32 0.0, %v3381
      %3383 = vmatmul.f32.gmra.mxu0 %v3284
      %v3384 = vpop.f32.mrf.mxu0
      %v3385 = vadd.f32 0.0, %v3384
      %3386 = vmatmul.f32.gmra.mxu0 %v3286
      %v3387 = vpop.f32.mrf.mxu0
      %v3388 = vadd.f32 0.0, %v3387
      %3389 = vmatmul.f32.gmra.mxu0 %v3288
      %v3390 = vpop.f32.mrf.mxu0
      %v3391 = vadd.f32 0.0, %v3390
      %3392 = vmatmul.f32.gmra.mxu0 %v3290
      %v3393 = vpop.f32.mrf.mxu0
      %v3394 = vadd.f32 0.0, %v3393
      %3395 = vmatmul.f32.gmra.mxu0 %v3292
      %v3396 = vpop.f32.mrf.mxu0
      %v3397 = vadd.f32 0.0, %v3396
      %3398 = vmatmul.f32.gmra.mxu0 %v3294
      %v3399 = vpop.f32.mrf.mxu0
      %v3400 = vadd.f32 0.0, %v3399
      %3401 = vmatmul.f32.gmra.mxu0 %v3296
      %v3402 = vpop.f32.mrf.mxu0
      %v3403 = vadd.f32 0.0, %v3402
      %3404 = vmatmul.f32.gmra.mxu0 %v3298
      %v3405 = vpop.f32.mrf.mxu0
      %v3406 = vadd.f32 0.0, %v3405
      %3407 = vmatmul.f32.gmra.mxu0 %v3300
      %v3408 = vpop.f32.mrf.mxu0
      %v3409 = vadd.f32 0.0, %v3408
      %3410 = vmatmul.f32.gmra.mxu0 %v3302
      %v3411 = vpop.f32.mrf.mxu0
      %v3412 = vadd.f32 0.0, %v3411
      %3413 = vmatmul.f32.gmra.mxu0 %v3304
      %v3414 = vpop.f32.mrf.mxu0
      %v3415 = vadd.f32 0.0, %v3414
      %3416 = vmatmul.f32.gmra.mxu0 %v3306
      %v3417 = vpop.f32.mrf.mxu0
      %v3418 = vadd.f32 0.0, %v3417
      %3419 = vmatmul.f32.gmra.mxu0 %v3308
      %v3420 = vpop.f32.mrf.mxu0
      %v3421 = vadd.f32 0.0, %v3420
      %3422 = vmatmul.f32.gmra.mxu0 %v3310
      %v3423 = vpop.f32.mrf.mxu0
      %v3424 = vadd.f32 0.0, %v3423
      %3425 = vmatmul.f32.gmra.mxu0 %v3312
      %v3426 = vpop.f32.mrf.mxu0
      %v3427 = vadd.f32 0.0, %v3426
      %3428 = vmatmul.f32.gmra.mxu0 %v3314
      %v3429 = vpop.f32.mrf.mxu0
      %v3430 = vadd.f32 0.0, %v3429
      %3431 = vmatmul.f32.gmra.mxu0 %v3316
      %v3432 = vpop.f32.mrf.mxu0
      %v3433 = vadd.f32 0.0, %v3432
      %3434 = vmatmul.f32.gmra.mxu0 %v3318
      %v3435 = vpop.f32.mrf.mxu0
      %v3436 = vadd.f32 0.0, %v3435
      %3437 = vmatmul.f32.gmra.mxu0 %v3320
      %v3438 = vpop.f32.mrf.mxu0
      %v3439 = vadd.f32 0.0, %v3438
      %3440 = vmatmul.f32.gmra.mxu0 %v3322
      %v3441 = vpop.f32.mrf.mxu0
      %v3442 = vadd.f32 0.0, %v3441
      %3443 = vmatmul.f32.gmra.mxu0 %v3324
      %v3444 = vpop.f32.mrf.mxu0
      %v3445 = vadd.f32 0.0, %v3444
      %3446 = vmatmul.f32.gmra.mxu0 %v3326
      %v3447 = vpop.f32.mrf.mxu0
      %v3448 = vadd.f32 0.0, %v3447
      %3449 = vmatmul.f32.gmra.mxu0 %v3328
      %v3450 = vpop.f32.mrf.mxu0
      %v3451 = vadd.f32 0.0, %v3450
      %3452 = vmatmul.f32.gmra.mxu0 %v3330
      %v3453 = vpop.f32.mrf.mxu0
      %v3454 = vadd.f32 0.0, %v3453
      %3455 = vmatmul.f32.gmra.mxu0 %v3332
      %v3456 = vpop.f32.mrf.mxu0
      %v3457 = vadd.f32 0.0, %v3456
      %3458 = vmatmul.f32.gmra.mxu0 %v3334
      %v3459 = vpop.f32.mrf.mxu0
      %v3460 = vadd.f32 0.0, %v3459
      %3461 = vmatmul.f32.gmra.mxu0 %v3336
      %v3462 = vpop.f32.mrf.mxu0
      %v3463 = vadd.f32 0.0, %v3462
      %3464 = vmatmul.f32.gmra.mxu0 %v3338
      %v3465 = vpop.f32.mrf.mxu0
      %v3466 = vadd.f32 0.0, %v3465
      %3467 = vmatmul.f32.gmra.mxu0 %v3340
      %v3468 = vpop.f32.mrf.mxu0
      %v3469 = vadd.f32 0.0, %v3468
      %3470 = vdwg.mxu0
      %v3471 = vmul.f32 %v3376, 0.35355338
      %v3472 = vmul.f32 %v3379, 0.35355338
      %v3473 = vmul.f32 %v3382, 0.35355338
      %v3474 = vmul.f32 %v3385, 0.35355338
      %v3475 = vmul.f32 %v3388, 0.35355338
      %v3476 = vmul.f32 %v3391, 0.35355338
      %v3477 = vmul.f32 %v3394, 0.35355338
      %v3478 = vmul.f32 %v3397, 0.35355338
      %v3479 = vmul.f32 %v3400, 0.35355338
      %v3480 = vmul.f32 %v3403, 0.35355338
      %v3481 = vmul.f32 %v3406, 0.35355338
      %v3482 = vmul.f32 %v3409, 0.35355338
      %v3483 = vmul.f32 %v3412, 0.35355338
      %v3484 = vmul.f32 %v3415, 0.35355338
      %v3485 = vmul.f32 %v3418, 0.35355338
      %v3486 = vmul.f32 %v3421, 0.35355338
      %v3487 = vmul.f32 %v3424, 0.35355338
      %v3488 = vmul.f32 %v3427, 0.35355338
      %v3489 = vmul.f32 %v3430, 0.35355338
      %v3490 = vmul.f32 %v3433, 0.35355338
      %v3491 = vmul.f32 %v3436, 0.35355338
      %v3492 = vmul.f32 %v3439, 0.35355338
      %v3493 = vmul.f32 %v3442, 0.35355338
      %v3494 = vmul.f32 %v3445, 0.35355338
      %v3495 = vmul.f32 %v3448, 0.35355338
      %v3496 = vmul.f32 %v3451, 0.35355338
      %v3497 = vmul.f32 %v3454, 0.35355338
      %v3498 = vmul.f32 %v3457, 0.35355338
      %v3499 = vmul.f32 %v3460, 0.35355338
      %v3500 = vmul.f32 %v3463, 0.35355338
      %v3501 = vmul.f32 %v3466, 0.35355338
      %v3502 = vmul.f32 %v3469, 0.35355338
      %v3503 = vsel %vm1304, %v3471, -inf
      %3504 = vmax.xlane.f32.xlu0 %v3503
      %v3505 = vpop.xlane.xlu0 %3504
      %v3506 = vsel %vm1304, %v3472, -inf
      %3507 = vmax.xlane.f32.xlu0 %v3506
      %v3508 = vpop.xlane.xlu0 %3507
      %v3509 = vsel %vm1304, %v3473, -inf
      %3510 = vmax.xlane.f32.xlu0 %v3509
      %v3511 = vpop.xlane.xlu0 %3510
      %v3512 = vsel %vm1304, %v3474, -inf
      %3513 = vmax.xlane.f32.xlu0 %v3512
      %v3514 = vpop.xlane.xlu0 %3513
      %v3515 = vsel %vm1304, %v3475, -inf
      %3516 = vmax.xlane.f32.xlu0 %v3515
      %v3517 = vpop.xlane.xlu0 %3516
      %v3518 = vsel %vm1304, %v3476, -inf
      %3519 = vmax.xlane.f32.xlu0 %v3518
      %v3520 = vpop.xlane.xlu0 %3519
      %v3521 = vsel %vm1304, %v3477, -inf
      %3522 = vmax.xlane.f32.xlu0 %v3521
      %v3523 = vpop.xlane.xlu0 %3522
      %v3524 = vsel %vm1304, %v3478, -inf
      %3525 = vmax.xlane.f32.xlu0 %v3524
      %v3526 = vpop.xlane.xlu0 %3525
      %v3527 = vsel %vm1304, %v3479, -inf
      %3528 = vmax.xlane.f32.xlu0 %v3527
      %v3529 = vpop.xlane.xlu0 %3528
      %v3530 = vsel %vm1304, %v3480, -inf
      %3531 = vmax.xlane.f32.xlu0 %v3530
      %v3532 = vpop.xlane.xlu0 %3531
      %v3533 = vsel %vm1304, %v3481, -inf
      %3534 = vmax.xlane.f32.xlu0 %v3533
      %v3535 = vpop.xlane.xlu0 %3534
      %v3536 = vsel %vm1304, %v3482, -inf
      %3537 = vmax.xlane.f32.xlu0 %v3536
      %v3538 = vpop.xlane.xlu0 %3537
      %v3539 = vsel %vm1304, %v3483, -inf
      %3540 = vmax.xlane.f32.xlu0 %v3539
      %v3541 = vpop.xlane.xlu0 %3540
      %v3542 = vsel %vm1304, %v3484, -inf
      %3543 = vmax.xlane.f32.xlu0 %v3542
      %v3544 = vpop.xlane.xlu0 %3543
      %v3545 = vsel %vm1304, %v3485, -inf
      %3546 = vmax.xlane.f32.xlu0 %v3545
      %v3547 = vpop.xlane.xlu0 %3546
      %v3548 = vsel %vm1304, %v3486, -inf
      %3549 = vmax.xlane.f32.xlu0 %v3548
      %v3550 = vpop.xlane.xlu0 %3549
      %v3551 = vsel %vm1304, %v3487, -inf
      %3552 = vmax.xlane.f32.xlu0 %v3551
      %v3553 = vpop.xlane.xlu0 %3552
      %v3554 = vsel %vm1304, %v3488, -inf
      %3555 = vmax.xlane.f32.xlu0 %v3554
      %v3556 = vpop.xlane.xlu0 %3555
      %v3557 = vsel %vm1304, %v3489, -inf
      %3558 = vmax.xlane.f32.xlu0 %v3557
      %v3559 = vpop.xlane.xlu0 %3558
      %v3560 = vsel %vm1304, %v3490, -inf
      %3561 = vmax.xlane.f32.xlu0 %v3560
      %v3562 = vpop.xlane.xlu0 %3561
      %v3563 = vsel %vm1304, %v3491, -inf
      %3564 = vmax.xlane.f32.xlu0 %v3563
      %v3565 = vpop.xlane.xlu0 %3564
      %v3566 = vsel %vm1304, %v3492, -inf
      %3567 = vmax.xlane.f32.xlu0 %v3566
      %v3568 = vpop.xlane.xlu0 %3567
      %v3569 = vsel %vm1304, %v3493, -inf
      %3570 = vmax.xlane.f32.xlu0 %v3569
      %v3571 = vpop.xlane.xlu0 %3570
      %v3572 = vsel %vm1304, %v3494, -inf
      %3573 = vmax.xlane.f32.xlu0 %v3572
      %v3574 = vpop.xlane.xlu0 %3573
      %v3575 = vsel %vm1304, %v3495, -inf
      %3576 = vmax.xlane.f32.xlu0 %v3575
      %v3577 = vpop.xlane.xlu0 %3576
      %v3578 = vsel %vm1304, %v3496, -inf
      %3579 = vmax.xlane.f32.xlu0 %v3578
      %v3580 = vpop.xlane.xlu0 %3579
      %v3581 = vsel %vm1304, %v3497, -inf
      %3582 = vmax.xlane.f32.xlu0 %v3581
      %v3583 = vpop.xlane.xlu0 %3582
      %v3584 = vsel %vm1304, %v3498, -inf
      %3585 = vmax.xlane.f32.xlu0 %v3584
      %v3586 = vpop.xlane.xlu0 %3585
      %v3587 = vsel %vm1304, %v3499, -inf
      %3588 = vmax.xlane.f32.xlu0 %v3587
      %v3589 = vpop.xlane.xlu0 %3588
      %v3590 = vsel %vm1304, %v3500, -inf
      %3591 = vmax.xlane.f32.xlu0 %v3590
      %v3592 = vpop.xlane.xlu0 %3591
      %v3593 = vsel %vm1304, %v3501, -inf
      %3594 = vmax.xlane.f32.xlu0 %v3593
      %v3595 = vpop.xlane.xlu0 %3594
      %v3596 = vsel %vm1304, %v3502, -inf
      %3597 = vmax.xlane.f32.xlu0 %v3596
      %v3598 = vpop.xlane.xlu0 %3597
      %v3599 = vsub.f32 %v3471, %v3505
      %v3600 = vsub.f32 %v3472, %v3508
      %v3601 = vsub.f32 %v3473, %v3511
      %v3602 = vsub.f32 %v3474, %v3514
      %v3603 = vsub.f32 %v3475, %v3517
      %v3604 = vsub.f32 %v3476, %v3520
      %v3605 = vsub.f32 %v3477, %v3523
      %v3606 = vsub.f32 %v3478, %v3526
      %v3607 = vsub.f32 %v3479, %v3529
      %v3608 = vsub.f32 %v3480, %v3532
      %v3609 = vsub.f32 %v3481, %v3535
      %v3610 = vsub.f32 %v3482, %v3538
      %v3611 = vsub.f32 %v3483, %v3541
      %v3612 = vsub.f32 %v3484, %v3544
      %v3613 = vsub.f32 %v3485, %v3547
      %v3614 = vsub.f32 %v3486, %v3550
      %v3615 = vsub.f32 %v3487, %v3553
      %v3616 = vsub.f32 %v3488, %v3556
      %v3617 = vsub.f32 %v3489, %v3559
      %v3618 = vsub.f32 %v3490, %v3562
      %v3619 = vsub.f32 %v3491, %v3565
      %v3620 = vsub.f32 %v3492, %v3568
      %v3621 = vsub.f32 %v3493, %v3571
      %v3622 = vsub.f32 %v3494, %v3574
      %v3623 = vsub.f32 %v3495, %v3577
      %v3624 = vsub.f32 %v3496, %v3580
      %v3625 = vsub.f32 %v3497, %v3583
      %v3626 = vsub.f32 %v3498, %v3586
      %v3627 = vsub.f32 %v3499, %v3589
      %v3628 = vsub.f32 %v3500, %v3592
      %v3629 = vsub.f32 %v3501, %v3595
      %v3630 = vsub.f32 %v3502, %v3598
      %v3631 = vmul.f32 %v3599, 1.442695
      %v3632 = vpow.pop %v3631
      %v3633 = vmul.f32 %v3600, 1.442695
      %v3634 = vpow.pop %v3633
      %v3635 = vmul.f32 %v3601, 1.442695
      %v3636 = vpow.pop %v3635
      %v3637 = vmul.f32 %v3602, 1.442695
      %v3638 = vpow.pop %v3637
      %v3639 = vmul.f32 %v3603, 1.442695
      %v3640 = vpow.pop %v3639
      %v3641 = vmul.f32 %v3604, 1.442695
      %v3642 = vpow.pop %v3641
      %v3643 = vmul.f32 %v3605, 1.442695
      %v3644 = vpow.pop %v3643
      %v3645 = vmul.f32 %v3606, 1.442695
      %v3646 = vpow.pop %v3645
      %v3647 = vmul.f32 %v3607, 1.442695
      %v3648 = vpow.pop %v3647
      %v3649 = vmul.f32 %v3608, 1.442695
      %v3650 = vpow.pop %v3649
      %v3651 = vmul.f32 %v3609, 1.442695
      %v3652 = vpow.pop %v3651
      %v3653 = vmul.f32 %v3610, 1.442695
      %v3654 = vpow.pop %v3653
      %v3655 = vmul.f32 %v3611, 1.442695
      %v3656 = vpow.pop %v3655
      %v3657 = vmul.f32 %v3612, 1.442695
      %v3658 = vpow.pop %v3657
      %v3659 = vmul.f32 %v3613, 1.442695
      %v3660 = vpow.pop %v3659
      %v3661 = vmul.f32 %v3614, 1.442695
      %v3662 = vpow.pop %v3661
      %v3663 = vmul.f32 %v3615, 1.442695
      %v3664 = vpow.pop %v3663
      %v3665 = vmul.f32 %v3616, 1.442695
      %v3666 = vpow.pop %v3665
      %v3667 = vmul.f32 %v3617, 1.442695
      %v3668 = vpow.pop %v3667
      %v3669 = vmul.f32 %v3618, 1.442695
      %v3670 = vpow.pop %v3669
      %v3671 = vmul.f32 %v3619, 1.442695
      %v3672 = vpow.pop %v3671
      %v3673 = vmul.f32 %v3620, 1.442695
      %v3674 = vpow.pop %v3673
      %v3675 = vmul.f32 %v3621, 1.442695
      %v3676 = vpow.pop %v3675
      %v3677 = vmul.f32 %v3622, 1.442695
      %v3678 = vpow.pop %v3677
      %v3679 = vmul.f32 %v3623, 1.442695
      %v3680 = vpow.pop %v3679
      %v3681 = vmul.f32 %v3624, 1.442695
      %v3682 = vpow.pop %v3681
      %v3683 = vmul.f32 %v3625, 1.442695
      %v3684 = vpow.pop %v3683
      %v3685 = vmul.f32 %v3626, 1.442695
      %v3686 = vpow.pop %v3685
      %v3687 = vmul.f32 %v3627, 1.442695
      %v3688 = vpow.pop %v3687
      %v3689 = vmul.f32 %v3628, 1.442695
      %v3690 = vpow.pop %v3689
      %v3691 = vmul.f32 %v3629, 1.442695
      %v3692 = vpow.pop %v3691
      %v3693 = vmul.f32 %v3630, 1.442695
      %v3694 = vpow.pop %v3693
      %v3695 = vsel %vm1304, %v3632, 0.0
      %3696 = vadd.xlane.f32.xlu0 %v3695
      %v3697 = vpop.xlane.xlu0 %3696
      %v3698 = vsel %vm1304, %v3634, 0.0
      %3699 = vadd.xlane.f32.xlu0 %v3698
      %v3700 = vpop.xlane.xlu0 %3699
      %v3701 = vsel %vm1304, %v3636, 0.0
      %3702 = vadd.xlane.f32.xlu0 %v3701
      %v3703 = vpop.xlane.xlu0 %3702
      %v3704 = vsel %vm1304, %v3638, 0.0
      %3705 = vadd.xlane.f32.xlu0 %v3704
      %v3706 = vpop.xlane.xlu0 %3705
      %v3707 = vsel %vm1304, %v3640, 0.0
      %3708 = vadd.xlane.f32.xlu0 %v3707
      %v3709 = vpop.xlane.xlu0 %3708
      %v3710 = vsel %vm1304, %v3642, 0.0
      %3711 = vadd.xlane.f32.xlu0 %v3710
      %v3712 = vpop.xlane.xlu0 %3711
      %v3713 = vsel %vm1304, %v3644, 0.0
      %3714 = vadd.xlane.f32.xlu0 %v3713
      %v3715 = vpop.xlane.xlu0 %3714
      %v3716 = vsel %vm1304, %v3646, 0.0
      %3717 = vadd.xlane.f32.xlu0 %v3716
      %v3718 = vpop.xlane.xlu0 %3717
      %v3719 = vsel %vm1304, %v3648, 0.0
      %3720 = vadd.xlane.f32.xlu0 %v3719
      %v3721 = vpop.xlane.xlu0 %3720
      %v3722 = vsel %vm1304, %v3650, 0.0
      %3723 = vadd.xlane.f32.xlu0 %v3722
      %v3724 = vpop.xlane.xlu0 %3723
      %v3725 = vsel %vm1304, %v3652, 0.0
      %3726 = vadd.xlane.f32.xlu0 %v3725
      %v3727 = vpop.xlane.xlu0 %3726
      %v3728 = vsel %vm1304, %v3654, 0.0
      %3729 = vadd.xlane.f32.xlu0 %v3728
      %v3730 = vpop.xlane.xlu0 %3729
      %v3731 = vsel %vm1304, %v3656, 0.0
      %3732 = vadd.xlane.f32.xlu0 %v3731
      %v3733 = vpop.xlane.xlu0 %3732
      %v3734 = vsel %vm1304, %v3658, 0.0
      %3735 = vadd.xlane.f32.xlu0 %v3734
      %v3736 = vpop.xlane.xlu0 %3735
      %v3737 = vsel %vm1304, %v3660, 0.0
      %3738 = vadd.xlane.f32.xlu0 %v3737
      %v3739 = vpop.xlane.xlu0 %3738
      %v3740 = vsel %vm1304, %v3662, 0.0
      %3741 = vadd.xlane.f32.xlu0 %v3740
      %v3742 = vpop.xlane.xlu0 %3741
      %v3743 = vsel %vm1304, %v3664, 0.0
      %3744 = vadd.xlane.f32.xlu0 %v3743
      %v3745 = vpop.xlane.xlu0 %3744
      %v3746 = vsel %vm1304, %v3666, 0.0
      %3747 = vadd.xlane.f32.xlu0 %v3746
      %v3748 = vpop.xlane.xlu0 %3747
      %v3749 = vsel %vm1304, %v3668, 0.0
      %3750 = vadd.xlane.f32.xlu0 %v3749
      %v3751 = vpop.xlane.xlu0 %3750
      %v3752 = vsel %vm1304, %v3670, 0.0
      %3753 = vadd.xlane.f32.xlu0 %v3752
      %v3754 = vpop.xlane.xlu0 %3753
      %v3755 = vsel %vm1304, %v3672, 0.0
      %3756 = vadd.xlane.f32.xlu0 %v3755
      %v3757 = vpop.xlane.xlu0 %3756
      %v3758 = vsel %vm1304, %v3674, 0.0
      %3759 = vadd.xlane.f32.xlu0 %v3758
      %v3760 = vpop.xlane.xlu0 %3759
      %v3761 = vsel %vm1304, %v3676, 0.0
      %3762 = vadd.xlane.f32.xlu0 %v3761
      %v3763 = vpop.xlane.xlu0 %3762
      %v3764 = vsel %vm1304, %v3678, 0.0
      %3765 = vadd.xlane.f32.xlu0 %v3764
      %v3766 = vpop.xlane.xlu0 %3765
      %v3767 = vsel %vm1304, %v3680, 0.0
      %3768 = vadd.xlane.f32.xlu0 %v3767
      %v3769 = vpop.xlane.xlu0 %3768
      %v3770 = vsel %vm1304, %v3682, 0.0
      %3771 = vadd.xlane.f32.xlu0 %v3770
      %v3772 = vpop.xlane.xlu0 %3771
      %v3773 = vsel %vm1304, %v3684, 0.0
      %3774 = vadd.xlane.f32.xlu0 %v3773
      %v3775 = vpop.xlane.xlu0 %3774
      %v3776 = vsel %vm1304, %v3686, 0.0
      %3777 = vadd.xlane.f32.xlu0 %v3776
      %v3778 = vpop.xlane.xlu0 %3777
      %v3779 = vsel %vm1304, %v3688, 0.0
      %3780 = vadd.xlane.f32.xlu0 %v3779
      %v3781 = vpop.xlane.xlu0 %3780
      %v3782 = vsel %vm1304, %v3690, 0.0
      %3783 = vadd.xlane.f32.xlu0 %v3782
      %v3784 = vpop.xlane.xlu0 %3783
      %v3785 = vsel %vm1304, %v3692, 0.0
      %3786 = vadd.xlane.f32.xlu0 %v3785
      %v3787 = vpop.xlane.xlu0 %3786
      %v3788 = vsel %vm1304, %v3694, 0.0
      %3789 = vadd.xlane.f32.xlu0 %v3788
      %v3790 = vpop.xlane.xlu0 %3789
      %3791 = vrot.lane.b32.xlu0 %v1010, 80
      %v3792 = vpop.permute.xlu0 %3791
      %3793 = vrot.lane.b32.xlu0 %v1013, 80
      %v3794 = vpop.permute.xlu0 %3793
      %3795 = vrot.lane.b32.xlu0 %v1016, 80
      %v3796 = vpop.permute.xlu0 %3795
      %3797 = vrot.lane.b32.xlu0 %v1019, 80
      %v3798 = vpop.permute.xlu0 %3797
      %3799 = vrot.lane.b32.xlu0 %v1022, 80
      %v3800 = vpop.permute.xlu0 %3799
      %3801 = vrot.lane.b32.xlu0 %v1025, 80
      %v3802 = vpop.permute.xlu0 %3801
      %3803 = vrot.lane.b32.xlu0 %v1028, 80
      %v3804 = vpop.permute.xlu0 %3803
      %3805 = vrot.lane.b32.xlu0 %v1031, 80
      %v3806 = vpop.permute.xlu0 %3805
      %v3816 = vsel %vm1304, %v3632, 0
      %v3819 = vsel %vm1304, %v3634, 0
      %v3822 = vsel %vm1304, %v3636, 0
      %v3825 = vsel %vm1304, %v3638, 0
      %v3828 = vsel %vm1304, %v3640, 0
      %v3831 = vsel %vm1304, %v3642, 0
      %v3834 = vsel %vm1304, %v3644, 0
      %v3837 = vsel %vm1304, %v3646, 0
      %v3840 = vsel %vm1304, %v3648, 0
      %v3843 = vsel %vm1304, %v3650, 0
      %v3846 = vsel %vm1304, %v3652, 0
      %v3849 = vsel %vm1304, %v3654, 0
      %v3852 = vsel %vm1304, %v3656, 0
      %v3855 = vsel %vm1304, %v3658, 0
      %v3858 = vsel %vm1304, %v3660, 0
      %v3861 = vsel %vm1304, %v3662, 0
      %v3864 = vsel %vm1304, %v3664, 0
      %v3867 = vsel %vm1304, %v3666, 0
      %v3870 = vsel %vm1304, %v3668, 0
      %v3873 = vsel %vm1304, %v3670, 0
      %v3876 = vsel %vm1304, %v3672, 0
      %v3879 = vsel %vm1304, %v3674, 0
      %v3882 = vsel %vm1304, %v3676, 0
      %v3885 = vsel %vm1304, %v3678, 0
      %v3888 = vsel %vm1304, %v3680, 0
      %v3891 = vsel %vm1304, %v3682, 0
      %v3894 = vsel %vm1304, %v3684, 0
      %v3897 = vsel %vm1304, %v3686, 0
      %v3900 = vsel %vm1304, %v3688, 0
      %v3903 = vsel %vm1304, %v3690, 0
      %v3906 = vsel %vm1304, %v3692, 0
      %v3909 = vsel %vm1304, %v3694, 0
      %3911 = vmatpush.msra.mxu0 0.0
      %3912 = vmatpush.msra.mxu0 0.0
      %3913 = vmatpush.msra.mxu0 0.0
      %3914 = vmatpush.msra.mxu0 0.0
      %3915 = vmatpush.msra.mxu0 0.0
      %3916 = vmatpush.msra.mxu0 0.0
      %3917 = vmatpush.msra.mxu0 0.0
      %3918 = vmatpush.msra.mxu0 0.0
      %3919 = vmatpush.msra.mxu0 %v3806
      %3920 = vmatpush.msra.mxu0 %v3804
      %3921 = vmatpush.msra.mxu0 %v3802
      %3922 = vmatpush.msra.mxu0 %v3800
      %3923 = vmatpush.msra.mxu0 %v3798
      %3924 = vmatpush.msra.mxu0 %v3796
      %3925 = vmatpush.msra.mxu0 %v3794
      %3926 = vmatpush.msra.mxu0 %v3792
      %3927 = vmatmul.f32.gmra.mxu0 %v3816
      %v3928 = vpop.f32.mrf.mxu0
      %v3929 = vadd.f32 0.0, %v3928
      %3930 = vmatmul.f32.gmra.mxu0 %v3819
      %v3931 = vpop.f32.mrf.mxu0
      %v3932 = vadd.f32 0.0, %v3931
      %3933 = vmatmul.f32.gmra.mxu0 %v3822
      %v3934 = vpop.f32.mrf.mxu0
      %v3935 = vadd.f32 0.0, %v3934
      %3936 = vmatmul.f32.gmra.mxu0 %v3825
      %v3937 = vpop.f32.mrf.mxu0
      %v3938 = vadd.f32 0.0, %v3937
      %3939 = vmatmul.f32.gmra.mxu0 %v3828
      %v3940 = vpop.f32.mrf.mxu0
      %v3941 = vadd.f32 0.0, %v3940
      %3942 = vmatmul.f32.gmra.mxu0 %v3831
      %v3943 = vpop.f32.mrf.mxu0
      %v3944 = vadd.f32 0.0, %v3943
      %3945 = vmatmul.f32.gmra.mxu0 %v3834
      %v3946 = vpop.f32.mrf.mxu0
      %v3947 = vadd.f32 0.0, %v3946
      %3948 = vmatmul.f32.gmra.mxu0 %v3837
      %v3949 = vpop.f32.mrf.mxu0
      %v3950 = vadd.f32 0.0, %v3949
      %3951 = vmatmul.f32.gmra.mxu0 %v3840
      %v3952 = vpop.f32.mrf.mxu0
      %v3953 = vadd.f32 0.0, %v3952
      %3954 = vmatmul.f32.gmra.mxu0 %v3843
      %v3955 = vpop.f32.mrf.mxu0
      %v3956 = vadd.f32 0.0, %v3955
      %3957 = vmatmul.f32.gmra.mxu0 %v3846
      %v3958 = vpop.f32.mrf.mxu0
      %v3959 = vadd.f32 0.0, %v3958
      %3960 = vmatmul.f32.gmra.mxu0 %v3849
      %v3961 = vpop.f32.mrf.mxu0
      %v3962 = vadd.f32 0.0, %v3961
      %3963 = vmatmul.f32.gmra.mxu0 %v3852
      %v3964 = vpop.f32.mrf.mxu0
      %v3965 = vadd.f32 0.0, %v3964
      %3966 = vmatmul.f32.gmra.mxu0 %v3855
      %v3967 = vpop.f32.mrf.mxu0
      %v3968 = vadd.f32 0.0, %v3967
      %3969 = vmatmul.f32.gmra.mxu0 %v3858
      %v3970 = vpop.f32.mrf.mxu0
      %v3971 = vadd.f32 0.0, %v3970
      %3972 = vmatmul.f32.gmra.mxu0 %v3861
      %v3973 = vpop.f32.mrf.mxu0
      %v3974 = vadd.f32 0.0, %v3973
      %3975 = vmatmul.f32.gmra.mxu0 %v3864
      %v3976 = vpop.f32.mrf.mxu0
      %v3977 = vadd.f32 0.0, %v3976
      %3978 = vmatmul.f32.gmra.mxu0 %v3867
      %v3979 = vpop.f32.mrf.mxu0
      %v3980 = vadd.f32 0.0, %v3979
      %3981 = vmatmul.f32.gmra.mxu0 %v3870
      %v3982 = vpop.f32.mrf.mxu0
      %v3983 = vadd.f32 0.0, %v3982
      %3984 = vmatmul.f32.gmra.mxu0 %v3873
      %v3985 = vpop.f32.mrf.mxu0
      %v3986 = vadd.f32 0.0, %v3985
      %3987 = vmatmul.f32.gmra.mxu0 %v3876
      %v3988 = vpop.f32.mrf.mxu0
      %v3989 = vadd.f32 0.0, %v3988
      %3990 = vmatmul.f32.gmra.mxu0 %v3879
      %v3991 = vpop.f32.mrf.mxu0
      %v3992 = vadd.f32 0.0, %v3991
      %3993 = vmatmul.f32.gmra.mxu0 %v3882
      %v3994 = vpop.f32.mrf.mxu0
      %v3995 = vadd.f32 0.0, %v3994
      %3996 = vmatmul.f32.gmra.mxu0 %v3885
      %v3997 = vpop.f32.mrf.mxu0
      %v3998 = vadd.f32 0.0, %v3997
      %3999 = vmatmul.f32.gmra.mxu0 %v3888
      %v4000 = vpop.f32.mrf.mxu0
      %v4001 = vadd.f32 0.0, %v4000
      %4002 = vmatmul.f32.gmra.mxu0 %v3891
      %v4003 = vpop.f32.mrf.mxu0
      %v4004 = vadd.f32 0.0, %v4003
      %4005 = vmatmul.f32.gmra.mxu0 %v3894
      %v4006 = vpop.f32.mrf.mxu0
      %v4007 = vadd.f32 0.0, %v4006
      %4008 = vmatmul.f32.gmra.mxu0 %v3897
      %v4009 = vpop.f32.mrf.mxu0
      %v4010 = vadd.f32 0.0, %v4009
      %4011 = vmatmul.f32.gmra.mxu0 %v3900
      %v4012 = vpop.f32.mrf.mxu0
      %v4013 = vadd.f32 0.0, %v4012
      %4014 = vmatmul.f32.gmra.mxu0 %v3903
      %v4015 = vpop.f32.mrf.mxu0
      %v4016 = vadd.f32 0.0, %v4015
      %4017 = vmatmul.f32.gmra.mxu0 %v3906
      %v4018 = vpop.f32.mrf.mxu0
      %v4019 = vadd.f32 0.0, %v4018
      %4020 = vmatmul.f32.gmra.mxu0 %v3909
      %v4021 = vpop.f32.mrf.mxu0
      %v4022 = vadd.f32 0.0, %v4021
      %4023 = vdwg.mxu0
      %v4024 = vrcp.pop %v3697
      %v4025 = vrcp.pop %v3700
      %v4026 = vrcp.pop %v3703
      %v4027 = vrcp.pop %v3706
      %v4028 = vrcp.pop %v3709
      %v4029 = vrcp.pop %v3712
      %v4030 = vrcp.pop %v3715
      %v4031 = vrcp.pop %v3718
      %v4032 = vrcp.pop %v3721
      %v4033 = vrcp.pop %v3724
      %v4034 = vrcp.pop %v3727
      %v4035 = vrcp.pop %v3730
      %v4036 = vrcp.pop %v3733
      %v4037 = vrcp.pop %v3736
      %v4038 = vrcp.pop %v3739
      %v4039 = vrcp.pop %v3742
      %v4040 = vrcp.pop %v3745
      %v4041 = vrcp.pop %v3748
      %v4042 = vrcp.pop %v3751
      %v4043 = vrcp.pop %v3754
      %v4044 = vrcp.pop %v3757
      %v4045 = vrcp.pop %v3760
      %v4046 = vrcp.pop %v3763
      %v4047 = vrcp.pop %v3766
      %v4048 = vrcp.pop %v3769
      %v4049 = vrcp.pop %v3772
      %v4050 = vrcp.pop %v3775
      %v4051 = vrcp.pop %v3778
      %v4052 = vrcp.pop %v3781
      %v4053 = vrcp.pop %v3784
      %v4054 = vrcp.pop %v3787
      %v4055 = vrcp.pop %v3790
      %v4056 = vmul.f32 %v3929, %v4024
      %v4057 = vmul.f32 %v3932, %v4025
      %v4058 = vmul.f32 %v3935, %v4026
      %v4059 = vmul.f32 %v3938, %v4027
      %v4060 = vmul.f32 %v3941, %v4028
      %v4061 = vmul.f32 %v3944, %v4029
      %v4062 = vmul.f32 %v3947, %v4030
      %v4063 = vmul.f32 %v3950, %v4031
      %v4064 = vmul.f32 %v3953, %v4032
      %v4065 = vmul.f32 %v3956, %v4033
      %v4066 = vmul.f32 %v3959, %v4034
      %v4067 = vmul.f32 %v3962, %v4035
      %v4068 = vmul.f32 %v3965, %v4036
      %v4069 = vmul.f32 %v3968, %v4037
      %v4070 = vmul.f32 %v3971, %v4038
      %v4071 = vmul.f32 %v3974, %v4039
      %v4072 = vmul.f32 %v3977, %v4040
      %v4073 = vmul.f32 %v3980, %v4041
      %v4074 = vmul.f32 %v3983, %v4042
      %v4075 = vmul.f32 %v3986, %v4043
      %v4076 = vmul.f32 %v3989, %v4044
      %v4077 = vmul.f32 %v3992, %v4045
      %v4078 = vmul.f32 %v3995, %v4046
      %v4079 = vmul.f32 %v3998, %v4047
      %v4080 = vmul.f32 %v4001, %v4048
      %v4081 = vmul.f32 %v4004, %v4049
      %v4082 = vmul.f32 %v4007, %v4050
      %v4083 = vmul.f32 %v4010, %v4051
      %v4084 = vmul.f32 %v4013, %v4052
      %v4085 = vmul.f32 %v4016, %v4053
      %v4086 = vmul.f32 %v4019, %v4054
      %v4087 = vmul.f32 %v4022, %v4055
      %v4089 = vsel %vm1038, %v4056, 0
      %v4092 = vsel %vm1038, %v4057, 0
      %v4095 = vsel %vm1038, %v4058, 0
      %v4098 = vsel %vm1038, %v4059, 0
      %v4101 = vsel %vm1038, %v4060, 0
      %v4104 = vsel %vm1038, %v4061, 0
      %v4107 = vsel %vm1038, %v4062, 0
      %v4110 = vsel %vm1038, %v4063, 0
      %v4113 = vsel %vm1038, %v4064, 0
      %v4116 = vsel %vm1038, %v4065, 0
      %v4119 = vsel %vm1038, %v4066, 0
      %v4122 = vsel %vm1038, %v4067, 0
      %v4125 = vsel %vm1038, %v4068, 0
      %v4128 = vsel %vm1038, %v4069, 0
      %v4131 = vsel %vm1038, %v4070, 0
      %v4134 = vsel %vm1038, %v4071, 0
      %v4137 = vsel %vm1038, %v4072, 0
      %v4140 = vsel %vm1038, %v4073, 0
      %v4143 = vsel %vm1038, %v4074, 0
      %v4146 = vsel %vm1038, %v4075, 0
      %v4149 = vsel %vm1038, %v4076, 0
      %v4152 = vsel %vm1038, %v4077, 0
      %v4155 = vsel %vm1038, %v4078, 0
      %v4158 = vsel %vm1038, %v4079, 0
      %v4161 = vsel %vm1038, %v4080, 0
      %v4164 = vsel %vm1038, %v4081, 0
      %v4167 = vsel %vm1038, %v4082, 0
      %v4170 = vsel %vm1038, %v4083, 0
      %v4173 = vsel %vm1038, %v4084, 0
      %v4176 = vsel %vm1038, %v4085, 0
      %v4179 = vsel %vm1038, %v4086, 0
      %v4182 = vsel %vm1038, %v4087, 0
      %4184 = vmatpush.msra.mxu0 0.0
      %4185 = vmatpush.msra.mxu0 0.0
      %4186 = vmatpush.msra.mxu0 0.0
      %4187 = vmatpush.msra.mxu0 0.0
      %4188 = vmatpush.msra.mxu0 0.0
      %4189 = vmatpush.msra.mxu0 0.0
      %4190 = vmatpush.msra.mxu0 0.0
      %4191 = vmatpush.msra.mxu0 0.0
      %4192 = vmatpush.msra.mxu0 0.0
      %4193 = vmatpush.msra.mxu0 0.0
      %4194 = vmatpush.msra.mxu0 0.0
      %4195 = vmatpush.msra.mxu0 0.0
      %4196 = vmatpush.msra.mxu0 0.0
      %4197 = vmatpush.msra.mxu0 0.0
      %4198 = vmatpush.msra.mxu0 0.0
      %4199 = vmatpush.msra.mxu0 %v1035
      %4200 = vmatmul.f32.gmra.mxu0 %v4089
      %v4201 = vpop.f32.mrf.mxu0
      %v4202 = vadd.f32 0.0, %v4201
      %4203 = vmatmul.f32.gmra.mxu0 %v4092
      %v4204 = vpop.f32.mrf.mxu0
      %v4205 = vadd.f32 0.0, %v4204
      %4206 = vmatmul.f32.gmra.mxu0 %v4095
      %v4207 = vpop.f32.mrf.mxu0
      %v4208 = vadd.f32 0.0, %v4207
      %4209 = vmatmul.f32.gmra.mxu0 %v4098
      %v4210 = vpop.f32.mrf.mxu0
      %v4211 = vadd.f32 0.0, %v4210
      %4212 = vmatmul.f32.gmra.mxu0 %v4101
      %v4213 = vpop.f32.mrf.mxu0
      %v4214 = vadd.f32 0.0, %v4213
      %4215 = vmatmul.f32.gmra.mxu0 %v4104
      %v4216 = vpop.f32.mrf.mxu0
      %v4217 = vadd.f32 0.0, %v4216
      %4218 = vmatmul.f32.gmra.mxu0 %v4107
      %v4219 = vpop.f32.mrf.mxu0
      %v4220 = vadd.f32 0.0, %v4219
      %4221 = vmatmul.f32.gmra.mxu0 %v4110
      %v4222 = vpop.f32.mrf.mxu0
      %v4223 = vadd.f32 0.0, %v4222
      %4224 = vmatmul.f32.gmra.mxu0 %v4113
      %v4225 = vpop.f32.mrf.mxu0
      %v4226 = vadd.f32 0.0, %v4225
      %4227 = vmatmul.f32.gmra.mxu0 %v4116
      %v4228 = vpop.f32.mrf.mxu0
      %v4229 = vadd.f32 0.0, %v4228
      %4230 = vmatmul.f32.gmra.mxu0 %v4119
      %v4231 = vpop.f32.mrf.mxu0
      %v4232 = vadd.f32 0.0, %v4231
      %4233 = vmatmul.f32.gmra.mxu0 %v4122
      %v4234 = vpop.f32.mrf.mxu0
      %v4235 = vadd.f32 0.0, %v4234
      %4236 = vmatmul.f32.gmra.mxu0 %v4125
      %v4237 = vpop.f32.mrf.mxu0
      %v4238 = vadd.f32 0.0, %v4237
      %4239 = vmatmul.f32.gmra.mxu0 %v4128
      %v4240 = vpop.f32.mrf.mxu0
      %v4241 = vadd.f32 0.0, %v4240
      %4242 = vmatmul.f32.gmra.mxu0 %v4131
      %v4243 = vpop.f32.mrf.mxu0
      %v4244 = vadd.f32 0.0, %v4243
      %4245 = vmatmul.f32.gmra.mxu0 %v4134
      %v4246 = vpop.f32.mrf.mxu0
      %v4247 = vadd.f32 0.0, %v4246
      %4248 = vmatmul.f32.gmra.mxu0 %v4137
      %v4249 = vpop.f32.mrf.mxu0
      %v4250 = vadd.f32 0.0, %v4249
      %4251 = vmatmul.f32.gmra.mxu0 %v4140
      %v4252 = vpop.f32.mrf.mxu0
      %v4253 = vadd.f32 0.0, %v4252
      %4254 = vmatmul.f32.gmra.mxu0 %v4143
      %v4255 = vpop.f32.mrf.mxu0
      %v4256 = vadd.f32 0.0, %v4255
      %4257 = vmatmul.f32.gmra.mxu0 %v4146
      %v4258 = vpop.f32.mrf.mxu0
      %v4259 = vadd.f32 0.0, %v4258
      %4260 = vmatmul.f32.gmra.mxu0 %v4149
      %v4261 = vpop.f32.mrf.mxu0
      %v4262 = vadd.f32 0.0, %v4261
      %4263 = vmatmul.f32.gmra.mxu0 %v4152
      %v4264 = vpop.f32.mrf.mxu0
      %v4265 = vadd.f32 0.0, %v4264
      %4266 = vmatmul.f32.gmra.mxu0 %v4155
      %v4267 = vpop.f32.mrf.mxu0
      %v4268 = vadd.f32 0.0, %v4267
      %4269 = vmatmul.f32.gmra.mxu0 %v4158
      %v4270 = vpop.f32.mrf.mxu0
      %v4271 = vadd.f32 0.0, %v4270
      %4272 = vmatmul.f32.gmra.mxu0 %v4161
      %v4273 = vpop.f32.mrf.mxu0
      %v4274 = vadd.f32 0.0, %v4273
      %4275 = vmatmul.f32.gmra.mxu0 %v4164
      %v4276 = vpop.f32.mrf.mxu0
      %v4277 = vadd.f32 0.0, %v4276
      %4278 = vmatmul.f32.gmra.mxu0 %v4167
      %v4279 = vpop.f32.mrf.mxu0
      %v4280 = vadd.f32 0.0, %v4279
      %4281 = vmatmul.f32.gmra.mxu0 %v4170
      %v4282 = vpop.f32.mrf.mxu0
      %v4283 = vadd.f32 0.0, %v4282
      %4284 = vmatmul.f32.gmra.mxu0 %v4173
      %v4285 = vpop.f32.mrf.mxu0
      %v4286 = vadd.f32 0.0, %v4285
      %4287 = vmatmul.f32.gmra.mxu0 %v4176
      %v4288 = vpop.f32.mrf.mxu0
      %v4289 = vadd.f32 0.0, %v4288
      %4290 = vmatmul.f32.gmra.mxu0 %v4179
      %v4291 = vpop.f32.mrf.mxu0
      %v4292 = vadd.f32 0.0, %v4291
      %4293 = vmatmul.f32.gmra.mxu0 %v4182
      %v4294 = vpop.f32.mrf.mxu0
      %v4295 = vadd.f32 0.0, %v4294
      %4296 = vdwg.mxu0
      %v4297 = vadd.f32 %v3103, %v4202
      %v4298 = vadd.f32 %v3106, %v4205
      %v4299 = vadd.f32 %v3109, %v4208
      %v4300 = vadd.f32 %v3112, %v4211
      %v4301 = vadd.f32 %v3115, %v4214
      %v4302 = vadd.f32 %v3118, %v4217
      %v4303 = vadd.f32 %v3121, %v4220
      %v4304 = vadd.f32 %v3124, %v4223
      %v4305 = vadd.f32 %v3127, %v4226
      %v4306 = vadd.f32 %v3130, %v4229
      %v4307 = vadd.f32 %v3133, %v4232
      %v4308 = vadd.f32 %v3136, %v4235
      %v4309 = vadd.f32 %v3139, %v4238
      %v4310 = vadd.f32 %v3142, %v4241
      %v4311 = vadd.f32 %v3145, %v4244
      %v4312 = vadd.f32 %v3148, %v4247
      %v4313 = vadd.f32 %v3151, %v4250
      %v4314 = vadd.f32 %v3154, %v4253
      %v4315 = vadd.f32 %v3157, %v4256
      %v4316 = vadd.f32 %v3160, %v4259
      %v4317 = vadd.f32 %v3163, %v4262
      %v4318 = vadd.f32 %v3166, %v4265
      %v4319 = vadd.f32 %v3169, %v4268
      %v4320 = vadd.f32 %v3172, %v4271
      %v4321 = vadd.f32 %v3175, %v4274
      %v4322 = vadd.f32 %v3178, %v4277
      %v4323 = vadd.f32 %v3181, %v4280
      %v4324 = vadd.f32 %v3184, %v4283
      %v4325 = vadd.f32 %v3187, %v4286
      %v4326 = vadd.f32 %v3190, %v4289
      %v4327 = vadd.f32 %v3193, %v4292
      %v4328 = vadd.f32 %v3196, %v4295
      %4329 = vrot.lane.b32.xlu0 %v597, 104
      %v4330 = vpop.permute.xlu0 %4329
      %4331 = vrot.lane.b32.xlu0 %v600, 104
      %v4332 = vpop.permute.xlu0 %4331
      %4333 = vrot.lane.b32.xlu0 %v603, 104
      %v4334 = vpop.permute.xlu0 %4333
      %4335 = vrot.lane.b32.xlu0 %v606, 104
      %v4336 = vpop.permute.xlu0 %4335
      %4337 = vrot.lane.b32.xlu0 %v609, 104
      %v4338 = vpop.permute.xlu0 %4337
      %4339 = vrot.lane.b32.xlu0 %v612, 104
      %v4340 = vpop.permute.xlu0 %4339
      %4341 = vrot.lane.b32.xlu0 %v615, 104
      %v4342 = vpop.permute.xlu0 %4341
      %4343 = vrot.lane.b32.xlu0 %v618, 104
      %v4344 = vpop.permute.xlu0 %4343
      %4345 = vrot.lane.b32.xlu0 %v621, 104
      %v4346 = vpop.permute.xlu0 %4345
      %4347 = vrot.lane.b32.xlu0 %v624, 104
      %v4348 = vpop.permute.xlu0 %4347
      %4349 = vrot.lane.b32.xlu0 %v627, 104
      %v4350 = vpop.permute.xlu0 %4349
      %4351 = vrot.lane.b32.xlu0 %v630, 104
      %v4352 = vpop.permute.xlu0 %4351
      %4353 = vrot.lane.b32.xlu0 %v633, 104
      %v4354 = vpop.permute.xlu0 %4353
      %4355 = vrot.lane.b32.xlu0 %v636, 104
      %v4356 = vpop.permute.xlu0 %4355
      %4357 = vrot.lane.b32.xlu0 %v639, 104
      %v4358 = vpop.permute.xlu0 %4357
      %4359 = vrot.lane.b32.xlu0 %v642, 104
      %v4360 = vpop.permute.xlu0 %4359
      %4361 = vrot.lane.b32.xlu0 %v645, 104
      %v4362 = vpop.permute.xlu0 %4361
      %4363 = vrot.lane.b32.xlu0 %v648, 104
      %v4364 = vpop.permute.xlu0 %4363
      %4365 = vrot.lane.b32.xlu0 %v651, 104
      %v4366 = vpop.permute.xlu0 %4365
      %4367 = vrot.lane.b32.xlu0 %v654, 104
      %v4368 = vpop.permute.xlu0 %4367
      %4369 = vrot.lane.b32.xlu0 %v657, 104
      %v4370 = vpop.permute.xlu0 %4369
      %4371 = vrot.lane.b32.xlu0 %v660, 104
      %v4372 = vpop.permute.xlu0 %4371
      %4373 = vrot.lane.b32.xlu0 %v663, 104
      %v4374 = vpop.permute.xlu0 %4373
      %4375 = vrot.lane.b32.xlu0 %v666, 104
      %v4376 = vpop.permute.xlu0 %4375
      %4377 = vrot.lane.b32.xlu0 %v669, 104
      %v4378 = vpop.permute.xlu0 %4377
      %4379 = vrot.lane.b32.xlu0 %v672, 104
      %v4380 = vpop.permute.xlu0 %4379
      %4381 = vrot.lane.b32.xlu0 %v675, 104
      %v4382 = vpop.permute.xlu0 %4381
      %4383 = vrot.lane.b32.xlu0 %v678, 104
      %v4384 = vpop.permute.xlu0 %4383
      %4385 = vrot.lane.b32.xlu0 %v681, 104
      %v4386 = vpop.permute.xlu0 %4385
      %4387 = vrot.lane.b32.xlu0 %v684, 104
      %v4388 = vpop.permute.xlu0 %4387
      %4389 = vrot.lane.b32.xlu0 %v687, 104
      %v4390 = vpop.permute.xlu0 %4389
      %4391 = vrot.lane.b32.xlu0 %v690, 104
      %v4392 = vpop.permute.xlu0 %4391
      %4393 = vrot.lane.b32.xlu0 %v1010, 104
      %v4394 = vpop.permute.xlu0 %4393
      %4395 = vrot.lane.b32.xlu0 %v1013, 104
      %v4396 = vpop.permute.xlu0 %4395
      %4397 = vrot.lane.b32.xlu0 %v1016, 104
      %v4398 = vpop.permute.xlu0 %4397
      %4399 = vrot.lane.b32.xlu0 %v1019, 104
      %v4400 = vpop.permute.xlu0 %4399
      %4401 = vrot.lane.b32.xlu0 %v1022, 104
      %v4402 = vpop.permute.xlu0 %4401
      %4403 = vrot.lane.b32.xlu0 %v1025, 104
      %v4404 = vpop.permute.xlu0 %4403
      %4405 = vrot.lane.b32.xlu0 %v1028, 104
      %v4406 = vpop.permute.xlu0 %4405
      %4407 = vrot.lane.b32.xlu0 %v1031, 104
      %v4408 = vpop.permute.xlu0 %4407
      %v4409 = vsel %vm1038, %v4330, 0
      %v4411 = vsel %vm1038, %v4332, 0
      %v4413 = vsel %vm1038, %v4334, 0
      %v4415 = vsel %vm1038, %v4336, 0
      %v4417 = vsel %vm1038, %v4338, 0
      %v4419 = vsel %vm1038, %v4340, 0
      %v4421 = vsel %vm1038, %v4342, 0
      %v4423 = vsel %vm1038, %v4344, 0
      %v4425 = vsel %vm1038, %v4346, 0
      %v4427 = vsel %vm1038, %v4348, 0
      %v4429 = vsel %vm1038, %v4350, 0
      %v4431 = vsel %vm1038, %v4352, 0
      %v4433 = vsel %vm1038, %v4354, 0
      %v4435 = vsel %vm1038, %v4356, 0
      %v4437 = vsel %vm1038, %v4358, 0
      %v4439 = vsel %vm1038, %v4360, 0
      %v4441 = vsel %vm1038, %v4362, 0
      %v4443 = vsel %vm1038, %v4364, 0
      %v4445 = vsel %vm1038, %v4366, 0
      %v4447 = vsel %vm1038, %v4368, 0
      %v4449 = vsel %vm1038, %v4370, 0
      %v4451 = vsel %vm1038, %v4372, 0
      %v4453 = vsel %vm1038, %v4374, 0
      %v4455 = vsel %vm1038, %v4376, 0
      %v4457 = vsel %vm1038, %v4378, 0
      %v4459 = vsel %vm1038, %v4380, 0
      %v4461 = vsel %vm1038, %v4382, 0
      %v4463 = vsel %vm1038, %v4384, 0
      %v4465 = vsel %vm1038, %v4386, 0
      %v4467 = vsel %vm1038, %v4388, 0
      %v4469 = vsel %vm1038, %v4390, 0
      %v4471 = vsel %vm1038, %v4392, 0
      %v4473 = vsel %vm1038, %v4394, 0
      %v4475 = vsel %vm1038, %v4396, 0
      %v4477 = vsel %vm1038, %v4398, 0
      %v4479 = vsel %vm1038, %v4400, 0
      %v4481 = vsel %vm1038, %v4402, 0
      %v4483 = vsel %vm1038, %v4404, 0
      %v4485 = vsel %vm1038, %v4406, 0
      %v4487 = vsel %vm1038, %v4408, 0
      %4489 = vmatpush.xpose.msra.mxu0 0.0
      %4490 = vmatpush.xpose.msra.mxu0 0.0
      %4491 = vmatpush.xpose.msra.mxu0 0.0
      %4492 = vmatpush.xpose.msra.mxu0 0.0
      %4493 = vmatpush.xpose.msra.mxu0 0.0
      %4494 = vmatpush.xpose.msra.mxu0 0.0
      %4495 = vmatpush.xpose.msra.mxu0 0.0
      %4496 = vmatpush.xpose.msra.mxu0 0.0
      %4497 = vmatpush.xpose.msra.mxu0 %v4487
      %4498 = vmatpush.xpose.msra.mxu0 %v4485
      %4499 = vmatpush.xpose.msra.mxu0 %v4483
      %4500 = vmatpush.xpose.msra.mxu0 %v4481
      %4501 = vmatpush.xpose.msra.mxu0 %v4479
      %4502 = vmatpush.xpose.msra.mxu0 %v4477
      %4503 = vmatpush.xpose.msra.mxu0 %v4475
      %4504 = vmatpush.xpose.msra.mxu0 %v4473
      %4505 = vmatmul.f32.gmra.mxu0 %v4409
      %v4506 = vpop.f32.mrf.mxu0
      %v4507 = vadd.f32 0.0, %v4506
      %4508 = vmatmul.f32.gmra.mxu0 %v4411
      %v4509 = vpop.f32.mrf.mxu0
      %v4510 = vadd.f32 0.0, %v4509
      %4511 = vmatmul.f32.gmra.mxu0 %v4413
      %v4512 = vpop.f32.mrf.mxu0
      %v4513 = vadd.f32 0.0, %v4512
      %4514 = vmatmul.f32.gmra.mxu0 %v4415
      %v4515 = vpop.f32.mrf.mxu0
      %v4516 = vadd.f32 0.0, %v4515
      %4517 = vmatmul.f32.gmra.mxu0 %v4417
      %v4518 = vpop.f32.mrf.mxu0
      %v4519 = vadd.f32 0.0, %v4518
      %4520 = vmatmul.f32.gmra.mxu0 %v4419
      %v4521 = vpop.f32.mrf.mxu0
      %v4522 = vadd.f32 0.0, %v4521
      %4523 = vmatmul.f32.gmra.mxu0 %v4421
      %v4524 = vpop.f32.mrf.mxu0
      %v4525 = vadd.f32 0.0, %v4524
      %4526 = vmatmul.f32.gmra.mxu0 %v4423
      %v4527 = vpop.f32.mrf.mxu0
      %v4528 = vadd.f32 0.0, %v4527
      %4529 = vmatmul.f32.gmra.mxu0 %v4425
      %v4530 = vpop.f32.mrf.mxu0
      %v4531 = vadd.f32 0.0, %v4530
      %4532 = vmatmul.f32.gmra.mxu0 %v4427
      %v4533 = vpop.f32.mrf.mxu0
      %v4534 = vadd.f32 0.0, %v4533
      %4535 = vmatmul.f32.gmra.mxu0 %v4429
      %v4536 = vpop.f32.mrf.mxu0
      %v4537 = vadd.f32 0.0, %v4536
      %4538 = vmatmul.f32.gmra.mxu0 %v4431
      %v4539 = vpop.f32.mrf.mxu0
      %v4540 = vadd.f32 0.0, %v4539
      %4541 = vmatmul.f32.gmra.mxu0 %v4433
      %v4542 = vpop.f32.mrf.mxu0
      %v4543 = vadd.f32 0.0, %v4542
      %4544 = vmatmul.f32.gmra.mxu0 %v4435
      %v4545 = vpop.f32.mrf.mxu0
      %v4546 = vadd.f32 0.0, %v4545
      %4547 = vmatmul.f32.gmra.mxu0 %v4437
      %v4548 = vpop.f32.mrf.mxu0
      %v4549 = vadd.f32 0.0, %v4548
      %4550 = vmatmul.f32.gmra.mxu0 %v4439
      %v4551 = vpop.f32.mrf.mxu0
      %v4552 = vadd.f32 0.0, %v4551
      %4553 = vmatmul.f32.gmra.mxu0 %v4441
      %v4554 = vpop.f32.mrf.mxu0
      %v4555 = vadd.f32 0.0, %v4554
      %4556 = vmatmul.f32.gmra.mxu0 %v4443
      %v4557 = vpop.f32.mrf.mxu0
      %v4558 = vadd.f32 0.0, %v4557
      %4559 = vmatmul.f32.gmra.mxu0 %v4445
      %v4560 = vpop.f32.mrf.mxu0
      %v4561 = vadd.f32 0.0, %v4560
      %4562 = vmatmul.f32.gmra.mxu0 %v4447
      %v4563 = vpop.f32.mrf.mxu0
      %v4564 = vadd.f32 0.0, %v4563
      %4565 = vmatmul.f32.gmra.mxu0 %v4449
      %v4566 = vpop.f32.mrf.mxu0
      %v4567 = vadd.f32 0.0, %v4566
      %4568 = vmatmul.f32.gmra.mxu0 %v4451
      %v4569 = vpop.f32.mrf.mxu0
      %v4570 = vadd.f32 0.0, %v4569
      %4571 = vmatmul.f32.gmra.mxu0 %v4453
      %v4572 = vpop.f32.mrf.mxu0
      %v4573 = vadd.f32 0.0, %v4572
      %4574 = vmatmul.f32.gmra.mxu0 %v4455
      %v4575 = vpop.f32.mrf.mxu0
      %v4576 = vadd.f32 0.0, %v4575
      %4577 = vmatmul.f32.gmra.mxu0 %v4457
      %v4578 = vpop.f32.mrf.mxu0
      %v4579 = vadd.f32 0.0, %v4578
      %4580 = vmatmul.f32.gmra.mxu0 %v4459
      %v4581 = vpop.f32.mrf.mxu0
      %v4582 = vadd.f32 0.0, %v4581
      %4583 = vmatmul.f32.gmra.mxu0 %v4461
      %v4584 = vpop.f32.mrf.mxu0
      %v4585 = vadd.f32 0.0, %v4584
      %4586 = vmatmul.f32.gmra.mxu0 %v4463
      %v4587 = vpop.f32.mrf.mxu0
      %v4588 = vadd.f32 0.0, %v4587
      %4589 = vmatmul.f32.gmra.mxu0 %v4465
      %v4590 = vpop.f32.mrf.mxu0
      %v4591 = vadd.f32 0.0, %v4590
      %4592 = vmatmul.f32.gmra.mxu0 %v4467
      %v4593 = vpop.f32.mrf.mxu0
      %v4594 = vadd.f32 0.0, %v4593
      %4595 = vmatmul.f32.gmra.mxu0 %v4469
      %v4596 = vpop.f32.mrf.mxu0
      %v4597 = vadd.f32 0.0, %v4596
      %4598 = vmatmul.f32.gmra.mxu0 %v4471
      %v4599 = vpop.f32.mrf.mxu0
      %v4600 = vadd.f32 0.0, %v4599
      %4601 = vdwg.mxu0
      %v4602 = vmul.f32 %v4507, 0.35355338
      %v4603 = vmul.f32 %v4510, 0.35355338
      %v4604 = vmul.f32 %v4513, 0.35355338
      %v4605 = vmul.f32 %v4516, 0.35355338
      %v4606 = vmul.f32 %v4519, 0.35355338
      %v4607 = vmul.f32 %v4522, 0.35355338
      %v4608 = vmul.f32 %v4525, 0.35355338
      %v4609 = vmul.f32 %v4528, 0.35355338
      %v4610 = vmul.f32 %v4531, 0.35355338
      %v4611 = vmul.f32 %v4534, 0.35355338
      %v4612 = vmul.f32 %v4537, 0.35355338
      %v4613 = vmul.f32 %v4540, 0.35355338
      %v4614 = vmul.f32 %v4543, 0.35355338
      %v4615 = vmul.f32 %v4546, 0.35355338
      %v4616 = vmul.f32 %v4549, 0.35355338
      %v4617 = vmul.f32 %v4552, 0.35355338
      %v4618 = vmul.f32 %v4555, 0.35355338
      %v4619 = vmul.f32 %v4558, 0.35355338
      %v4620 = vmul.f32 %v4561, 0.35355338
      %v4621 = vmul.f32 %v4564, 0.35355338
      %v4622 = vmul.f32 %v4567, 0.35355338
      %v4623 = vmul.f32 %v4570, 0.35355338
      %v4624 = vmul.f32 %v4573, 0.35355338
      %v4625 = vmul.f32 %v4576, 0.35355338
      %v4626 = vmul.f32 %v4579, 0.35355338
      %v4627 = vmul.f32 %v4582, 0.35355338
      %v4628 = vmul.f32 %v4585, 0.35355338
      %v4629 = vmul.f32 %v4588, 0.35355338
      %v4630 = vmul.f32 %v4591, 0.35355338
      %v4631 = vmul.f32 %v4594, 0.35355338
      %v4632 = vmul.f32 %v4597, 0.35355338
      %v4633 = vmul.f32 %v4600, 0.35355338
      %v4634 = vsel %vm1304, %v4602, -inf
      %4635 = vmax.xlane.f32.xlu0 %v4634
      %v4636 = vpop.xlane.xlu0 %4635
      %v4637 = vsel %vm1304, %v4603, -inf
      %4638 = vmax.xlane.f32.xlu0 %v4637
      %v4639 = vpop.xlane.xlu0 %4638
      %v4640 = vsel %vm1304, %v4604, -inf
      %4641 = vmax.xlane.f32.xlu0 %v4640
      %v4642 = vpop.xlane.xlu0 %4641
      %v4643 = vsel %vm1304, %v4605, -inf
      %4644 = vmax.xlane.f32.xlu0 %v4643
      %v4645 = vpop.xlane.xlu0 %4644
      %v4646 = vsel %vm1304, %v4606, -inf
      %4647 = vmax.xlane.f32.xlu0 %v4646
      %v4648 = vpop.xlane.xlu0 %4647
      %v4649 = vsel %vm1304, %v4607, -inf
      %4650 = vmax.xlane.f32.xlu0 %v4649
      %v4651 = vpop.xlane.xlu0 %4650
      %v4652 = vsel %vm1304, %v4608, -inf
      %4653 = vmax.xlane.f32.xlu0 %v4652
      %v4654 = vpop.xlane.xlu0 %4653
      %v4655 = vsel %vm1304, %v4609, -inf
      %4656 = vmax.xlane.f32.xlu0 %v4655
      %v4657 = vpop.xlane.xlu0 %4656
      %v4658 = vsel %vm1304, %v4610, -inf
      %4659 = vmax.xlane.f32.xlu0 %v4658
      %v4660 = vpop.xlane.xlu0 %4659
      %v4661 = vsel %vm1304, %v4611, -inf
      %4662 = vmax.xlane.f32.xlu0 %v4661
      %v4663 = vpop.xlane.xlu0 %4662
      %v4664 = vsel %vm1304, %v4612, -inf
      %4665 = vmax.xlane.f32.xlu0 %v4664
      %v4666 = vpop.xlane.xlu0 %4665
      %v4667 = vsel %vm1304, %v4613, -inf
      %4668 = vmax.xlane.f32.xlu0 %v4667
      %v4669 = vpop.xlane.xlu0 %4668
      %v4670 = vsel %vm1304, %v4614, -inf
      %4671 = vmax.xlane.f32.xlu0 %v4670
      %v4672 = vpop.xlane.xlu0 %4671
      %v4673 = vsel %vm1304, %v4615, -inf
      %4674 = vmax.xlane.f32.xlu0 %v4673
      %v4675 = vpop.xlane.xlu0 %4674
      %v4676 = vsel %vm1304, %v4616, -inf
      %4677 = vmax.xlane.f32.xlu0 %v4676
      %v4678 = vpop.xlane.xlu0 %4677
      %v4679 = vsel %vm1304, %v4617, -inf
      %4680 = vmax.xlane.f32.xlu0 %v4679
      %v4681 = vpop.xlane.xlu0 %4680
      %v4682 = vsel %vm1304, %v4618, -inf
      %4683 = vmax.xlane.f32.xlu0 %v4682
      %v4684 = vpop.xlane.xlu0 %4683
      %v4685 = vsel %vm1304, %v4619, -inf
      %4686 = vmax.xlane.f32.xlu0 %v4685
      %v4687 = vpop.xlane.xlu0 %4686
      %v4688 = vsel %vm1304, %v4620, -inf
      %4689 = vmax.xlane.f32.xlu0 %v4688
      %v4690 = vpop.xlane.xlu0 %4689
      %v4691 = vsel %vm1304, %v4621, -inf
      %4692 = vmax.xlane.f32.xlu0 %v4691
      %v4693 = vpop.xlane.xlu0 %4692
      %v4694 = vsel %vm1304, %v4622, -inf
      %4695 = vmax.xlane.f32.xlu0 %v4694
      %v4696 = vpop.xlane.xlu0 %4695
      %v4697 = vsel %vm1304, %v4623, -inf
      %4698 = vmax.xlane.f32.xlu0 %v4697
      %v4699 = vpop.xlane.xlu0 %4698
      %v4700 = vsel %vm1304, %v4624, -inf
      %4701 = vmax.xlane.f32.xlu0 %v4700
      %v4702 = vpop.xlane.xlu0 %4701
      %v4703 = vsel %vm1304, %v4625, -inf
      %4704 = vmax.xlane.f32.xlu0 %v4703
      %v4705 = vpop.xlane.xlu0 %4704
      %v4706 = vsel %vm1304, %v4626, -inf
      %4707 = vmax.xlane.f32.xlu0 %v4706
      %v4708 = vpop.xlane.xlu0 %4707
      %v4709 = vsel %vm1304, %v4627, -inf
      %4710 = vmax.xlane.f32.xlu0 %v4709
      %v4711 = vpop.xlane.xlu0 %4710
      %v4712 = vsel %vm1304, %v4628, -inf
      %4713 = vmax.xlane.f32.xlu0 %v4712
      %v4714 = vpop.xlane.xlu0 %4713
      %v4715 = vsel %vm1304, %v4629, -inf
      %4716 = vmax.xlane.f32.xlu0 %v4715
      %v4717 = vpop.xlane.xlu0 %4716
      %v4718 = vsel %vm1304, %v4630, -inf
      %4719 = vmax.xlane.f32.xlu0 %v4718
      %v4720 = vpop.xlane.xlu0 %4719
      %v4721 = vsel %vm1304, %v4631, -inf
      %4722 = vmax.xlane.f32.xlu0 %v4721
      %v4723 = vpop.xlane.xlu0 %4722
      %v4724 = vsel %vm1304, %v4632, -inf
      %4725 = vmax.xlane.f32.xlu0 %v4724
      %v4726 = vpop.xlane.xlu0 %4725
      %v4727 = vsel %vm1304, %v4633, -inf
      %4728 = vmax.xlane.f32.xlu0 %v4727
      %v4729 = vpop.xlane.xlu0 %4728
      %v4730 = vsub.f32 %v4602, %v4636
      %v4731 = vsub.f32 %v4603, %v4639
      %v4732 = vsub.f32 %v4604, %v4642
      %v4733 = vsub.f32 %v4605, %v4645
      %v4734 = vsub.f32 %v4606, %v4648
      %v4735 = vsub.f32 %v4607, %v4651
      %v4736 = vsub.f32 %v4608, %v4654
      %v4737 = vsub.f32 %v4609, %v4657
      %v4738 = vsub.f32 %v4610, %v4660
      %v4739 = vsub.f32 %v4611, %v4663
      %v4740 = vsub.f32 %v4612, %v4666
      %v4741 = vsub.f32 %v4613, %v4669
      %v4742 = vsub.f32 %v4614, %v4672
      %v4743 = vsub.f32 %v4615, %v4675
      %v4744 = vsub.f32 %v4616, %v4678
      %v4745 = vsub.f32 %v4617, %v4681
      %v4746 = vsub.f32 %v4618, %v4684
      %v4747 = vsub.f32 %v4619, %v4687
      %v4748 = vsub.f32 %v4620, %v4690
      %v4749 = vsub.f32 %v4621, %v4693
      %v4750 = vsub.f32 %v4622, %v4696
      %v4751 = vsub.f32 %v4623, %v4699
      %v4752 = vsub.f32 %v4624, %v4702
      %v4753 = vsub.f32 %v4625, %v4705
      %v4754 = vsub.f32 %v4626, %v4708
      %v4755 = vsub.f32 %v4627, %v4711
      %v4756 = vsub.f32 %v4628, %v4714
      %v4757 = vsub.f32 %v4629, %v4717
      %v4758 = vsub.f32 %v4630, %v4720
      %v4759 = vsub.f32 %v4631, %v4723
      %v4760 = vsub.f32 %v4632, %v4726
      %v4761 = vsub.f32 %v4633, %v4729
      %v4762 = vmul.f32 %v4730, 1.442695
      %v4763 = vpow.pop %v4762
      %v4764 = vmul.f32 %v4731, 1.442695
      %v4765 = vpow.pop %v4764
      %v4766 = vmul.f32 %v4732, 1.442695
      %v4767 = vpow.pop %v4766
      %v4768 = vmul.f32 %v4733, 1.442695
      %v4769 = vpow.pop %v4768
      %v4770 = vmul.f32 %v4734, 1.442695
      %v4771 = vpow.pop %v4770
      %v4772 = vmul.f32 %v4735, 1.442695
      %v4773 = vpow.pop %v4772
      %v4774 = vmul.f32 %v4736, 1.442695
      %v4775 = vpow.pop %v4774
      %v4776 = vmul.f32 %v4737, 1.442695
      %v4777 = vpow.pop %v4776
      %v4778 = vmul.f32 %v4738, 1.442695
      %v4779 = vpow.pop %v4778
      %v4780 = vmul.f32 %v4739, 1.442695
      %v4781 = vpow.pop %v4780
      %v4782 = vmul.f32 %v4740, 1.442695
      %v4783 = vpow.pop %v4782
      %v4784 = vmul.f32 %v4741, 1.442695
      %v4785 = vpow.pop %v4784
      %v4786 = vmul.f32 %v4742, 1.442695
      %v4787 = vpow.pop %v4786
      %v4788 = vmul.f32 %v4743, 1.442695
      %v4789 = vpow.pop %v4788
      %v4790 = vmul.f32 %v4744, 1.442695
      %v4791 = vpow.pop %v4790
      %v4792 = vmul.f32 %v4745, 1.442695
      %v4793 = vpow.pop %v4792
      %v4794 = vmul.f32 %v4746, 1.442695
      %v4795 = vpow.pop %v4794
      %v4796 = vmul.f32 %v4747, 1.442695
      %v4797 = vpow.pop %v4796
      %v4798 = vmul.f32 %v4748, 1.442695
      %v4799 = vpow.pop %v4798
      %v4800 = vmul.f32 %v4749, 1.442695
      %v4801 = vpow.pop %v4800
      %v4802 = vmul.f32 %v4750, 1.442695
      %v4803 = vpow.pop %v4802
      %v4804 = vmul.f32 %v4751, 1.442695
      %v4805 = vpow.pop %v4804
      %v4806 = vmul.f32 %v4752, 1.442695
      %v4807 = vpow.pop %v4806
      %v4808 = vmul.f32 %v4753, 1.442695
      %v4809 = vpow.pop %v4808
      %v4810 = vmul.f32 %v4754, 1.442695
      %v4811 = vpow.pop %v4810
      %v4812 = vmul.f32 %v4755, 1.442695
      %v4813 = vpow.pop %v4812
      %v4814 = vmul.f32 %v4756, 1.442695
      %v4815 = vpow.pop %v4814
      %v4816 = vmul.f32 %v4757, 1.442695
      %v4817 = vpow.pop %v4816
      %v4818 = vmul.f32 %v4758, 1.442695
      %v4819 = vpow.pop %v4818
      %v4820 = vmul.f32 %v4759, 1.442695
      %v4821 = vpow.pop %v4820
      %v4822 = vmul.f32 %v4760, 1.442695
      %v4823 = vpow.pop %v4822
      %v4824 = vmul.f32 %v4761, 1.442695
      %v4825 = vpow.pop %v4824
      %v4826 = vsel %vm1304, %v4763, 0.0
      %4827 = vadd.xlane.f32.xlu0 %v4826
      %v4828 = vpop.xlane.xlu0 %4827
      %v4829 = vsel %vm1304, %v4765, 0.0
      %4830 = vadd.xlane.f32.xlu0 %v4829
      %v4831 = vpop.xlane.xlu0 %4830
      %v4832 = vsel %vm1304, %v4767, 0.0
      %4833 = vadd.xlane.f32.xlu0 %v4832
      %v4834 = vpop.xlane.xlu0 %4833
      %v4835 = vsel %vm1304, %v4769, 0.0
      %4836 = vadd.xlane.f32.xlu0 %v4835
      %v4837 = vpop.xlane.xlu0 %4836
      %v4838 = vsel %vm1304, %v4771, 0.0
      %4839 = vadd.xlane.f32.xlu0 %v4838
      %v4840 = vpop.xlane.xlu0 %4839
      %v4841 = vsel %vm1304, %v4773, 0.0
      %4842 = vadd.xlane.f32.xlu0 %v4841
      %v4843 = vpop.xlane.xlu0 %4842
      %v4844 = vsel %vm1304, %v4775, 0.0
      %4845 = vadd.xlane.f32.xlu0 %v4844
      %v4846 = vpop.xlane.xlu0 %4845
      %v4847 = vsel %vm1304, %v4777, 0.0
      %4848 = vadd.xlane.f32.xlu0 %v4847
      %v4849 = vpop.xlane.xlu0 %4848
      %v4850 = vsel %vm1304, %v4779, 0.0
      %4851 = vadd.xlane.f32.xlu0 %v4850
      %v4852 = vpop.xlane.xlu0 %4851
      %v4853 = vsel %vm1304, %v4781, 0.0
      %4854 = vadd.xlane.f32.xlu0 %v4853
      %v4855 = vpop.xlane.xlu0 %4854
      %v4856 = vsel %vm1304, %v4783, 0.0
      %4857 = vadd.xlane.f32.xlu0 %v4856
      %v4858 = vpop.xlane.xlu0 %4857
      %v4859 = vsel %vm1304, %v4785, 0.0
      %4860 = vadd.xlane.f32.xlu0 %v4859
      %v4861 = vpop.xlane.xlu0 %4860
      %v4862 = vsel %vm1304, %v4787, 0.0
      %4863 = vadd.xlane.f32.xlu0 %v4862
      %v4864 = vpop.xlane.xlu0 %4863
      %v4865 = vsel %vm1304, %v4789, 0.0
      %4866 = vadd.xlane.f32.xlu0 %v4865
      %v4867 = vpop.xlane.xlu0 %4866
      %v4868 = vsel %vm1304, %v4791, 0.0
      %4869 = vadd.xlane.f32.xlu0 %v4868
      %v4870 = vpop.xlane.xlu0 %4869
      %v4871 = vsel %vm1304, %v4793, 0.0
      %4872 = vadd.xlane.f32.xlu0 %v4871
      %v4873 = vpop.xlane.xlu0 %4872
      %v4874 = vsel %vm1304, %v4795, 0.0
      %4875 = vadd.xlane.f32.xlu0 %v4874
      %v4876 = vpop.xlane.xlu0 %4875
      %v4877 = vsel %vm1304, %v4797, 0.0
      %4878 = vadd.xlane.f32.xlu0 %v4877
      %v4879 = vpop.xlane.xlu0 %4878
      %v4880 = vsel %vm1304, %v4799, 0.0
      %4881 = vadd.xlane.f32.xlu0 %v4880
      %v4882 = vpop.xlane.xlu0 %4881
      %v4883 = vsel %vm1304, %v4801, 0.0
      %4884 = vadd.xlane.f32.xlu0 %v4883
      %v4885 = vpop.xlane.xlu0 %4884
      %v4886 = vsel %vm1304, %v4803, 0.0
      %4887 = vadd.xlane.f32.xlu0 %v4886
      %v4888 = vpop.xlane.xlu0 %4887
      %v4889 = vsel %vm1304, %v4805, 0.0
      %4890 = vadd.xlane.f32.xlu0 %v4889
      %v4891 = vpop.xlane.xlu0 %4890
      %v4892 = vsel %vm1304, %v4807, 0.0
      %4893 = vadd.xlane.f32.xlu0 %v4892
      %v4894 = vpop.xlane.xlu0 %4893
      %v4895 = vsel %vm1304, %v4809, 0.0
      %4896 = vadd.xlane.f32.xlu0 %v4895
      %v4897 = vpop.xlane.xlu0 %4896
      %v4898 = vsel %vm1304, %v4811, 0.0
      %4899 = vadd.xlane.f32.xlu0 %v4898
      %v4900 = vpop.xlane.xlu0 %4899
      %v4901 = vsel %vm1304, %v4813, 0.0
      %4902 = vadd.xlane.f32.xlu0 %v4901
      %v4903 = vpop.xlane.xlu0 %4902
      %v4904 = vsel %vm1304, %v4815, 0.0
      %4905 = vadd.xlane.f32.xlu0 %v4904
      %v4906 = vpop.xlane.xlu0 %4905
      %v4907 = vsel %vm1304, %v4817, 0.0
      %4908 = vadd.xlane.f32.xlu0 %v4907
      %v4909 = vpop.xlane.xlu0 %4908
      %v4910 = vsel %vm1304, %v4819, 0.0
      %4911 = vadd.xlane.f32.xlu0 %v4910
      %v4912 = vpop.xlane.xlu0 %4911
      %v4913 = vsel %vm1304, %v4821, 0.0
      %4914 = vadd.xlane.f32.xlu0 %v4913
      %v4915 = vpop.xlane.xlu0 %4914
      %v4916 = vsel %vm1304, %v4823, 0.0
      %4917 = vadd.xlane.f32.xlu0 %v4916
      %v4918 = vpop.xlane.xlu0 %4917
      %v4919 = vsel %vm1304, %v4825, 0.0
      %4920 = vadd.xlane.f32.xlu0 %v4919
      %v4921 = vpop.xlane.xlu0 %4920
      %4922 = vrot.lane.b32.xlu0 %v1010, 72
      %v4923 = vpop.permute.xlu0 %4922
      %4924 = vrot.lane.b32.xlu0 %v1013, 72
      %v4925 = vpop.permute.xlu0 %4924
      %4926 = vrot.lane.b32.xlu0 %v1016, 72
      %v4927 = vpop.permute.xlu0 %4926
      %4928 = vrot.lane.b32.xlu0 %v1019, 72
      %v4929 = vpop.permute.xlu0 %4928
      %4930 = vrot.lane.b32.xlu0 %v1022, 72
      %v4931 = vpop.permute.xlu0 %4930
      %4932 = vrot.lane.b32.xlu0 %v1025, 72
      %v4933 = vpop.permute.xlu0 %4932
      %4934 = vrot.lane.b32.xlu0 %v1028, 72
      %v4935 = vpop.permute.xlu0 %4934
      %4936 = vrot.lane.b32.xlu0 %v1031, 72
      %v4937 = vpop.permute.xlu0 %4936
      %v4947 = vsel %vm1304, %v4763, 0
      %v4950 = vsel %vm1304, %v4765, 0
      %v4953 = vsel %vm1304, %v4767, 0
      %v4956 = vsel %vm1304, %v4769, 0
      %v4959 = vsel %vm1304, %v4771, 0
      %v4962 = vsel %vm1304, %v4773, 0
      %v4965 = vsel %vm1304, %v4775, 0
      %v4968 = vsel %vm1304, %v4777, 0
      %v4971 = vsel %vm1304, %v4779, 0
      %v4974 = vsel %vm1304, %v4781, 0
      %v4977 = vsel %vm1304, %v4783, 0
      %v4980 = vsel %vm1304, %v4785, 0
      %v4983 = vsel %vm1304, %v4787, 0
      %v4986 = vsel %vm1304, %v4789, 0
      %v4989 = vsel %vm1304, %v4791, 0
      %v4992 = vsel %vm1304, %v4793, 0
      %v4995 = vsel %vm1304, %v4795, 0
      %v4998 = vsel %vm1304, %v4797, 0
      %v5001 = vsel %vm1304, %v4799, 0
      %v5004 = vsel %vm1304, %v4801, 0
      %v5007 = vsel %vm1304, %v4803, 0
      %v5010 = vsel %vm1304, %v4805, 0
      %v5013 = vsel %vm1304, %v4807, 0
      %v5016 = vsel %vm1304, %v4809, 0
      %v5019 = vsel %vm1304, %v4811, 0
      %v5022 = vsel %vm1304, %v4813, 0
      %v5025 = vsel %vm1304, %v4815, 0
      %v5028 = vsel %vm1304, %v4817, 0
      %v5031 = vsel %vm1304, %v4819, 0
      %v5034 = vsel %vm1304, %v4821, 0
      %v5037 = vsel %vm1304, %v4823, 0
      %v5040 = vsel %vm1304, %v4825, 0
      %5042 = vmatpush.msra.mxu0 0.0
      %5043 = vmatpush.msra.mxu0 0.0
      %5044 = vmatpush.msra.mxu0 0.0
      %5045 = vmatpush.msra.mxu0 0.0
      %5046 = vmatpush.msra.mxu0 0.0
      %5047 = vmatpush.msra.mxu0 0.0
      %5048 = vmatpush.msra.mxu0 0.0
      %5049 = vmatpush.msra.mxu0 0.0
      %5050 = vmatpush.msra.mxu0 %v4937
      %5051 = vmatpush.msra.mxu0 %v4935
      %5052 = vmatpush.msra.mxu0 %v4933
      %5053 = vmatpush.msra.mxu0 %v4931
      %5054 = vmatpush.msra.mxu0 %v4929
      %5055 = vmatpush.msra.mxu0 %v4927
      %5056 = vmatpush.msra.mxu0 %v4925
      %5057 = vmatpush.msra.mxu0 %v4923
      %5058 = vmatmul.f32.gmra.mxu0 %v4947
      %v5059 = vpop.f32.mrf.mxu0
      %v5060 = vadd.f32 0.0, %v5059
      %5061 = vmatmul.f32.gmra.mxu0 %v4950
      %v5062 = vpop.f32.mrf.mxu0
      %v5063 = vadd.f32 0.0, %v5062
      %5064 = vmatmul.f32.gmra.mxu0 %v4953
      %v5065 = vpop.f32.mrf.mxu0
      %v5066 = vadd.f32 0.0, %v5065
      %5067 = vmatmul.f32.gmra.mxu0 %v4956
      %v5068 = vpop.f32.mrf.mxu0
      %v5069 = vadd.f32 0.0, %v5068
      %5070 = vmatmul.f32.gmra.mxu0 %v4959
      %v5071 = vpop.f32.mrf.mxu0
      %v5072 = vadd.f32 0.0, %v5071
      %5073 = vmatmul.f32.gmra.mxu0 %v4962
      %v5074 = vpop.f32.mrf.mxu0
      %v5075 = vadd.f32 0.0, %v5074
      %5076 = vmatmul.f32.gmra.mxu0 %v4965
      %v5077 = vpop.f32.mrf.mxu0
      %v5078 = vadd.f32 0.0, %v5077
      %5079 = vmatmul.f32.gmra.mxu0 %v4968
      %v5080 = vpop.f32.mrf.mxu0
      %v5081 = vadd.f32 0.0, %v5080
      %5082 = vmatmul.f32.gmra.mxu0 %v4971
      %v5083 = vpop.f32.mrf.mxu0
      %v5084 = vadd.f32 0.0, %v5083
      %5085 = vmatmul.f32.gmra.mxu0 %v4974
      %v5086 = vpop.f32.mrf.mxu0
      %v5087 = vadd.f32 0.0, %v5086
      %5088 = vmatmul.f32.gmra.mxu0 %v4977
      %v5089 = vpop.f32.mrf.mxu0
      %v5090 = vadd.f32 0.0, %v5089
      %5091 = vmatmul.f32.gmra.mxu0 %v4980
      %v5092 = vpop.f32.mrf.mxu0
      %v5093 = vadd.f32 0.0, %v5092
      %5094 = vmatmul.f32.gmra.mxu0 %v4983
      %v5095 = vpop.f32.mrf.mxu0
      %v5096 = vadd.f32 0.0, %v5095
      %5097 = vmatmul.f32.gmra.mxu0 %v4986
      %v5098 = vpop.f32.mrf.mxu0
      %v5099 = vadd.f32 0.0, %v5098
      %5100 = vmatmul.f32.gmra.mxu0 %v4989
      %v5101 = vpop.f32.mrf.mxu0
      %v5102 = vadd.f32 0.0, %v5101
      %5103 = vmatmul.f32.gmra.mxu0 %v4992
      %v5104 = vpop.f32.mrf.mxu0
      %v5105 = vadd.f32 0.0, %v5104
      %5106 = vmatmul.f32.gmra.mxu0 %v4995
      %v5107 = vpop.f32.mrf.mxu0
      %v5108 = vadd.f32 0.0, %v5107
      %5109 = vmatmul.f32.gmra.mxu0 %v4998
      %v5110 = vpop.f32.mrf.mxu0
      %v5111 = vadd.f32 0.0, %v5110
      %5112 = vmatmul.f32.gmra.mxu0 %v5001
      %v5113 = vpop.f32.mrf.mxu0
      %v5114 = vadd.f32 0.0, %v5113
      %5115 = vmatmul.f32.gmra.mxu0 %v5004
      %v5116 = vpop.f32.mrf.mxu0
      %v5117 = vadd.f32 0.0, %v5116
      %5118 = vmatmul.f32.gmra.mxu0 %v5007
      %v5119 = vpop.f32.mrf.mxu0
      %v5120 = vadd.f32 0.0, %v5119
      %5121 = vmatmul.f32.gmra.mxu0 %v5010
      %v5122 = vpop.f32.mrf.mxu0
      %v5123 = vadd.f32 0.0, %v5122
      %5124 = vmatmul.f32.gmra.mxu0 %v5013
      %v5125 = vpop.f32.mrf.mxu0
      %v5126 = vadd.f32 0.0, %v5125
      %5127 = vmatmul.f32.gmra.mxu0 %v5016
      %v5128 = vpop.f32.mrf.mxu0
      %v5129 = vadd.f32 0.0, %v5128
      %5130 = vmatmul.f32.gmra.mxu0 %v5019
      %v5131 = vpop.f32.mrf.mxu0
      %v5132 = vadd.f32 0.0, %v5131
      %5133 = vmatmul.f32.gmra.mxu0 %v5022
      %v5134 = vpop.f32.mrf.mxu0
      %v5135 = vadd.f32 0.0, %v5134
      %5136 = vmatmul.f32.gmra.mxu0 %v5025
      %v5137 = vpop.f32.mrf.mxu0
      %v5138 = vadd.f32 0.0, %v5137
      %5139 = vmatmul.f32.gmra.mxu0 %v5028
      %v5140 = vpop.f32.mrf.mxu0
      %v5141 = vadd.f32 0.0, %v5140
      %5142 = vmatmul.f32.gmra.mxu0 %v5031
      %v5143 = vpop.f32.mrf.mxu0
      %v5144 = vadd.f32 0.0, %v5143
      %5145 = vmatmul.f32.gmra.mxu0 %v5034
      %v5146 = vpop.f32.mrf.mxu0
      %v5147 = vadd.f32 0.0, %v5146
      %5148 = vmatmul.f32.gmra.mxu0 %v5037
      %v5149 = vpop.f32.mrf.mxu0
      %v5150 = vadd.f32 0.0, %v5149
      %5151 = vmatmul.f32.gmra.mxu0 %v5040
      %v5152 = vpop.f32.mrf.mxu0
      %v5153 = vadd.f32 0.0, %v5152
      %5154 = vdwg.mxu0
      %v5155 = vrcp.pop %v4828
      %v5156 = vrcp.pop %v4831
      %v5157 = vrcp.pop %v4834
      %v5158 = vrcp.pop %v4837
      %v5159 = vrcp.pop %v4840
      %v5160 = vrcp.pop %v4843
      %v5161 = vrcp.pop %v4846
      %v5162 = vrcp.pop %v4849
      %v5163 = vrcp.pop %v4852
      %v5164 = vrcp.pop %v4855
      %v5165 = vrcp.pop %v4858
      %v5166 = vrcp.pop %v4861
      %v5167 = vrcp.pop %v4864
      %v5168 = vrcp.pop %v4867
      %v5169 = vrcp.pop %v4870
      %v5170 = vrcp.pop %v4873
      %v5171 = vrcp.pop %v4876
      %v5172 = vrcp.pop %v4879
      %v5173 = vrcp.pop %v4882
      %v5174 = vrcp.pop %v4885
      %v5175 = vrcp.pop %v4888
      %v5176 = vrcp.pop %v4891
      %v5177 = vrcp.pop %v4894
      %v5178 = vrcp.pop %v4897
      %v5179 = vrcp.pop %v4900
      %v5180 = vrcp.pop %v4903
      %v5181 = vrcp.pop %v4906
      %v5182 = vrcp.pop %v4909
      %v5183 = vrcp.pop %v4912
      %v5184 = vrcp.pop %v4915
      %v5185 = vrcp.pop %v4918
      %v5186 = vrcp.pop %v4921
      %v5187 = vmul.f32 %v5060, %v5155
      %v5188 = vmul.f32 %v5063, %v5156
      %v5189 = vmul.f32 %v5066, %v5157
      %v5190 = vmul.f32 %v5069, %v5158
      %v5191 = vmul.f32 %v5072, %v5159
      %v5192 = vmul.f32 %v5075, %v5160
      %v5193 = vmul.f32 %v5078, %v5161
      %v5194 = vmul.f32 %v5081, %v5162
      %v5195 = vmul.f32 %v5084, %v5163
      %v5196 = vmul.f32 %v5087, %v5164
      %v5197 = vmul.f32 %v5090, %v5165
      %v5198 = vmul.f32 %v5093, %v5166
      %v5199 = vmul.f32 %v5096, %v5167
      %v5200 = vmul.f32 %v5099, %v5168
      %v5201 = vmul.f32 %v5102, %v5169
      %v5202 = vmul.f32 %v5105, %v5170
      %v5203 = vmul.f32 %v5108, %v5171
      %v5204 = vmul.f32 %v5111, %v5172
      %v5205 = vmul.f32 %v5114, %v5173
      %v5206 = vmul.f32 %v5117, %v5174
      %v5207 = vmul.f32 %v5120, %v5175
      %v5208 = vmul.f32 %v5123, %v5176
      %v5209 = vmul.f32 %v5126, %v5177
      %v5210 = vmul.f32 %v5129, %v5178
      %v5211 = vmul.f32 %v5132, %v5179
      %v5212 = vmul.f32 %v5135, %v5180
      %v5213 = vmul.f32 %v5138, %v5181
      %v5214 = vmul.f32 %v5141, %v5182
      %v5215 = vmul.f32 %v5144, %v5183
      %v5216 = vmul.f32 %v5147, %v5184
      %v5217 = vmul.f32 %v5150, %v5185
      %v5218 = vmul.f32 %v5153, %v5186
      %v5220 = vsel %vm1038, %v5187, 0
      %v5223 = vsel %vm1038, %v5188, 0
      %v5226 = vsel %vm1038, %v5189, 0
      %v5229 = vsel %vm1038, %v5190, 0
      %v5232 = vsel %vm1038, %v5191, 0
      %v5235 = vsel %vm1038, %v5192, 0
      %v5238 = vsel %vm1038, %v5193, 0
      %v5241 = vsel %vm1038, %v5194, 0
      %v5244 = vsel %vm1038, %v5195, 0
      %v5247 = vsel %vm1038, %v5196, 0
      %v5250 = vsel %vm1038, %v5197, 0
      %v5253 = vsel %vm1038, %v5198, 0
      %v5256 = vsel %vm1038, %v5199, 0
      %v5259 = vsel %vm1038, %v5200, 0
      %v5262 = vsel %vm1038, %v5201, 0
      %v5265 = vsel %vm1038, %v5202, 0
      %v5268 = vsel %vm1038, %v5203, 0
      %v5271 = vsel %vm1038, %v5204, 0
      %v5274 = vsel %vm1038, %v5205, 0
      %v5277 = vsel %vm1038, %v5206, 0
      %v5280 = vsel %vm1038, %v5207, 0
      %v5283 = vsel %vm1038, %v5208, 0
      %v5286 = vsel %vm1038, %v5209, 0
      %v5289 = vsel %vm1038, %v5210, 0
      %v5292 = vsel %vm1038, %v5211, 0
      %v5295 = vsel %vm1038, %v5212, 0
      %v5298 = vsel %vm1038, %v5213, 0
      %v5301 = vsel %vm1038, %v5214, 0
      %v5304 = vsel %vm1038, %v5215, 0
      %v5307 = vsel %vm1038, %v5216, 0
      %v5310 = vsel %vm1038, %v5217, 0
      %v5313 = vsel %vm1038, %v5218, 0
      %5315 = vmatpush.msra.mxu0 0.0
      %5316 = vmatpush.msra.mxu0 0.0
      %5317 = vmatpush.msra.mxu0 0.0
      %5318 = vmatpush.msra.mxu0 0.0
      %5319 = vmatpush.msra.mxu0 0.0
      %5320 = vmatpush.msra.mxu0 0.0
      %5321 = vmatpush.msra.mxu0 0.0
      %5322 = vmatpush.msra.mxu0 0.0
      %5323 = vmatpush.msra.mxu0 0.0
      %5324 = vmatpush.msra.mxu0 0.0
      %5325 = vmatpush.msra.mxu0 0.0
      %5326 = vmatpush.msra.mxu0 0.0
      %5327 = vmatpush.msra.mxu0 0.0
      %5328 = vmatpush.msra.mxu0 0.0
      %5329 = vmatpush.msra.mxu0 0.0
      %5330 = vmatpush.msra.mxu0 %v1036
      %5331 = vmatmul.f32.gmra.mxu0 %v5220
      %v5332 = vpop.f32.mrf.mxu0
      %v5333 = vadd.f32 0.0, %v5332
      %5334 = vmatmul.f32.gmra.mxu0 %v5223
      %v5335 = vpop.f32.mrf.mxu0
      %v5336 = vadd.f32 0.0, %v5335
      %5337 = vmatmul.f32.gmra.mxu0 %v5226
      %v5338 = vpop.f32.mrf.mxu0
      %v5339 = vadd.f32 0.0, %v5338
      %5340 = vmatmul.f32.gmra.mxu0 %v5229
      %v5341 = vpop.f32.mrf.mxu0
      %v5342 = vadd.f32 0.0, %v5341
      %5343 = vmatmul.f32.gmra.mxu0 %v5232
      %v5344 = vpop.f32.mrf.mxu0
      %v5345 = vadd.f32 0.0, %v5344
      %5346 = vmatmul.f32.gmra.mxu0 %v5235
      %v5347 = vpop.f32.mrf.mxu0
      %v5348 = vadd.f32 0.0, %v5347
      %5349 = vmatmul.f32.gmra.mxu0 %v5238
      %v5350 = vpop.f32.mrf.mxu0
      %v5351 = vadd.f32 0.0, %v5350
      %5352 = vmatmul.f32.gmra.mxu0 %v5241
      %v5353 = vpop.f32.mrf.mxu0
      %v5354 = vadd.f32 0.0, %v5353
      %5355 = vmatmul.f32.gmra.mxu0 %v5244
      %v5356 = vpop.f32.mrf.mxu0
      %v5357 = vadd.f32 0.0, %v5356
      %5358 = vmatmul.f32.gmra.mxu0 %v5247
      %v5359 = vpop.f32.mrf.mxu0
      %v5360 = vadd.f32 0.0, %v5359
      %5361 = vmatmul.f32.gmra.mxu0 %v5250
      %v5362 = vpop.f32.mrf.mxu0
      %v5363 = vadd.f32 0.0, %v5362
      %5364 = vmatmul.f32.gmra.mxu0 %v5253
      %v5365 = vpop.f32.mrf.mxu0
      %v5366 = vadd.f32 0.0, %v5365
      %5367 = vmatmul.f32.gmra.mxu0 %v5256
      %v5368 = vpop.f32.mrf.mxu0
      %v5369 = vadd.f32 0.0, %v5368
      %5370 = vmatmul.f32.gmra.mxu0 %v5259
      %v5371 = vpop.f32.mrf.mxu0
      %v5372 = vadd.f32 0.0, %v5371
      %5373 = vmatmul.f32.gmra.mxu0 %v5262
      %v5374 = vpop.f32.mrf.mxu0
      %v5375 = vadd.f32 0.0, %v5374
      %5376 = vmatmul.f32.gmra.mxu0 %v5265
      %v5377 = vpop.f32.mrf.mxu0
      %v5378 = vadd.f32 0.0, %v5377
      %5379 = vmatmul.f32.gmra.mxu0 %v5268
      %v5380 = vpop.f32.mrf.mxu0
      %v5381 = vadd.f32 0.0, %v5380
      %5382 = vmatmul.f32.gmra.mxu0 %v5271
      %v5383 = vpop.f32.mrf.mxu0
      %v5384 = vadd.f32 0.0, %v5383
      %5385 = vmatmul.f32.gmra.mxu0 %v5274
      %v5386 = vpop.f32.mrf.mxu0
      %v5387 = vadd.f32 0.0, %v5386
      %5388 = vmatmul.f32.gmra.mxu0 %v5277
      %v5389 = vpop.f32.mrf.mxu0
      %v5390 = vadd.f32 0.0, %v5389
      %5391 = vmatmul.f32.gmra.mxu0 %v5280
      %v5392 = vpop.f32.mrf.mxu0
      %v5393 = vadd.f32 0.0, %v5392
      %5394 = vmatmul.f32.gmra.mxu0 %v5283
      %v5395 = vpop.f32.mrf.mxu0
      %v5396 = vadd.f32 0.0, %v5395
      %5397 = vmatmul.f32.gmra.mxu0 %v5286
      %v5398 = vpop.f32.mrf.mxu0
      %v5399 = vadd.f32 0.0, %v5398
      %5400 = vmatmul.f32.gmra.mxu0 %v5289
      %v5401 = vpop.f32.mrf.mxu0
      %v5402 = vadd.f32 0.0, %v5401
      %5403 = vmatmul.f32.gmra.mxu0 %v5292
      %v5404 = vpop.f32.mrf.mxu0
      %v5405 = vadd.f32 0.0, %v5404
      %5406 = vmatmul.f32.gmra.mxu0 %v5295
      %v5407 = vpop.f32.mrf.mxu0
      %v5408 = vadd.f32 0.0, %v5407
      %5409 = vmatmul.f32.gmra.mxu0 %v5298
      %v5410 = vpop.f32.mrf.mxu0
      %v5411 = vadd.f32 0.0, %v5410
      %5412 = vmatmul.f32.gmra.mxu0 %v5301
      %v5413 = vpop.f32.mrf.mxu0
      %v5414 = vadd.f32 0.0, %v5413
      %5415 = vmatmul.f32.gmra.mxu0 %v5304
      %v5416 = vpop.f32.mrf.mxu0
      %v5417 = vadd.f32 0.0, %v5416
      %5418 = vmatmul.f32.gmra.mxu0 %v5307
      %v5419 = vpop.f32.mrf.mxu0
      %v5420 = vadd.f32 0.0, %v5419
      %5421 = vmatmul.f32.gmra.mxu0 %v5310
      %v5422 = vpop.f32.mrf.mxu0
      %v5423 = vadd.f32 0.0, %v5422
      %5424 = vmatmul.f32.gmra.mxu0 %v5313
      %v5425 = vpop.f32.mrf.mxu0
      %v5426 = vadd.f32 0.0, %v5425
      %5427 = vdwg.mxu0
      %v5428 = vadd.f32 %v4297, %v5333
      %v5429 = vadd.f32 %v4298, %v5336
      %v5430 = vadd.f32 %v4299, %v5339
      %v5431 = vadd.f32 %v4300, %v5342
      %v5432 = vadd.f32 %v4301, %v5345
      %v5433 = vadd.f32 %v4302, %v5348
      %v5434 = vadd.f32 %v4303, %v5351
      %v5435 = vadd.f32 %v4304, %v5354
      %v5436 = vadd.f32 %v4305, %v5357
      %v5437 = vadd.f32 %v4306, %v5360
      %v5438 = vadd.f32 %v4307, %v5363
      %v5439 = vadd.f32 %v4308, %v5366
      %v5440 = vadd.f32 %v4309, %v5369
      %v5441 = vadd.f32 %v4310, %v5372
      %v5442 = vadd.f32 %v4311, %v5375
      %v5443 = vadd.f32 %v4312, %v5378
      %v5444 = vadd.f32 %v4313, %v5381
      %v5445 = vadd.f32 %v4314, %v5384
      %v5446 = vadd.f32 %v4315, %v5387
      %v5447 = vadd.f32 %v4316, %v5390
      %v5448 = vadd.f32 %v4317, %v5393
      %v5449 = vadd.f32 %v4318, %v5396
      %v5450 = vadd.f32 %v4319, %v5399
      %v5451 = vadd.f32 %v4320, %v5402
      %v5452 = vadd.f32 %v4321, %v5405
      %v5453 = vadd.f32 %v4322, %v5408
      %v5454 = vadd.f32 %v4323, %v5411
      %v5455 = vadd.f32 %v4324, %v5414
      %v5456 = vadd.f32 %v4325, %v5417
      %v5457 = vadd.f32 %v4326, %v5420
      %v5458 = vadd.f32 %v4327, %v5423
      %v5459 = vadd.f32 %v4328, %v5426
      %v5461 = vperm.slane %v1037, 0
      %v5463 = vadd.f32 %v5428, %v5461
      %v5464 = vadd.f32 %v5429, %v5461
      %v5465 = vadd.f32 %v5430, %v5461
      %v5466 = vadd.f32 %v5431, %v5461
      %v5467 = vadd.f32 %v5432, %v5461
      %v5468 = vadd.f32 %v5433, %v5461
      %v5469 = vadd.f32 %v5434, %v5461
      %v5470 = vadd.f32 %v5435, %v5461
      %v5471 = vadd.f32 %v5436, %v5461
      %v5472 = vadd.f32 %v5437, %v5461
      %v5473 = vadd.f32 %v5438, %v5461
      %v5474 = vadd.f32 %v5439, %v5461
      %v5475 = vadd.f32 %v5440, %v5461
      %v5476 = vadd.f32 %v5441, %v5461
      %v5477 = vadd.f32 %v5442, %v5461
      %v5478 = vadd.f32 %v5443, %v5461
      %v5479 = vadd.f32 %v5444, %v5461
      %v5480 = vadd.f32 %v5445, %v5461
      %v5481 = vadd.f32 %v5446, %v5461
      %v5482 = vadd.f32 %v5447, %v5461
      %v5483 = vadd.f32 %v5448, %v5461
      %v5484 = vadd.f32 %v5449, %v5461
      %v5485 = vadd.f32 %v5450, %v5461
      %v5486 = vadd.f32 %v5451, %v5461
      %v5487 = vadd.f32 %v5452, %v5461
      %v5488 = vadd.f32 %v5453, %v5461
      %v5489 = vadd.f32 %v5454, %v5461
      %v5490 = vadd.f32 %v5455, %v5461
      %v5491 = vadd.f32 %v5456, %v5461
      %v5492 = vadd.f32 %v5457, %v5461
      %v5493 = vadd.f32 %v5458, %v5461
      %v5494 = vadd.f32 %v5459, %v5461
      %5495 = vst.msk [vmem:[%s433] sm:$0xff] %vm482, %v5463
      %5496 = vst.msk [vmem:[%s433 + $0x8] sm:$0xff] %vm482, %v5464
      %5497 = vst.msk [vmem:[%s433 + $0x10] sm:$0xff] %vm482, %v5465
      %5498 = vst.msk [vmem:[%s433 + $0x18] sm:$0xff] %vm482, %v5466
      %5499 = vst.msk [vmem:[%s433 + $0x20] sm:$0xff] %vm482, %v5467
      %5500 = vst.msk [vmem:[%s433 + $0x28] sm:$0xff] %vm482, %v5468
      %5501 = vst.msk [vmem:[%s433 + $0x30] sm:$0xff] %vm482, %v5469
      %5502 = vst.msk [vmem:[%s433 + $0x38] sm:$0xff] %vm482, %v5470
      %5503 = vst.msk [vmem:[%s433 + $0x40] sm:$0xff] %vm482, %v5471
      %5504 = vst.msk [vmem:[%s433 + $0x48] sm:$0xff] %vm482, %v5472
      %5505 = vst.msk [vmem:[%s433 + $0x50] sm:$0xff] %vm482, %v5473
      %5506 = vst.msk [vmem:[%s433 + $0x58] sm:$0xff] %vm482, %v5474
      %5507 = vst.msk [vmem:[%s433 + $0x60] sm:$0xff] %vm482, %v5475
      %5508 = vst.msk [vmem:[%s433 + $0x68] sm:$0xff] %vm482, %v5476
      %5509 = vst.msk [vmem:[%s433 + $0x70] sm:$0xff] %vm482, %v5477
      %5510 = vst.msk [vmem:[%s433 + $0x78] sm:$0xff] %vm482, %v5478
      %5511 = vst.msk [vmem:[%s433 + $0x80] sm:$0xff] %vm482, %v5479
      %5512 = vst.msk [vmem:[%s433 + $0x88] sm:$0xff] %vm482, %v5480
      %5513 = vst.msk [vmem:[%s433 + $0x90] sm:$0xff] %vm482, %v5481
      %5514 = vst.msk [vmem:[%s433 + $0x98] sm:$0xff] %vm482, %v5482
      %5515 = vst.msk [vmem:[%s433 + $0xa0] sm:$0xff] %vm482, %v5483
      %5516 = vst.msk [vmem:[%s433 + $0xa8] sm:$0xff] %vm482, %v5484
      %5517 = vst.msk [vmem:[%s433 + $0xb0] sm:$0xff] %vm482, %v5485
      %5518 = vst.msk [vmem:[%s433 + $0xb8] sm:$0xff] %vm482, %v5486
      %5519 = vst.msk [vmem:[%s433 + $0xc0] sm:$0xff] %vm482, %v5487
      %5520 = vst.msk [vmem:[%s433 + $0xc8] sm:$0xff] %vm482, %v5488
      %5521 = vst.msk [vmem:[%s433 + $0xd0] sm:$0xff] %vm482, %v5489
      %5522 = vst.msk [vmem:[%s433 + $0xd8] sm:$0xff] %vm482, %v5490
      %5523 = vst.msk [vmem:[%s433 + $0xe0] sm:$0xff] %vm482, %v5491
      %5524 = vst.msk [vmem:[%s433 + $0xe8] sm:$0xff] %vm482, %v5492
      %5525 = vst.msk [vmem:[%s433 + $0xf0] sm:$0xff] %vm482, %v5493
      %5526 = vst.msk [vmem:[%s433 + $0xf8] sm:$0xff] %vm482, %v5494
      %p5527 = scmp.lt.s32.totalorder %s23, 1
      %s5528 = scalar_select %p5527, %s23, 1
      %s5529 = smul.addr %s5528, 32
      %s5530 = smul.addr %s5529, 8
      %s5531 = scalar_lea.vmem %s12, %s5530
      // Predicated region
      $region69: #{tpu_custom_call.1} parent=67 // pred_check
        %p5532 = pneg %p303
      $region70: #{tpu_custom_call.1} parent=67 // pred_check_branch
        %5534 = sbr.rel (%p5532) target = $region72
      $region71: #{tpu_custom_call.1} parent=67 // pred_region
        _
      $region72: #{tpu_custom_call.1} parent=67 // pred_fallthru
        _
    $region68: #{tpu_custom_call.1} parent=5 // pred_fallthru
      _
    %p5535 = scmp.le.s32.totalorder 2, %s18
    // Predicated region
    $region73: #{tpu_custom_call.1} parent=5 // pred_check
      %p5536 = pneg %p5535
    $region74: #{tpu_custom_call.1} parent=5 // pred_check_branch
      %5538 = sbr.rel (%p5536) target = $region76
    $region75: #{tpu_custom_call.1} parent=5 // pred_region
      %s5539 = ssub.s32 %s18, 2
      // Predicated region
      $region77: #{tpu_custom_call.1} parent=75 // pred_check
        %p5540 = pneg %p309
      $region78: #{tpu_custom_call.1} parent=75 // pred_check_branch
        %5542 = sbr.rel (%p5540) target = $region80
      $region79: #{tpu_custom_call.1} parent=75 // pred_region
        %p5543 = scmp.lt.s32.totalorder %s24, 1
        %s5544 = scalar_select %p5543, %s24, 1
        %s5545 = smul.addr %s5544, 32
        %s5546 = smul.addr %s5545, 8
        %s5547 = scalar_lea.vmem %s12, %s5546
      $region80: #{tpu_custom_call.1} parent=75 // pred_fallthru
        _
    $region76: #{tpu_custom_call.1} parent=5 // pred_fallthru
      _
  $region6: #{tpu_custom_call.1} parent=0 // loop_footer
    %s22 = sadd.s32 1, %s18
  $region7: #{tpu_custom_call.1} parent=0 // loop_footer_branch
    %17 = sbr.rel target = $region3
  $region8: #{tpu_custom_call.1} parent=0 // loop_exit
    _

</llo_original>
